<compile_context>
chip_gen: v5e
topology: v5e:2x2
jax: 0.10.0
libtpu: 0.0.40
codegen_flags: <defaults>
</compile_context>

<pallas_src>
import functools
import math

import jax
import jax.numpy as jnp
from jax.experimental import pallas as pl
from jax.experimental.pallas import tpu as pltpu


def _layernorm(x, gamma, beta, eps=1e-5):
    mean = jnp.mean(x, axis=-1, keepdims=True)
    var = jnp.mean((x - mean) ** 2, axis=-1, keepdims=True)
    return (x - mean) * jax.lax.rsqrt(var + eps) * gamma + beta


def decoder_stack_kernel(x_ref, bias_ref,
                         wqkv_ref, wo_ref,
                         ln1g_ref, ln1b_ref,
                         w1_ref, w2_ref,
                         ln2g_ref, ln2b_ref,
                         o_ref, *maybe_act, heads):
    # Layer-to-layer carry: resident output block when it is f32, else scratch.
    act_ref = maybe_act[0] if maybe_act else o_ref

    layer = pl.program_id(1)
    n_layers = pl.num_programs(1)

    @pl.when(layer == 0)
    def _():
        act_ref[...] = x_ref[...].astype(act_ref.dtype)

    x = act_ref[...]                       # (Bt, S, D) f32, carried across layers
    Bt, S, D = x.shape
    dk = D // heads
    M = Bt * S

    x2 = x.reshape(M, D)
    xb = x2.astype(jnp.bfloat16)

    # Fused QKV projection: (M, D) @ (D, 3D) -> (M, 3D), f32 accumulate.
    qkv = jnp.dot(xb, wqkv_ref[0], preferred_element_type=jnp.float32)

    inv_scale = jnp.float32(1.0 / math.sqrt(dk))
    bias = bias_ref[...]                   # (S, S) f32 additive mask (0 / -1e30)

    def softmax_rows(s):
        s = s - jnp.max(s, axis=-1, keepdims=True)
        p = jnp.exp(s)
        return p * pl.reciprocal(jnp.sum(p, axis=-1, keepdims=True), approx=True)

    if dk % 128 == 0:
        # Lane-aligned head dim: per-head 128-wide column slices of qkv are
        # whole-vreg selections — no S<->heads relayout in either direction.
        ctx_heads = []
        for h in range(heads):
            qh = qkv[:, h * dk:(h + 1) * dk].astype(jnp.bfloat16).reshape(Bt, S, dk)
            kh = qkv[:, D + h * dk:D + (h + 1) * dk].astype(jnp.bfloat16).reshape(Bt, S, dk)
            vh = qkv[:, 2 * D + h * dk:2 * D + (h + 1) * dk].astype(jnp.bfloat16).reshape(Bt, S, dk)
            s = jnp.einsum('bqd,bkd->bqk', qh, kh,
                           preferred_element_type=jnp.float32) * inv_scale
            p = softmax_rows(s + bias[None, :, :])
            ctx = jnp.einsum('bqk,bkd->bqd', p.astype(jnp.bfloat16), vh,
                             preferred_element_type=jnp.float32)
            ctx_heads.append(ctx.astype(jnp.bfloat16).reshape(M, dk))
        mh = jnp.concatenate(ctx_heads, axis=-1)              # (M, D) bf16, 128-aligned stitch
    else:
        def split_heads(t):                # (M, D) -> (Bt*heads, S, dk), cast BEFORE relayout
            t = t.astype(jnp.bfloat16)
            t = t.reshape(Bt, S, heads, dk)
            return jnp.swapaxes(t, 1, 2).reshape(Bt * heads, S, dk)

        qh = split_heads(qkv[:, 0:D])
        kh = split_heads(qkv[:, D:2 * D])
        vh = split_heads(qkv[:, 2 * D:3 * D])

        s = jnp.einsum('bqd,bkd->bqk', qh, kh,
                       preferred_element_type=jnp.float32) * inv_scale
        p = softmax_rows(s + bias[None, :, :])
        ctx = jnp.einsum('bqk,bkd->bqd', p.astype(jnp.bfloat16), vh,
                         preferred_element_type=jnp.float32)  # (Bt*heads, S, dk)
        ctx = ctx.astype(jnp.bfloat16)                        # cast BEFORE merge relayout
        mh = jnp.swapaxes(ctx.reshape(Bt, heads, S, dk), 1, 2).reshape(M, D)

    a1 = jnp.dot(mh, wo_ref[0], preferred_element_type=jnp.float32)

    # Residual + LayerNorm 1 (f32).
    h1 = _layernorm(x2 + a1, ln1g_ref[0], ln1b_ref[0])

    # FFN: Linear -> ReLU -> Linear (bias-free), bf16 matmul inputs.
    ff = jnp.maximum(
        jnp.dot(h1.astype(jnp.bfloat16), w1_ref[0],
                preferred_element_type=jnp.float32), 0.0)
    a2 = jnp.dot(ff.astype(jnp.bfloat16), w2_ref[0],
                 preferred_element_type=jnp.float32)

    # Residual + LayerNorm 2 (f32).
    h2 = _layernorm(h1 + a2, ln2g_ref[0], ln2b_ref[0])

    act_ref[...] = h2.reshape(Bt, S, D).astype(act_ref.dtype)

    if maybe_act:   # separate scratch carry -> write the output on the last layer only
        @pl.when(layer == n_layers - 1)
        def _():
            o_ref[...] = h2.reshape(Bt, S, D).astype(o_ref.dtype)


# ----------------------------------------------------------------------------
# Sizing / generation-aware heuristics
# ----------------------------------------------------------------------------

def _tpu_vmem_and_cores():
    """Best-effort (VMEM capacity bytes, TensorCores per chip)."""
    vmem = 128 << 20
    try:
        info = pltpu.get_tpu_info()
        v = int(getattr(info, "vmem_capacity_bytes", vmem))
        if v > 0:
            vmem = v
    except Exception:
        pass
    # v7x exposes 64 MiB per TensorCore and has 2 TCs/chip (megacore);
    # v5e/v6e have 128 MiB and a single TC.
    num_cores = 2 if vmem <= (64 << 20) else 1
    return vmem, num_cores


def _vmem_budget_bytes(vmem_cap):
    # Leave ~12 MiB headroom for compiler-internal scratch; cap at 112 MiB on
    # 128 MiB parts, which gives ~52 MiB on v7x's 64 MiB per-core VMEM.
    return int(max(min(vmem_cap - (12 << 20), 112 << 20), 32 << 20))


def _tile_footprint_bytes(block_b, S, D, d_ff, heads, weight_bufs, carry_in_out):
    """Honest per-grid-step VMEM footprint (weights multi-buffered, I/O double)."""
    bf16, f32 = 2, 4
    M = block_b * S
    Bh = block_b * heads
    per_layer_w = (3 * D * D + D * D + 2 * D * d_ff) * bf16 + 4 * D * f32
    weights = weight_bufs * per_layer_w
    io = 2 * M * D * f32 + 2 * M * D * f32 + 2 * S * S * f32      # x, out, bias
    scratch = 0 if carry_in_out else M * D * f32
    interm = (M * 3 * D * f32                                      # qkv f32
              + 3 * M * D * bf16                                   # q/k/v bf16
              + 2 * Bh * S * S * f32                               # scores + probs
              + M * D * f32                                        # ctx
              + M * d_ff * (f32 + bf16)                            # ffn act
              + 3 * M * D * f32)                                   # h1, a2, h2
    return weights + io + scratch + interm


def _pick_block_b(B, S, D, d_ff, heads, budget, num_cores, carry_in_out):
    """Fewest batch tiles that fit VMEM: 1 tile on 1-TC parts, 2 on v7x."""
    divisors = [n for n in range(1, B + 1) if B % n == 0]
    candidates = sorted(n for n in divisors if n >= num_cores)     # fewest tiles first
    for n_tiles in candidates:
        bb = B // n_tiles
        if _tile_footprint_bytes(bb, S, D, d_ff, heads, 2, carry_in_out) <= budget:
            return bb
    return 1


def _weight_spec(block_shape, index_map, buffers):
    if buffers > 2 and hasattr(pl, "Buffered"):
        try:
            return pl.BlockSpec(block_shape, index_map,
                                pipeline_mode=pl.Buffered(buffers))
        except TypeError:
            pass
    return pl.BlockSpec(block_shape, index_map)


# ----------------------------------------------------------------------------
# Wrapper
# ----------------------------------------------------------------------------

def pack_decoder_params(block_params):
    stack = lambda name: jnp.stack([p[name] for p in block_params])
    wq, wk, wv = stack("wq"), stack("wk"), stack("wv")
    return {
        "wqkv": jnp.concatenate([wq, wk, wv], axis=-1).astype(jnp.bfloat16),  # (L,D,3D)
        "wo": stack("wo").astype(jnp.bfloat16),                               # (L,D,D)
        "w1": stack("w1").astype(jnp.bfloat16),                               # (L,D,dff)
        "w2": stack("w2").astype(jnp.bfloat16),                               # (L,dff,D)
        "ln1_g": stack("ln1_g").astype(jnp.float32),                          # (L,1,D)
        "ln1_b": stack("ln1_b").astype(jnp.float32),
        "ln2_g": stack("ln2_g").astype(jnp.float32),
        "ln2_b": stack("ln2_b").astype(jnp.float32),
    }


def decoder_forward(x, mask, block_params, heads, *, block_b=None):
    """Full Decoder forward (stack of blocks) as one fused pallas_call."""
    B, S, D = x.shape
    L = len(block_params)
    d_ff = block_params[0]["w1"].shape[1]
    assert D % heads == 0

    vmem_cap, num_cores = _tpu_vmem_and_cores()
    budget = _vmem_budget_bytes(vmem_cap)

    # Carry the layer-to-layer activation in the resident output block when the
    # output dtype is f32 (saves the scratch + the final copy).
    carry_in_out = (x.dtype == jnp.float32)

    if block_b is None:
        block_b = _pick_block_b(B, S, D, d_ff, heads, budget, num_cores, carry_in_out)
    assert B % block_b == 0

    # Deeper weight buffering only on 1-TC parts (128 MiB VMEM) when it fits
    # and the layer loop is deep enough to benefit.
    weight_bufs = 2
    if (num_cores == 1 and L >= 3 and
            _tile_footprint_bytes(block_b, S, D, d_ff, heads, 3, carry_in_out) <= budget):
        weight_bufs = 3

    packed = pack_decoder_params(block_params)
    # Additive mask bias computed once (avoids per-step compare+select and the
    # NaN risk of -inf on fully-masked rows).
    bias = jnp.where(mask == 0, jnp.float32(-1e30), jnp.float32(0.0))

    kernel = functools.partial(decoder_stack_kernel, heads=heads)
    layer_w = lambda b, l: (l, 0, 0)

    scratch_shapes = []
    if not carry_in_out:
        scratch_shapes.append(pltpu.VMEM((block_b, S, D), jnp.float32))

    return pl.pallas_call(
        kernel,
        out_shape=jax.ShapeDtypeStruct((B, S, D), x.dtype),
        grid_spec=pltpu.PrefetchScalarGridSpec(
            num_scalar_prefetch=0,
            grid=(B // block_b, L),
            in_specs=[
                pl.BlockSpec((block_b, S, D), lambda b, l: (b, 0, 0)),   # x
                pl.BlockSpec((S, S),          lambda b, l: (0, 0)),      # mask bias
                _weight_spec((1, D, 3 * D), layer_w, weight_bufs),       # Wqkv
                _weight_spec((1, D, D),     layer_w, weight_bufs),       # Wo
                pl.BlockSpec((1, 1, D),     layer_w),                    # ln1 gamma
                pl.BlockSpec((1, 1, D),     layer_w),                    # ln1 beta
                _weight_spec((1, D, d_ff),  layer_w, weight_bufs),       # FFN W1
                _weight_spec((1, d_ff, D),  layer_w, weight_bufs),       # FFN W2
                pl.BlockSpec((1, 1, D),     layer_w),                    # ln2 gamma
                pl.BlockSpec((1, 1, D),     layer_w),                    # ln2 beta
            ],
            out_specs=pl.BlockSpec((block_b, S, D), lambda b, l: (b, 0, 0)),
            scratch_shapes=scratch_shapes,
        ),
        compiler_params=pltpu.CompilerParams(
            dimension_semantics=("parallel", "arbitrary"),
            vmem_limit_bytes=budget,
        ),
    )(x, bias,
      packed["wqkv"], packed["wo"],
      packed["ln1_g"], packed["ln1_b"],
      packed["w1"], packed["w2"],
      packed["ln2_g"], packed["ln2_b"])


# ----------------------------------------------------------------------------
# Parameter init + pure-JAX reference (mirrors the PyTorch module)
# ----------------------------------------------------------------------------

def init_block_params(key, d_model, multiplier=4):
    d_ff = multiplier * d_model
    ks = jax.random.split(key, 6)
    scale = 0.02
    # Linear weights stored as (in, out): kernel computes x @ W.
    return {
        "wq": scale * jax.random.normal(ks[0], (d_model, d_model), jnp.float32),
        "wk": scale * jax.random.normal(ks[1], (d_model, d_model), jnp.float32),
        "wv": scale * jax.random.normal(ks[2], (d_model, d_model), jnp.float32),
        "wo": scale * jax.random.normal(ks[3], (d_model, d_model), jnp.float32),
        "ln1_g": jnp.ones((1, d_model), jnp.float32),
        "ln1_b": jnp.zeros((1, d_model), jnp.float32),
        "w1": scale * jax.random.normal(ks[4], (d_model, d_ff), jnp.float32),
        "w2": scale * jax.random.normal(ks[5], (d_ff, d_model), jnp.float32),
        "ln2_g": jnp.ones((1, d_model), jnp.float32),
        "ln2_b": jnp.zeros((1, d_model), jnp.float32),
    }


def _decoder_reference(x, mask, block_params, heads):
    """Pure-JAX f32 reference mirroring the PyTorch module."""
    def ln(v, g, b, eps=1e-5):
        m = jnp.mean(v, -1, keepdims=True)
        var = jnp.mean((v - m) ** 2, -1, keepdims=True)
        return (v - m) / jnp.sqrt(var + eps) * g + b

    a = x
    D = x.shape[-1]
    dk = D // heads
    for p in block_params:
        q, k, v = a @ p["wq"], a @ p["wk"], a @ p["wv"]
        outs = []
        for h in range(heads):
            sl = slice(h * dk, (h + 1) * dk)
            s = q[..., sl] @ jnp.swapaxes(k[..., sl], -1, -2) / jnp.sqrt(jnp.float32(dk))
            s = jnp.where(mask == 0, jnp.float32(-1e30), s)
            outs.append(jax.nn.softmax(s, axis=-1) @ v[..., sl])
        a1 = ln(a + jnp.concatenate(outs, -1) @ p["wo"], p["ln1_g"][0], p["ln1_b"][0])
        ff = jnp.maximum(a1 @ p["w1"], 0.0) @ p["w2"]
        a = ln(a1 + ff, p["ln2_g"][0], p["ln2_b"][0])
    return a


if __name__ == "__main__":
    root = jax.random.PRNGKey(0)
    k_test1, k_test2 = jax.random.split(root)

    # --- Test 1: dk < 128 -> head-batched einsum path -----------------------
    B, S, D, HEADS, NUM_BLOCKS = 2, 16, 128, 4, 2
    kx, kp = jax.random.split(k_test1)
    x = jax.random.normal(kx, (B, S, D), jnp.float32)
    mask = jnp.tril(jnp.ones((S, S), jnp.float32))      # causal mask (1=keep)
    block_params = [init_block_params(k, D) for k in jax.random.split(kp, NUM_BLOCKS)]

    out = jax.block_until_ready(decoder_forward(x, mask, block_params, HEADS))
    assert out.shape == (B, S, D)
    assert bool(jnp.all(jnp.isfinite(out)))
    ref = _decoder_reference(x, mask, block_params, HEADS)
    err = float(jnp.max(jnp.abs(out - ref)))
    assert err < 5e-2, f"path1 max abs error vs f32 reference: {err}"

    # --- Test 2: dk == 128 -> lane-aligned per-head slicing path (L=3 also
    # exercises Buffered(3) weight streaming on 1-TC parts) -------------------
    B2, S2, D2, HEADS2, NUM_BLOCKS2 = 2, 16, 256, 2, 3
    kx2, kp2 = jax.random.split(k_test2)
    x2 = jax.random.normal(kx2, (B2, S2, D2), jnp.float32)
    mask2 = jnp.tril(jnp.ones((S2, S2), jnp.float32))
    block_params2 = [init_block_params(k, D2) for k in jax.random.split(kp2, NUM_BLOCKS2)]

    out2 = jax.block_until_ready(decoder_forward(x2, mask2, block_params2, HEADS2))
    assert out2.shape == (B2, S2, D2)
    assert bool(jnp.all(jnp.isfinite(out2)))
    ref2 = _decoder_reference(x2, mask2, block_params2, HEADS2)
    err2 = float(jnp.max(jnp.abs(out2 - ref2)))
    assert err2 < 7.5e-2, f"path2 max abs error vs f32 reference: {err2}"

    print("KERNEL_OK")
</pallas_src>

<mosaic_0001>
module attributes {stable_mosaic.version = 11 : i64} {
  func.func @decoder_stack_kernel(%arg0: i32, %arg1: i32, %arg2: memref<2x16x128xf32, #tpu.memory_space<vmem>>, %arg3: memref<16x16xf32, #tpu.memory_space<vmem>>, %arg4: memref<1x128x384xbf16, #tpu.memory_space<vmem>>, %arg5: memref<1x128x128xbf16, #tpu.memory_space<vmem>>, %arg6: memref<1x1x128xf32, #tpu.memory_space<vmem>>, %arg7: memref<1x1x128xf32, #tpu.memory_space<vmem>>, %arg8: memref<1x128x512xbf16, #tpu.memory_space<vmem>>, %arg9: memref<1x512x128xbf16, #tpu.memory_space<vmem>>, %arg10: memref<1x1x128xf32, #tpu.memory_space<vmem>>, %arg11: memref<1x1x128xf32, #tpu.memory_space<vmem>>, %arg12: memref<2x16x128xf32, #tpu.memory_space<vmem>>) attributes {dimension_semantics = [#tpu.dimension_semantics<parallel>, #tpu.dimension_semantics<arbitrary>], iteration_bounds = array<i64: 1, 2>, scalar_prefetch = 0 : i64, scratch_operands = 0 : i64, tpu.core_type = #tpu.core_type<tc>, window_params = [{transform_indices = @transform_0, window_bounds = array<i64: 2, 16, 128>}, {pipeline_mode = #tpu.pipeline_mode<synchronous>, transform_indices = @transform_1, window_bounds = array<i64: 16, 16>}, {transform_indices = @transform_2, window_bounds = array<i64: 1, 128, 384>}, {transform_indices = @transform_3, window_bounds = array<i64: 1, 128, 128>}, {transform_indices = @transform_4, window_bounds = array<i64: 1, 1, 128>}, {transform_indices = @transform_5, window_bounds = array<i64: 1, 1, 128>}, {transform_indices = @transform_6, window_bounds = array<i64: 1, 128, 512>}, {transform_indices = @transform_7, window_bounds = array<i64: 1, 512, 128>}, {transform_indices = @transform_8, window_bounds = array<i64: 1, 1, 128>}, {transform_indices = @transform_9, window_bounds = array<i64: 1, 1, 128>}, {transform_indices = @transform_10, window_bounds = array<i64: 2, 16, 128>}]} {
    %c0_i32 = arith.constant 0 : i32
    %0 = arith.cmpi eq, %arg1, %c0_i32 : i32
    %1 = arith.extui %0 : i1 to i32
    %c0_i32_0 = arith.constant 0 : i32
    %2 = arith.cmpi ne, %1, %c0_i32_0 : i32
    scf.if %2 {
      %c0_51 = arith.constant 0 : index
      %c0_52 = arith.constant 0 : index
      %c0_53 = arith.constant 0 : index
      %116 = vector.load %arg2[%c0_51, %c0_52, %c0_53] : memref<2x16x128xf32, #tpu.memory_space<vmem>>, vector<2x16x128xf32>
      %c0_54 = arith.constant 0 : index
      %c0_55 = arith.constant 0 : index
      %c0_56 = arith.constant 0 : index
      %117 = vector.load %arg12[%c0_54, %c0_55, %c0_56] : memref<2x16x128xf32, #tpu.memory_space<vmem>>, vector<2x16x128xf32>
      tpu.vector_store %arg12[%c0_54, %c0_55, %c0_56], %116 {strides = array<i32>} : memref<2x16x128xf32, #tpu.memory_space<vmem>>, vector<2x16x128xf32>,
    } else {
    }
    %c0 = arith.constant 0 : index
    %c0_1 = arith.constant 0 : index
    %c0_2 = arith.constant 0 : index
    %3 = vector.load %arg12[%c0, %c0_1, %c0_2] : memref<2x16x128xf32, #tpu.memory_space<vmem>>, vector<2x16x128xf32>
    %4 = vector.shape_cast %3 : vector<2x16x128xf32> to vector<32x128xf32>
    %5 = arith.truncf %4 : vector<32x128xf32> to vector<32x128xbf16>
    %c0_3 = arith.constant 0 : index
    %c0_4 = arith.constant 0 : index
    %c0_5 = arith.constant 0 : index
    %6 = vector.load %arg4[%c0_3, %c0_4, %c0_5] : memref<1x128x384xbf16, #tpu.memory_space<vmem>>, vector<1x128x384xbf16>
    %7 = vector.shape_cast %6 : vector<1x128x384xbf16> to vector<128x384xbf16>
    %cst = arith.constant dense<0.000000e+00> : vector<32x384xf32>
    %8 = tpu.matmul %5, %7, %cst {dimension_numbers = #tpu.dot_dimension_numbers<[1], [0], [0], [1], [0, 0, 1, 1], [], []>} : vector<32x128xbf16>, vector<128x384xbf16>, vector<32x384xf32> -> vector<32x384xf32>
    %c0_6 = arith.constant 0 : index
    %c0_7 = arith.constant 0 : index
    %9 = vector.load %arg3[%c0_6, %c0_7] : memref<16x16xf32, #tpu.memory_space<vmem>>, vector<16x16xf32>
    %10 = vector.extract_strided_slice %8 {offsets = [0, 0], sizes = [32, 128], strides = [1, 1]} : vector<32x384xf32> to vector<32x128xf32>
    %11 = arith.truncf %10 : vector<32x128xf32> to vector<32x128xbf16>
    %12 = vector.shape_cast %11 : vector<32x128xbf16> to vector<2x16x4x32xbf16>
    %13 = tpu.transpose %12, [0, 2, 1, 3] : vector<2x16x4x32xbf16> -> vector<2x4x16x32xbf16>
    %14 = vector.shape_cast %13 : vector<2x4x16x32xbf16> to vector<8x16x32xbf16>
    %15 = vector.extract_strided_slice %8 {offsets = [0, 128], sizes = [32, 128], strides = [1, 1]} : vector<32x384xf32> to vector<32x128xf32>
    %16 = arith.truncf %15 : vector<32x128xf32> to vector<32x128xbf16>
    %17 = vector.shape_cast %16 : vector<32x128xbf16> to vector<2x16x4x32xbf16>
    %18 = tpu.transpose %17, [0, 2, 1, 3] : vector<2x16x4x32xbf16> -> vector<2x4x16x32xbf16>
    %19 = vector.shape_cast %18 : vector<2x4x16x32xbf16> to vector<8x16x32xbf16>
    %20 = vector.extract_strided_slice %8 {offsets = [0, 256], sizes = [32, 128], strides = [1, 1]} : vector<32x384xf32> to vector<32x128xf32>
    %21 = arith.truncf %20 : vector<32x128xf32> to vector<32x128xbf16>
    %22 = vector.shape_cast %21 : vector<32x128xbf16> to vector<2x16x4x32xbf16>
    %23 = tpu.transpose %22, [0, 2, 1, 3] : vector<2x16x4x32xbf16> -> vector<2x4x16x32xbf16>
    %24 = vector.shape_cast %23 : vector<2x4x16x32xbf16> to vector<8x16x32xbf16>
    "tpu.trace_start"() <{level = 10 : i32, message = "bqd,bkd->bqk"}> : () -> ()
    %cst_8 = arith.constant dense<0.000000e+00> : vector<8x16x16xf32>
    %25 = tpu.matmul %14, %19, %cst_8 {dimension_numbers = #tpu.dot_dimension_numbers<[2], [2], [1], [1], [0, 0, 0, 1, 1, 1], [0], [0]>} : vector<8x16x32xbf16>, vector<8x16x32xbf16>, vector<8x16x16xf32> -> vector<8x16x16xf32>
    "tpu.trace_stop"() : () -> ()
    %cst_9 = arith.constant 0.176776692 : f32
    %26 = vector.broadcast %cst_9 : f32 to vector<8x16x16xf32>
    %27 = arith.mulf %25, %26 : vector<8x16x16xf32>
    %28 = vector.shape_cast %9 : vector<16x16xf32> to vector<1x16x16xf32>
    %29 = vector.broadcast %28 : vector<1x16x16xf32> to vector<8x16x16xf32>
    %30 = arith.addf %27, %29 : vector<8x16x16xf32>
    %cst_10 = arith.constant dense<0xFF800000> : vector<8x16xf32>
    %31 = vector.multi_reduction <maximumf>, %30, %cst_10 [2] : vector<8x16x16xf32> to vector<8x16xf32>
    %32 = vector.shape_cast %31 : vector<8x16xf32> to vector<8x16x1xf32>
    %33 = vector.broadcast %32 : vector<8x16x1xf32> to vector<8x16x16xf32>
    %34 = arith.subf %30, %33 : vector<8x16x16xf32>
    %35 = math.exp %34 : vector<8x16x16xf32>
    %cst_11 = arith.constant dense<0.000000e+00> : vector<8x16xf32>
    %36 = vector.multi_reduction <add>, %35, %cst_11 [2] : vector<8x16x16xf32> to vector<8x16xf32>
    %37 = vector.shape_cast %36 : vector<8x16xf32> to vector<8x16x1xf32>
    %38 = tpu.reciprocal %37 {approx = true} : vector<8x16x1xf32> -> vector<8x16x1xf32>
    %39 = vector.broadcast %38 : vector<8x16x1xf32> to vector<8x16x16xf32>
    %40 = arith.mulf %35, %39 : vector<8x16x16xf32>
    %41 = arith.truncf %40 : vector<8x16x16xf32> to vector<8x16x16xbf16>
    "tpu.trace_start"() <{level = 10 : i32, message = "bqk,bkd->bqd"}> : () -> ()
    %cst_12 = arith.constant dense<0.000000e+00> : vector<8x16x32xf32>
    %42 = tpu.matmul %41, %24, %cst_12 {dimension_numbers = #tpu.dot_dimension_numbers<[2], [1], [1], [2], [0, 0, 0, 1, 1, 2], [0], [0]>} : vector<8x16x16xbf16>, vector<8x16x32xbf16>, vector<8x16x32xf32> -> vector<8x16x32xf32>
    "tpu.trace_stop"() : () -> ()
    %43 = arith.truncf %42 : vector<8x16x32xf32> to vector<8x16x32xbf16>
    %44 = vector.shape_cast %43 : vector<8x16x32xbf16> to vector<2x4x16x32xbf16>
    %45 = tpu.transpose %44, [0, 2, 1, 3] : vector<2x4x16x32xbf16> -> vector<2x16x4x32xbf16>
    %46 = vector.shape_cast %45 : vector<2x16x4x32xbf16> to vector<32x128xbf16>
    %c0_13 = arith.constant 0 : index
    %c0_14 = arith.constant 0 : index
    %c0_15 = arith.constant 0 : index
    %47 = vector.load %arg5[%c0_13, %c0_14, %c0_15] : memref<1x128x128xbf16, #tpu.memory_space<vmem>>, vector<1x128x128xbf16>
    %48 = vector.shape_cast %47 : vector<1x128x128xbf16> to vector<128x128xbf16>
    %cst_16 = arith.constant dense<0.000000e+00> : vector<32x128xf32>
    %49 = tpu.matmul %46, %48, %cst_16 {dimension_numbers = #tpu.dot_dimension_numbers<[1], [0], [0], [1], [0, 0, 1, 1], [], []>} : vector<32x128xbf16>, vector<128x128xbf16>, vector<32x128xf32> -> vector<32x128xf32>
    %50 = arith.addf %4, %49 : vector<32x128xf32>
    %c0_17 = arith.constant 0 : index
    %c0_18 = arith.constant 0 : index
    %c0_19 = arith.constant 0 : index
    %51 = vector.load %arg6[%c0_17, %c0_18, %c0_19] : memref<1x1x128xf32, #tpu.memory_space<vmem>>, vector<1x1x128xf32>
    %52 = vector.shape_cast %51 : vector<1x1x128xf32> to vector<1x128xf32>
    %c0_20 = arith.constant 0 : index
    %c0_21 = arith.constant 0 : index
    %c0_22 = arith.constant 0 : index
    %53 = vector.load %arg7[%c0_20, %c0_21, %c0_22] : memref<1x1x128xf32, #tpu.memory_space<vmem>>, vector<1x1x128xf32>
    %54 = vector.shape_cast %53 : vector<1x1x128xf32> to vector<1x128xf32>
    %cst_23 = arith.constant dense<0.000000e+00> : vector<32xf32>
    %55 = vector.multi_reduction <add>, %50, %cst_23 [1] : vector<32x128xf32> to vector<32xf32>
    %56 = vector.shape_cast %55 : vector<32xf32> to vector<32x1xf32>
    %cst_24 = arith.constant 1.280000e+02 : f32
    %57 = vector.broadcast %cst_24 : f32 to vector<32x1xf32>
    %58 = arith.divf %56, %57 : vector<32x1xf32>
    %59 = vector.broadcast %58 : vector<32x1xf32> to vector<32x128xf32>
    %60 = arith.subf %50, %59 : vector<32x128xf32>
    %61 = arith.mulf %60, %60 : vector<32x128xf32>
    %cst_25 = arith.constant dense<0.000000e+00> : vector<32xf32>
    %62 = vector.multi_reduction <add>, %61, %cst_25 [1] : vector<32x128xf32> to vector<32xf32>
    %63 = vector.shape_cast %62 : vector<32xf32> to vector<32x1xf32>
    %cst_26 = arith.constant 1.280000e+02 : f32
    %64 = vector.broadcast %cst_26 : f32 to vector<32x1xf32>
    %65 = arith.divf %63, %64 : vector<32x1xf32>
    %66 = vector.broadcast %58 : vector<32x1xf32> to vector<32x128xf32>
    %67 = arith.subf %50, %66 : vector<32x128xf32>
    %cst_27 = arith.constant 9.99999974E-6 : f32
    %68 = vector.broadcast %cst_27 : f32 to vector<32x1xf32>
    %69 = arith.addf %65, %68 : vector<32x1xf32>
    %70 = math.rsqrt %69 : vector<32x1xf32>
    %71 = vector.broadcast %70 : vector<32x1xf32> to vector<32x128xf32>
    %72 = arith.mulf %67, %71 : vector<32x128xf32>
    %73 = vector.broadcast %52 : vector<1x128xf32> to vector<32x128xf32>
    %74 = arith.mulf %72, %73 : vector<32x128xf32>
    %75 = vector.broadcast %54 : vector<1x128xf32> to vector<32x128xf32>
    %76 = arith.addf %74, %75 : vector<32x128xf32>
    %77 = arith.truncf %76 : vector<32x128xf32> to vector<32x128xbf16>
    %c0_28 = arith.constant 0 : index
    %c0_29 = arith.constant 0 : index
    %c0_30 = arith.constant 0 : index
    %78 = vector.load %arg8[%c0_28, %c0_29, %c0_30] : memref<1x128x512xbf16, #tpu.memory_space<vmem>>, vector<1x128x512xbf16>
    %79 = vector.shape_cast %78 : vector<1x128x512xbf16> to vector<128x512xbf16>
    %cst_31 = arith.constant dense<0.000000e+00> : vector<32x512xf32>
    %80 = tpu.matmul %77, %79, %cst_31 {dimension_numbers = #tpu.dot_dimension_numbers<[1], [0], [0], [1], [0, 0, 1, 1], [], []>} : vector<32x128xbf16>, vector<128x512xbf16>, vector<32x512xf32> -> vector<32x512xf32>
    %cst_32 = arith.constant 0.000000e+00 : f32
    %81 = vector.broadcast %cst_32 : f32 to vector<32x512xf32>
    %82 = arith.maximumf %80, %81 : vector<32x512xf32>
    %83 = arith.truncf %82 : vector<32x512xf32> to vector<32x512xbf16>
    %c0_33 = arith.constant 0 : index
    %c0_34 = arith.constant 0 : index
    %c0_35 = arith.constant 0 : index
    %84 = vector.load %arg9[%c0_33, %c0_34, %c0_35] : memref<1x512x128xbf16, #tpu.memory_space<vmem>>, vector<1x512x128xbf16>
    %85 = vector.shape_cast %84 : vector<1x512x128xbf16> to vector<512x128xbf16>
    %cst_36 = arith.constant dense<0.000000e+00> : vector<32x128xf32>
    %86 = tpu.matmul %83, %85, %cst_36 {dimension_numbers = #tpu.dot_dimension_numbers<[1], [0], [0], [1], [0, 0, 1, 1], [], []>} : vector<32x512xbf16>, vector<512x128xbf16>, vector<32x128xf32> -> vector<32x128xf32>
    %87 = arith.addf %76, %86 : vector<32x128xf32>
    %c0_37 = arith.constant 0 : index
    %c0_38 = arith.constant 0 : index
    %c0_39 = arith.constant 0 : index
    %88 = vector.load %arg10[%c0_37, %c0_38, %c0_39] : memref<1x1x128xf32, #tpu.memory_space<vmem>>, vector<1x1x128xf32>
    %89 = vector.shape_cast %88 : vector<1x1x128xf32> to vector<1x128xf32>
    %c0_40 = arith.constant 0 : index
    %c0_41 = arith.constant 0 : index
    %c0_42 = arith.constant 0 : index
    %90 = vector.load %arg11[%c0_40, %c0_41, %c0_42] : memref<1x1x128xf32, #tpu.memory_space<vmem>>, vector<1x1x128xf32>
    %91 = vector.shape_cast %90 : vector<1x1x128xf32> to vector<1x128xf32>
    %cst_43 = arith.constant dense<0.000000e+00> : vector<32xf32>
    %92 = vector.multi_reduction <add>, %87, %cst_43 [1] : vector<32x128xf32> to vector<32xf32>
    %93 = vector.shape_cast %92 : vector<32xf32> to vector<32x1xf32>
    %cst_44 = arith.constant 1.280000e+02 : f32
    %94 = vector.broadcast %cst_44 : f32 to vector<32x1xf32>
    %95 = arith.divf %93, %94 : vector<32x1xf32>
    %96 = vector.broadcast %95 : vector<32x1xf32> to vector<32x128xf32>
    %97 = arith.subf %87, %96 : vector<32x128xf32>
    %98 = arith.mulf %97, %97 : vector<32x128xf32>
    %cst_45 = arith.constant dense<0.000000e+00> : vector<32xf32>
    %99 = vector.multi_reduction <add>, %98, %cst_45 [1] : vector<32x128xf32> to vector<32xf32>
    %100 = vector.shape_cast %99 : vector<32xf32> to vector<32x1xf32>
    %cst_46 = arith.constant 1.280000e+02 : f32
    %101 = vector.broadcast %cst_46 : f32 to vector<32x1xf32>
    %102 = arith.divf %100, %101 : vector<32x1xf32>
    %103 = vector.broadcast %95 : vector<32x1xf32> to vector<32x128xf32>
    %104 = arith.subf %87, %103 : vector<32x128xf32>
    %cst_47 = arith.constant 9.99999974E-6 : f32
    %105 = vector.broadcast %cst_47 : f32 to vector<32x1xf32>
    %106 = arith.addf %102, %105 : vector<32x1xf32>
    %107 = math.rsqrt %106 : vector<32x1xf32>
    %108 = vector.broadcast %107 : vector<32x1xf32> to vector<32x128xf32>
    %109 = arith.mulf %104, %108 : vector<32x128xf32>
    %110 = vector.broadcast %89 : vector<1x128xf32> to vector<32x128xf32>
    %111 = arith.mulf %109, %110 : vector<32x128xf32>
    %112 = vector.broadcast %91 : vector<1x128xf32> to vector<32x128xf32>
    %113 = arith.addf %111, %112 : vector<32x128xf32>
    %114 = vector.shape_cast %113 : vector<32x128xf32> to vector<2x16x128xf32>
    %c0_48 = arith.constant 0 : index
    %c0_49 = arith.constant 0 : index
    %c0_50 = arith.constant 0 : index
    %115 = vector.load %arg12[%c0_48, %c0_49, %c0_50] : memref<2x16x128xf32, #tpu.memory_space<vmem>>, vector<2x16x128xf32>
    tpu.vector_store %arg12[%c0_48, %c0_49, %c0_50], %114 {strides = array<i32>} : memref<2x16x128xf32, #tpu.memory_space<vmem>>, vector<2x16x128xf32>,
    return
  }
  func.func @transform_0(%arg0: i32, %arg1: i32) -> (i32, i32, i32) {
    %c0_i32 = arith.constant 0 : i32
    %c0_i32_0 = arith.constant 0 : i32
    %c0_i32_1 = arith.constant 0 : i32
    return %arg0, %c0_i32, %c0_i32_0 : i32, i32, i32
  }
  func.func @transform_1(%arg0: i32, %arg1: i32) -> (i32, i32) {
    %c0_i32 = arith.constant 0 : i32
    %c0_i32_0 = arith.constant 0 : i32
    %c0_i32_1 = arith.constant 0 : i32
    return %c0_i32, %c0_i32_0 : i32, i32
  }
  func.func @transform_2(%arg0: i32, %arg1: i32) -> (i32, i32, i32) {
    %c0_i32 = arith.constant 0 : i32
    %c0_i32_0 = arith.constant 0 : i32
    %c0_i32_1 = arith.constant 0 : i32
    return %arg1, %c0_i32, %c0_i32_0 : i32, i32, i32
  }
  func.func @transform_3(%arg0: i32, %arg1: i32) -> (i32, i32, i32) {
    %c0_i32 = arith.constant 0 : i32
    %c0_i32_0 = arith.constant 0 : i32
    %c0_i32_1 = arith.constant 0 : i32
    return %arg1, %c0_i32, %c0_i32_0 : i32, i32, i32
  }
  func.func @transform_4(%arg0: i32, %arg1: i32) -> (i32, i32, i32) {
    %c0_i32 = arith.constant 0 : i32
    %c0_i32_0 = arith.constant 0 : i32
    %c0_i32_1 = arith.constant 0 : i32
    return %arg1, %c0_i32, %c0_i32_0 : i32, i32, i32
  }
  func.func @transform_5(%arg0: i32, %arg1: i32) -> (i32, i32, i32) {
    %c0_i32 = arith.constant 0 : i32
    %c0_i32_0 = arith.constant 0 : i32
    %c0_i32_1 = arith.constant 0 : i32
    return %arg1, %c0_i32, %c0_i32_0 : i32, i32, i32
  }
  func.func @transform_6(%arg0: i32, %arg1: i32) -> (i32, i32, i32) {
    %c0_i32 = arith.constant 0 : i32
    %c0_i32_0 = arith.constant 0 : i32
    %c0_i32_1 = arith.constant 0 : i32
    return %arg1, %c0_i32, %c0_i32_0 : i32, i32, i32
  }
  func.func @transform_7(%arg0: i32, %arg1: i32) -> (i32, i32, i32) {
    %c0_i32 = arith.constant 0 : i32
    %c0_i32_0 = arith.constant 0 : i32
    %c0_i32_1 = arith.constant 0 : i32
    return %arg1, %c0_i32, %c0_i32_0 : i32, i32, i32
  }
  func.func @transform_8(%arg0: i32, %arg1: i32) -> (i32, i32, i32) {
    %c0_i32 = arith.constant 0 : i32
    %c0_i32_0 = arith.constant 0 : i32
    %c0_i32_1 = arith.constant 0 : i32
    return %arg1, %c0_i32, %c0_i32_0 : i32, i32, i32
  }
  func.func @transform_9(%arg0: i32, %arg1: i32) -> (i32, i32, i32) {
    %c0_i32 = arith.constant 0 : i32
    %c0_i32_0 = arith.constant 0 : i32
    %c0_i32_1 = arith.constant 0 : i32
    return %arg1, %c0_i32, %c0_i32_0 : i32, i32, i32
  }
  func.func @transform_10(%arg0: i32, %arg1: i32) -> (i32, i32, i32) {
    %c0_i32 = arith.constant 0 : i32
    %c0_i32_0 = arith.constant 0 : i32
    %c0_i32_1 = arith.constant 0 : i32
    return %arg0, %c0_i32, %c0_i32_0 : i32, i32, i32
  }
}

</mosaic_0001>

<llo_original>
// kernel: tpu_custom_call.1
$region0: #{tpu_custom_call.1}
  #allocation0 [shape = 'u32[]', space=smem, size = 0x4, offset = 0x4, fixed_abs, tag = 'smem constant byte address 0x4 - core index']
  #allocation1 [shape = 'u32[72,128]{1,0:T(1,128)}', space=vmem, size = 0x9000, scoped, tag = 'internal scratch']
  %s0 = inlined_call_operand.hbm [shape: f32[2,16,128], index: 0, kind: input, shape index: {}]
  %s1 = inlined_call_operand.hbm [shape: f32[16,16], index: 1, kind: input, shape index: {}]
  %s2 = inlined_call_operand.hbm [shape: bf16[2,128,384], index: 2, kind: input, shape index: {}]
  %s3 = inlined_call_operand.hbm [shape: bf16[2,128,128], index: 3, kind: input, shape index: {}]
  %s4 = inlined_call_operand.vmem [shape: f32[2,1,128], index: 4, kind: input, shape index: {}]
  %s5 = inlined_call_operand.vmem [shape: f32[2,1,128], index: 5, kind: input, shape index: {}]
  %s6 = inlined_call_operand.hbm [shape: bf16[2,128,512], index: 6, kind: input, shape index: {}]
  %s7 = inlined_call_operand.hbm [shape: bf16[2,512,128], index: 7, kind: input, shape index: {}]
  %s8 = inlined_call_operand.vmem [shape: f32[2,1,128], index: 8, kind: input, shape index: {}]
  %s9 = inlined_call_operand.vmem [shape: f32[2,1,128], index: 9, kind: input, shape index: {}]
  %s10 = inlined_call_operand.hbm [shape: f32[2,16,128], index: 10, kind: output, shape index: {}]
  %s11 = sld [smem:[#allocation0]]
  $region101: #{tpu_custom_call.1} parent=0
    _
  %s13 = ssub.s32 1, %s11
  %s14 = scalar_select 0, %s13, %s11
  $region1: #{tpu_custom_call.1} parent=0
    #allocation2 [shape = 'u8[16384]{0}', space=vmem, size = 0x4000, scoped, tag = 'input window, operand 0, single buffered']
    #allocation3 [shape = 's32[2]{0}', space=sflag, size = 0x8, scoped, tag = 'scoped memory for tpu_custom_call.1']
    #allocation4 [shape = 's32[2]{0}', space=sflag, size = 0x8, scoped, tag = 'scoped memory for tpu_custom_call.1']
    #allocation5 [shape = 'u8[8192]{0}', space=vmem, size = 0x2000, scoped, tag = 'input window, operand 1, single buffered']
    #allocation6 [shape = 's32[1]{0}', space=sflag, size = 0x4, scoped, tag = 'scoped memory for tpu_custom_call.1']
    #allocation7 [shape = 'u8[196608]{0}', space=vmem, size = 0x30000, scoped, tag = 'input window, operand 2']
    #allocation8 [shape = 'u8[65536]{0}', space=vmem, size = 0x10000, scoped, tag = 'input window, operand 3']
    #allocation9 [shape = 'u8[262144]{0}', space=vmem, size = 0x40000, scoped, tag = 'input window, operand 6']
    #allocation10 [shape = 'u8[262144]{0}', space=vmem, size = 0x40000, scoped, tag = 'input window, operand 7']
    #allocation11 [shape = 'u8[16384]{0}', space=vmem, size = 0x4000, scoped, tag = 'output window, operand 0, single buffered']
    %15 = vsyncpa [#allocation3], 0
    %16 = vsyncpa [#allocation6], 0
    %17 = vsyncpa [#allocation4], 0
    loop: start=0, step=1, limit=4
    $region2: #{tpu_custom_call.1} parent=1 // loop_pre_header
      _
    $region3: #{tpu_custom_call.1} parent=1 // loop_header
      %s19 = sphi 0, %s23
      %p20 = scmp.ge.s32.totalorder %s19, 4
      %s26 = sphi 0, %s38
      %s27 = sphi 0, %s34
      %s28 = sphi 0, %s26
      %s29 = sphi 0, %s27
      %s30 = sphi 0, %s28
      %s31 = sphi 0, %s29
      %s41 = sphi 0, %s43
      %s44 = sphi 0, %s41
      %s45 = sphi 0, %s44
      %s61 = sphi 0, %s45
      %s65 = sphi 0, %s65
      %s67 = sphi 0, %s65
      %s68 = sphi 0, %s67
      %s82 = sphi 0, %s68
      %s88 = sphi 0, %s90
      %s91 = sphi 0, %s88
      %s92 = sphi 0, %s91
      %s108 = sphi 0, %s92
      %s114 = sphi 0, %s116
      %s117 = sphi 0, %s114
      %s118 = sphi 0, %s117
      %s134 = sphi 0, %s118
      %s140 = sphi 0, %s142
      %s143 = sphi 0, %s140
      %s144 = sphi 0, %s143
      %s160 = sphi 0, %s144
      %s166 = sphi 0, %s168
      %s169 = sphi 0, %s166
      %s170 = sphi 0, %s169
      %s186 = sphi 0, %s170
      %s192 = sphi 0, %s194
      %s195 = sphi 0, %s192
      %s196 = sphi 0, %s195
      %s212 = sphi 0, %s196
      %s218 = sphi 0, %s220
      %s221 = sphi 0, %s218
      %s222 = sphi 0, %s221
      %s238 = sphi 0, %s222
      %s244 = sphi 0, %s246
      %s247 = sphi 0, %s244
      %s248 = sphi 0, %s247
      %s264 = sphi 0, %s248
      %s270 = sphi 0, %s272
      %s273 = sphi 0, %s270
      %s274 = sphi 0, %s273
      %s290 = sphi 0, %s274
      %s296 = sphi 0, %s298
      %s299 = sphi 0, %s296
      %s300 = sphi 0, %s299
      %s316 = sphi 0, %s300
    $region4: #{tpu_custom_call.1} parent=1 // loop_header_branch
      %22 = sbr.rel (%p20) target = $region8
    $region5: #{tpu_custom_call.1} parent=1 // loop_body
      %s24 = ssub.s32 %s19, 1
      %s25 = ssub.s32 %s19, 2
      %s32 = sadd.s32 1, %s27
      %p33 = scmp.ge.s32.totalorder %s32, 2
      %s34 = scalar_select %p33, 0, %s32
      %s35 = sadd.s32 1, %s26
      %s36 = scalar_select %p33, %s35, %s26
      %p37 = scmp.ge.s32.totalorder %s36, 1
      %s38 = scalar_select %p37, 0, %s36
      %s39 = ssub.s32 %s26, %s38
      %p40 = scmp.eq.s32.totalorder %s39, 0
      %s42 = sadd.s32 %s41, 1
      %s43 = scalar_select %p40, %s41, %s42
      %p46 = pneg %p40
      %p47 = scmp.eq.s32.totalorder %s19, 1
      %p48 = por %p46, %p47
      %p49 = scmp.ne.s32.totalorder %s41, %s44
      %p50 = scmp.eq.s32.totalorder %s19, 0
      %p51 = por %p49, %p50
      %p52 = scmp.ne.s32.totalorder %s41, %s44
      %p53 = scmp.eq.s32.totalorder %s24, 1
      %p54 = por %p52, %p53
      %p55 = scmp.ne.s32.totalorder %s44, %s45
      %p56 = scmp.eq.s32.totalorder %s24, 0
      %p57 = por %p55, %p56
      %p58 = scmp.ne.s32.totalorder %s44, %s45
      %p59 = scmp.eq.s32.totalorder %s25, 1
      %p60 = por %p58, %p59
      %p62 = scmp.ne.s32.totalorder %s45, %s61
      %p63 = scmp.eq.s32.totalorder %s25, 0
      %p64 = por %p62, %p63
      %s66 = sadd.s32 %s65, 1
      %p69 = scmp.eq.s32.totalorder %s19, 1
      %p70 = scmp.ne.s32.totalorder %s65, %s67
      %p71 = scmp.eq.s32.totalorder %s19, 0
      %p72 = por %p70, %p71
      %p73 = scmp.ne.s32.totalorder %s65, %s67
      %p74 = scmp.eq.s32.totalorder %s24, 1
      %p75 = por %p73, %p74
      %p76 = scmp.ne.s32.totalorder %s67, %s68
      %p77 = scmp.eq.s32.totalorder %s24, 0
      %p78 = por %p76, %p77
      %p79 = scmp.ne.s32.totalorder %s67, %s68
      %p80 = scmp.eq.s32.totalorder %s25, 1
      %p81 = por %p79, %p80
      %p83 = scmp.ne.s32.totalorder %s68, %s82
      %p84 = scmp.eq.s32.totalorder %s25, 0
      %p85 = por %p83, %p84
      %s86 = ssub.s32 %s27, %s34
      %p87 = scmp.eq.s32.totalorder %s86, 0
      %s89 = sadd.s32 %s88, 1
      %s90 = scalar_select %p87, %s88, %s89
      %p93 = pneg %p87
      %p94 = scmp.eq.s32.totalorder %s19, 1
      %p95 = por %p93, %p94
      %p96 = scmp.ne.s32.totalorder %s88, %s91
      %p97 = scmp.eq.s32.totalorder %s19, 0
      %p98 = por %p96, %p97
      %p99 = scmp.ne.s32.totalorder %s88, %s91
      %p100 = scmp.eq.s32.totalorder %s24, 1
      %p101 = por %p99, %p100
      %p102 = scmp.ne.s32.totalorder %s91, %s92
      %p103 = scmp.eq.s32.totalorder %s24, 0
      %p104 = por %p102, %p103
      %p105 = scmp.ne.s32.totalorder %s91, %s92
      %p106 = scmp.eq.s32.totalorder %s25, 1
      %p107 = por %p105, %p106
      %p109 = scmp.ne.s32.totalorder %s92, %s108
      %p110 = scmp.eq.s32.totalorder %s25, 0
      %p111 = por %p109, %p110
      %s112 = ssub.s32 %s27, %s34
      %p113 = scmp.eq.s32.totalorder %s112, 0
      %s115 = sadd.s32 %s114, 1
      %s116 = scalar_select %p113, %s114, %s115
      %p119 = pneg %p113
      %p120 = scmp.eq.s32.totalorder %s19, 1
      %p121 = por %p119, %p120
      %p122 = scmp.ne.s32.totalorder %s114, %s117
      %p123 = scmp.eq.s32.totalorder %s19, 0
      %p124 = por %p122, %p123
      %p125 = scmp.ne.s32.totalorder %s114, %s117
      %p126 = scmp.eq.s32.totalorder %s24, 1
      %p127 = por %p125, %p126
      %p128 = scmp.ne.s32.totalorder %s117, %s118
      %p129 = scmp.eq.s32.totalorder %s24, 0
      %p130 = por %p128, %p129
      %p131 = scmp.ne.s32.totalorder %s117, %s118
      %p132 = scmp.eq.s32.totalorder %s25, 1
      %p133 = por %p131, %p132
      %p135 = scmp.ne.s32.totalorder %s118, %s134
      %p136 = scmp.eq.s32.totalorder %s25, 0
      %p137 = por %p135, %p136
      %s138 = ssub.s32 %s27, %s34
      %p139 = scmp.eq.s32.totalorder %s138, 0
      %s141 = sadd.s32 %s140, 1
      %s142 = scalar_select %p139, %s140, %s141
      %p145 = pneg %p139
      %p146 = scmp.eq.s32.totalorder %s19, 1
      %p147 = por %p145, %p146
      %p148 = scmp.ne.s32.totalorder %s140, %s143
      %p149 = scmp.eq.s32.totalorder %s19, 0
      %p150 = por %p148, %p149
      %p151 = scmp.ne.s32.totalorder %s140, %s143
      %p152 = scmp.eq.s32.totalorder %s24, 1
      %p153 = por %p151, %p152
      %p154 = scmp.ne.s32.totalorder %s143, %s144
      %p155 = scmp.eq.s32.totalorder %s24, 0
      %p156 = por %p154, %p155
      %p157 = scmp.ne.s32.totalorder %s143, %s144
      %p158 = scmp.eq.s32.totalorder %s25, 1
      %p159 = por %p157, %p158
      %p161 = scmp.ne.s32.totalorder %s144, %s160
      %p162 = scmp.eq.s32.totalorder %s25, 0
      %p163 = por %p161, %p162
      %s164 = ssub.s32 %s27, %s34
      %p165 = scmp.eq.s32.totalorder %s164, 0
      %s167 = sadd.s32 %s166, 1
      %s168 = scalar_select %p165, %s166, %s167
      %p171 = pneg %p165
      %p172 = scmp.eq.s32.totalorder %s19, 1
      %p173 = por %p171, %p172
      %p174 = scmp.ne.s32.totalorder %s166, %s169
      %p175 = scmp.eq.s32.totalorder %s19, 0
      %p176 = por %p174, %p175
      %p177 = scmp.ne.s32.totalorder %s166, %s169
      %p178 = scmp.eq.s32.totalorder %s24, 1
      %p179 = por %p177, %p178
      %p180 = scmp.ne.s32.totalorder %s169, %s170
      %p181 = scmp.eq.s32.totalorder %s24, 0
      %p182 = por %p180, %p181
      %p183 = scmp.ne.s32.totalorder %s169, %s170
      %p184 = scmp.eq.s32.totalorder %s25, 1
      %p185 = por %p183, %p184
      %p187 = scmp.ne.s32.totalorder %s170, %s186
      %p188 = scmp.eq.s32.totalorder %s25, 0
      %p189 = por %p187, %p188
      %s190 = ssub.s32 %s27, %s34
      %p191 = scmp.eq.s32.totalorder %s190, 0
      %s193 = sadd.s32 %s192, 1
      %s194 = scalar_select %p191, %s192, %s193
      %p197 = pneg %p191
      %p198 = scmp.eq.s32.totalorder %s19, 1
      %p199 = por %p197, %p198
      %p200 = scmp.ne.s32.totalorder %s192, %s195
      %p201 = scmp.eq.s32.totalorder %s19, 0
      %p202 = por %p200, %p201
      %p203 = scmp.ne.s32.totalorder %s192, %s195
      %p204 = scmp.eq.s32.totalorder %s24, 1
      %p205 = por %p203, %p204
      %p206 = scmp.ne.s32.totalorder %s195, %s196
      %p207 = scmp.eq.s32.totalorder %s24, 0
      %p208 = por %p206, %p207
      %p209 = scmp.ne.s32.totalorder %s195, %s196
      %p210 = scmp.eq.s32.totalorder %s25, 1
      %p211 = por %p209, %p210
      %p213 = scmp.ne.s32.totalorder %s196, %s212
      %p214 = scmp.eq.s32.totalorder %s25, 0
      %p215 = por %p213, %p214
      %s216 = ssub.s32 %s27, %s34
      %p217 = scmp.eq.s32.totalorder %s216, 0
      %s219 = sadd.s32 %s218, 1
      %s220 = scalar_select %p217, %s218, %s219
      %p223 = pneg %p217
      %p224 = scmp.eq.s32.totalorder %s19, 1
      %p225 = por %p223, %p224
      %p226 = scmp.ne.s32.totalorder %s218, %s221
      %p227 = scmp.eq.s32.totalorder %s19, 0
      %p228 = por %p226, %p227
      %p229 = scmp.ne.s32.totalorder %s218, %s221
      %p230 = scmp.eq.s32.totalorder %s24, 1
      %p231 = por %p229, %p230
      %p232 = scmp.ne.s32.totalorder %s221, %s222
      %p233 = scmp.eq.s32.totalorder %s24, 0
      %p234 = por %p232, %p233
      %p235 = scmp.ne.s32.totalorder %s221, %s222
      %p236 = scmp.eq.s32.totalorder %s25, 1
      %p237 = por %p235, %p236
      %p239 = scmp.ne.s32.totalorder %s222, %s238
      %p240 = scmp.eq.s32.totalorder %s25, 0
      %p241 = por %p239, %p240
      %s242 = ssub.s32 %s27, %s34
      %p243 = scmp.eq.s32.totalorder %s242, 0
      %s245 = sadd.s32 %s244, 1
      %s246 = scalar_select %p243, %s244, %s245
      %p249 = pneg %p243
      %p250 = scmp.eq.s32.totalorder %s19, 1
      %p251 = por %p249, %p250
      %p252 = scmp.ne.s32.totalorder %s244, %s247
      %p253 = scmp.eq.s32.totalorder %s19, 0
      %p254 = por %p252, %p253
      %p255 = scmp.ne.s32.totalorder %s244, %s247
      %p256 = scmp.eq.s32.totalorder %s24, 1
      %p257 = por %p255, %p256
      %p258 = scmp.ne.s32.totalorder %s247, %s248
      %p259 = scmp.eq.s32.totalorder %s24, 0
      %p260 = por %p258, %p259
      %p261 = scmp.ne.s32.totalorder %s247, %s248
      %p262 = scmp.eq.s32.totalorder %s25, 1
      %p263 = por %p261, %p262
      %p265 = scmp.ne.s32.totalorder %s248, %s264
      %p266 = scmp.eq.s32.totalorder %s25, 0
      %p267 = por %p265, %p266
      %s268 = ssub.s32 %s27, %s34
      %p269 = scmp.eq.s32.totalorder %s268, 0
      %s271 = sadd.s32 %s270, 1
      %s272 = scalar_select %p269, %s270, %s271
      %p275 = pneg %p269
      %p276 = scmp.eq.s32.totalorder %s19, 1
      %p277 = por %p275, %p276
      %p278 = scmp.ne.s32.totalorder %s270, %s273
      %p279 = scmp.eq.s32.totalorder %s19, 0
      %p280 = por %p278, %p279
      %p281 = scmp.ne.s32.totalorder %s270, %s273
      %p282 = scmp.eq.s32.totalorder %s24, 1
      %p283 = por %p281, %p282
      %p284 = scmp.ne.s32.totalorder %s273, %s274
      %p285 = scmp.eq.s32.totalorder %s24, 0
      %p286 = por %p284, %p285
      %p287 = scmp.ne.s32.totalorder %s273, %s274
      %p288 = scmp.eq.s32.totalorder %s25, 1
      %p289 = por %p287, %p288
      %p291 = scmp.ne.s32.totalorder %s274, %s290
      %p292 = scmp.eq.s32.totalorder %s25, 0
      %p293 = por %p291, %p292
      %s294 = ssub.s32 %s26, %s38
      %p295 = scmp.eq.s32.totalorder %s294, 0
      %s297 = sadd.s32 %s296, 1
      %s298 = scalar_select %p295, %s296, %s297
      %p301 = pneg %p295
      %p302 = scmp.eq.s32.totalorder %s19, 1
      %p303 = por %p301, %p302
      %p304 = scmp.ne.s32.totalorder %s296, %s299
      %p305 = scmp.eq.s32.totalorder %s19, 0
      %p306 = por %p304, %p305
      %p307 = scmp.ne.s32.totalorder %s296, %s299
      %p308 = scmp.eq.s32.totalorder %s24, 1
      %p309 = por %p307, %p308
      %p310 = scmp.ne.s32.totalorder %s299, %s300
      %p311 = scmp.eq.s32.totalorder %s24, 0
      %p312 = por %p310, %p311
      %p313 = scmp.ne.s32.totalorder %s299, %s300
      %p314 = scmp.eq.s32.totalorder %s25, 1
      %p315 = por %p313, %p314
      %p317 = scmp.ne.s32.totalorder %s300, %s316
      %p318 = scmp.eq.s32.totalorder %s25, 0
      %p319 = por %p317, %p318
      %p320 = scmp.le.s32.totalorder 1, %s19
      %p321 = scmp.lt.s32.totalorder %s19, 3
      %p322 = pnand %p320, %p321
      %p323 = pneg %p322
      // Predicated region
      $region9: #{tpu_custom_call.1} parent=5 // pred_check
        _
      $region10: #{tpu_custom_call.1} parent=5 // pred_check_branch
        %325 = sbr.rel (%p322) target = $region12
      $region11: #{tpu_custom_call.1} parent=5 // pred_region
        %s326 = ssub.s32 %s19, 1
        // Predicated region
        $region13: #{tpu_custom_call.1} parent=11 // pred_check
          %p327 = pneg %p57
        $region14: #{tpu_custom_call.1} parent=11 // pred_check_branch
          %329 = sbr.rel (%p327) target = $region16
        $region15: #{tpu_custom_call.1} parent=11 // pred_region
          %s330 = smul.u32 2, %s28
          %332 = vsyncadd [#allocation3], 0
          %s333 = smul.addr %s330, 2
          %s334 = smul.addr %s333, 8
          %s335 = scalar_lea.hbm %s0, %s334
          %s336 = sshll.u32 %s335, 4
          %s337 = int_to_ptr.hbm [resolvable:$true] %s336
          %s338 = sshll.u32 [#allocation2], 4
          %s339 = int_to_ptr.vmem [resolvable:$true] %s338
          %344 = dma.hbm_to_vmem [thread:$0]  %s337, 512, %s339, [#allocation3], 128, 128, 8
        $region16: #{tpu_custom_call.1} parent=11 // pred_fallthru
          _
        // Predicated region
        $region17: #{tpu_custom_call.1} parent=11 // pred_check
          %p345 = pneg %p78
        $region18: #{tpu_custom_call.1} parent=11 // pred_check_branch
          %347 = sbr.rel (%p345) target = $region20
        $region19: #{tpu_custom_call.1} parent=11 // pred_region
          %349 = vsyncadd [#allocation6], 0
          %s350 = sshll.u32 %s1, 4
          %s351 = int_to_ptr.hbm [resolvable:$true] %s350
          %s352 = sshll.u32 [#allocation5], 4
          %s353 = int_to_ptr.vmem [resolvable:$true] %s352
          %358 = dma.hbm_to_vmem [thread:$0]  %s351, 256, %s353, [#allocation6], 128, 128, 8
        $region20: #{tpu_custom_call.1} parent=11 // pred_fallthru
          _
      $region12: #{tpu_custom_call.1} parent=5 // pred_fallthru
        _
      %p359 = scmp.lt.s32.totalorder %s19, 2
      // Predicated region
      $region21: #{tpu_custom_call.1} parent=5 // pred_check
        %p360 = pneg %p359
      $region22: #{tpu_custom_call.1} parent=5 // pred_check_branch
        %362 = sbr.rel (%p360) target = $region24
      $region23: #{tpu_custom_call.1} parent=5 // pred_region
        // Predicated region
        $region25: #{tpu_custom_call.1} parent=23 // pred_check
          %p363 = pneg %p98
        $region26: #{tpu_custom_call.1} parent=23 // pred_check_branch
          %365 = sbr.rel (%p363) target = $region28
        $region27: #{tpu_custom_call.1} parent=23 // pred_region
          %s366 = sand.u32 %s19, 1
          %s367 = scalar_lea.sflag [#allocation3], %s366
          %s368 = sand.u32 %s88, 1
          %s369 = smul.addr %s368, 192
          %s370 = scalar_lea.vmem [#allocation7], %s369
          %372 = vsyncadd %s367, 0
          %s373 = smul.addr %s27, 48
          %s374 = smul.addr %s373, 4
          %s375 = scalar_lea.hbm %s2, %s374
          %s376 = sshll.u32 %s375, 4
          %s377 = int_to_ptr.hbm [resolvable:$true] %s376
          %s378 = sshll.u32 %s370, 4
          %s379 = int_to_ptr.vmem [resolvable:$true] %s378
          %384 = dma.hbm_to_vmem [thread:$0]  %s377, 3072, %s379, %s367, 192, 192, 12
        $region28: #{tpu_custom_call.1} parent=23 // pred_fallthru
          _
        // Predicated region
        $region29: #{tpu_custom_call.1} parent=23 // pred_check
          %p385 = pneg %p124
        $region30: #{tpu_custom_call.1} parent=23 // pred_check_branch
          %387 = sbr.rel (%p385) target = $region32
        $region31: #{tpu_custom_call.1} parent=23 // pred_region
          %s388 = sand.u32 %s19, 1
          %s389 = scalar_lea.sflag [#allocation3], %s388
          %s390 = sand.u32 %s114, 1
          %s391 = smul.addr %s390, 64
          %s392 = scalar_lea.vmem [#allocation8], %s391
          %394 = vsyncadd %s389, 0
          %s395 = smul.addr %s27, 16
          %s396 = smul.addr %s395, 4
          %s397 = scalar_lea.hbm %s3, %s396
          %s398 = sshll.u32 %s397, 4
          %s399 = int_to_ptr.hbm [resolvable:$true] %s398
          %s400 = sshll.u32 %s392, 4
          %s401 = int_to_ptr.vmem [resolvable:$true] %s400
          %406 = dma.hbm_to_vmem [thread:$0]  %s399, 1024, %s401, %s389, 64, 64, 4
        $region32: #{tpu_custom_call.1} parent=23 // pred_fallthru
          _
        // Predicated region
        $region33: #{tpu_custom_call.1} parent=23 // pred_check
          %p407 = pneg %p150
        $region34: #{tpu_custom_call.1} parent=23 // pred_check_branch
          %409 = sbr.rel (%p407) target = $region36
        $region35: #{tpu_custom_call.1} parent=23 // pred_region
          %p410 = scmp.lt.s32.totalorder %s27, 1
          %s411 = scalar_select %p410, %s27, 1
          %s412 = scalar_lea.vmem %s4, %s411
        $region36: #{tpu_custom_call.1} parent=23 // pred_fallthru
          _
        // Predicated region
        $region37: #{tpu_custom_call.1} parent=23 // pred_check
          %p413 = pneg %p176
        $region38: #{tpu_custom_call.1} parent=23 // pred_check_branch
          %415 = sbr.rel (%p413) target = $region40
        $region39: #{tpu_custom_call.1} parent=23 // pred_region
          %p416 = scmp.lt.s32.totalorder %s27, 1
          %s417 = scalar_select %p416, %s27, 1
          %s418 = scalar_lea.vmem %s5, %s417
        $region40: #{tpu_custom_call.1} parent=23 // pred_fallthru
          _
        // Predicated region
        $region41: #{tpu_custom_call.1} parent=23 // pred_check
          %p419 = pneg %p202
        $region42: #{tpu_custom_call.1} parent=23 // pred_check_branch
          %421 = sbr.rel (%p419) target = $region44
        $region43: #{tpu_custom_call.1} parent=23 // pred_region
          %s422 = sand.u32 %s19, 1
          %s423 = scalar_lea.sflag [#allocation3], %s422
          %s424 = sand.u32 %s192, 1
          %s425 = smul.addr %s424, 256
          %s426 = scalar_lea.vmem [#allocation9], %s425
          %428 = vsyncadd %s423, 0
          %s429 = smul.addr %s27, 64
          %s430 = smul.addr %s429, 4
          %s431 = scalar_lea.hbm %s6, %s430
          %s432 = sshll.u32 %s431, 4
          %s433 = int_to_ptr.hbm [resolvable:$true] %s432
          %s434 = sshll.u32 %s426, 4
          %s435 = int_to_ptr.vmem [resolvable:$true] %s434
          %440 = dma.hbm_to_vmem [thread:$0]  %s433, 4096, %s435, %s423, 256, 256, 16
        $region44: #{tpu_custom_call.1} parent=23 // pred_fallthru
          _
        // Predicated region
        $region45: #{tpu_custom_call.1} parent=23 // pred_check
          %p441 = pneg %p228
        $region46: #{tpu_custom_call.1} parent=23 // pred_check_branch
          %443 = sbr.rel (%p441) target = $region48
        $region47: #{tpu_custom_call.1} parent=23 // pred_region
          %s444 = sand.u32 %s19, 1
          %s445 = scalar_lea.sflag [#allocation3], %s444
          %s446 = sand.u32 %s218, 1
          %s447 = smul.addr %s446, 256
          %s448 = scalar_lea.vmem [#allocation10], %s447
          %450 = vsyncadd %s445, 0
          %s451 = smul.addr %s27, 64
          %s452 = smul.addr %s451, 4
          %s453 = scalar_lea.hbm %s7, %s452
          %s454 = sshll.u32 %s453, 4
          %s455 = int_to_ptr.hbm [resolvable:$true] %s454
          %s456 = sshll.u32 %s448, 4
          %s457 = int_to_ptr.vmem [resolvable:$true] %s456
          %462 = dma.hbm_to_vmem [thread:$0]  %s455, 4096, %s457, %s445, 64, 64, 4
        $region48: #{tpu_custom_call.1} parent=23 // pred_fallthru
          _
        // Predicated region
        $region49: #{tpu_custom_call.1} parent=23 // pred_check
          %p463 = pneg %p254
        $region50: #{tpu_custom_call.1} parent=23 // pred_check_branch
          %465 = sbr.rel (%p463) target = $region52
        $region51: #{tpu_custom_call.1} parent=23 // pred_region
          %p466 = scmp.lt.s32.totalorder %s27, 1
          %s467 = scalar_select %p466, %s27, 1
          %s468 = scalar_lea.vmem %s8, %s467
        $region52: #{tpu_custom_call.1} parent=23 // pred_fallthru
          _
        // Predicated region
        $region53: #{tpu_custom_call.1} parent=23 // pred_check
          %p469 = pneg %p280
        $region54: #{tpu_custom_call.1} parent=23 // pred_check_branch
          %471 = sbr.rel (%p469) target = $region56
        $region55: #{tpu_custom_call.1} parent=23 // pred_region
          %p472 = scmp.lt.s32.totalorder %s27, 1
          %s473 = scalar_select %p472, %s27, 1
          %s474 = scalar_lea.vmem %s9, %s473
        $region56: #{tpu_custom_call.1} parent=23 // pred_fallthru
          _
      $region24: #{tpu_custom_call.1} parent=5 // pred_fallthru
        _
      %p475 = scmp.le.s32.totalorder 1, %s19
      %p476 = scmp.lt.s32.totalorder %s19, 3
      %p477 = pnand %p475, %p476
      %p478 = pneg %p477
      // Predicated region
      $region57: #{tpu_custom_call.1} parent=5 // pred_check
        _
      $region58: #{tpu_custom_call.1} parent=5 // pred_check_branch
        %480 = sbr.rel (%p477) target = $region60
      $region59: #{tpu_custom_call.1} parent=5 // pred_region
        %s481 = ssub.s32 %s19, 1
        // Predicated region
        $region61: #{tpu_custom_call.1} parent=59 // pred_check
          %p482 = pneg %p57
        $region62: #{tpu_custom_call.1} parent=59 // pred_check_branch
          %484 = sbr.rel (%p482) target = $region64
        $region63: #{tpu_custom_call.1} parent=59 // pred_region
          %486 = dma.done [#allocation3], 512
        $region64: #{tpu_custom_call.1} parent=59 // pred_fallthru
          _
        // Predicated region
        $region65: #{tpu_custom_call.1} parent=59 // pred_check
          %p487 = pneg %p78
        $region66: #{tpu_custom_call.1} parent=59 // pred_check_branch
          %489 = sbr.rel (%p487) target = $region68
        $region67: #{tpu_custom_call.1} parent=59 // pred_region
          %491 = dma.done [#allocation6], 256
        $region68: #{tpu_custom_call.1} parent=59 // pred_fallthru
          _
        %s492 = sand.u32 %s24, 1
        %s493 = scalar_lea.sflag [#allocation3], %s492
        %s494 = sand.u32 %s91, 1
        %s495 = smul.addr %s494, 192
        %s496 = scalar_lea.vmem [#allocation7], %s495
        // Predicated region
        $region69: #{tpu_custom_call.1} parent=59 // pred_check
          %p497 = pneg %p104
        $region70: #{tpu_custom_call.1} parent=59 // pred_check_branch
          %499 = sbr.rel (%p497) target = $region72
        $region71: #{tpu_custom_call.1} parent=59 // pred_region
          %501 = dma.done %s493, 3072
        $region72: #{tpu_custom_call.1} parent=59 // pred_fallthru
          _
        %s502 = sand.u32 %s24, 1
        %s503 = scalar_lea.sflag [#allocation3], %s502
        %s504 = sand.u32 %s117, 1
        %s505 = smul.addr %s504, 64
        %s506 = scalar_lea.vmem [#allocation8], %s505
        // Predicated region
        $region73: #{tpu_custom_call.1} parent=59 // pred_check
          %p507 = pneg %p130
        $region74: #{tpu_custom_call.1} parent=59 // pred_check_branch
          %509 = sbr.rel (%p507) target = $region76
        $region75: #{tpu_custom_call.1} parent=59 // pred_region
          %511 = dma.done %s503, 1024
        $region76: #{tpu_custom_call.1} parent=59 // pred_fallthru
          _
        %s512 = sand.u32 %s24, 1
        %s513 = scalar_lea.sflag [#allocation3], %s512
        %s514 = sand.u32 %s195, 1
        %s515 = smul.addr %s514, 256
        %s516 = scalar_lea.vmem [#allocation9], %s515
        // Predicated region
        $region77: #{tpu_custom_call.1} parent=59 // pred_check
          %p517 = pneg %p208
        $region78: #{tpu_custom_call.1} parent=59 // pred_check_branch
          %519 = sbr.rel (%p517) target = $region80
        $region79: #{tpu_custom_call.1} parent=59 // pred_region
          %521 = dma.done %s513, 4096
        $region80: #{tpu_custom_call.1} parent=59 // pred_fallthru
          _
        %s522 = sand.u32 %s24, 1
        %s523 = scalar_lea.sflag [#allocation3], %s522
        %s524 = sand.u32 %s221, 1
        %s525 = smul.addr %s524, 256
        %s526 = scalar_lea.vmem [#allocation10], %s525
        // Predicated region
        $region81: #{tpu_custom_call.1} parent=59 // pred_check
          %p527 = pneg %p234
        $region82: #{tpu_custom_call.1} parent=59 // pred_check_branch
          %529 = sbr.rel (%p527) target = $region84
        $region83: #{tpu_custom_call.1} parent=59 // pred_region
          %531 = dma.done %s523, 4096
        $region84: #{tpu_custom_call.1} parent=59 // pred_fallthru
          _
        %p532 = pneg %p57
        %p533 = pneg %p54
        %p534 = pneg %p78
        %p535 = pneg %p75
        %s536 = sand.u32 %s24, 1
        %s537 = scalar_lea.sflag [#allocation3], %s536
        %s538 = sand.u32 %s91, 1
        %s539 = smul.addr %s538, 192
        %s540 = scalar_lea.vmem [#allocation7], %s539
        %p541 = pneg %p104
        %p542 = pneg %p101
        %s543 = sand.u32 %s24, 1
        %s544 = scalar_lea.sflag [#allocation3], %s543
        %s545 = sand.u32 %s117, 1
        %s546 = smul.addr %s545, 64
        %s547 = scalar_lea.vmem [#allocation8], %s546
        %p548 = pneg %p130
        %p549 = pneg %p127
        %p550 = scmp.lt.s32.totalorder %s29, 1
        %s551 = scalar_select %p550, %s29, 1
        %s552 = scalar_lea.vmem %s4, %s551
        %p553 = pneg %p156
        %p554 = pneg %p153
        %p555 = scmp.lt.s32.totalorder %s29, 1
        %s556 = scalar_select %p555, %s29, 1
        %s557 = scalar_lea.vmem %s5, %s556
        %p558 = pneg %p182
        %p559 = pneg %p179
        %s560 = sand.u32 %s24, 1
        %s561 = scalar_lea.sflag [#allocation3], %s560
        %s562 = sand.u32 %s195, 1
        %s563 = smul.addr %s562, 256
        %s564 = scalar_lea.vmem [#allocation9], %s563
        %p565 = pneg %p208
        %p566 = pneg %p205
        %s567 = sand.u32 %s24, 1
        %s568 = scalar_lea.sflag [#allocation3], %s567
        %s569 = sand.u32 %s221, 1
        %s570 = smul.addr %s569, 256
        %s571 = scalar_lea.vmem [#allocation10], %s570
        %p572 = pneg %p234
        %p573 = pneg %p231
        %p574 = scmp.lt.s32.totalorder %s29, 1
        %s575 = scalar_select %p574, %s29, 1
        %s576 = scalar_lea.vmem %s8, %s575
        %p577 = pneg %p260
        %p578 = pneg %p257
        %p579 = scmp.lt.s32.totalorder %s29, 1
        %s580 = scalar_select %p579, %s29, 1
        %s581 = scalar_lea.vmem %s9, %s580
        %p582 = pneg %p286
        %p583 = pneg %p283
        %p584 = pneg %p312
        %p585 = pneg %p309
        %s586 = smul.u32 2, %s28
        %p587 = scmp.lt.s32.totalorder %s29, 1
        %s588 = scalar_select %p587, %s29, 1
        %s589 = scalar_lea.vmem %s4, %s588
        %p590 = scmp.lt.s32.totalorder %s29, 1
        %s591 = scalar_select %p590, %s29, 1
        %s592 = scalar_lea.vmem %s5, %s591
        %p593 = scmp.lt.s32.totalorder %s29, 1
        %s594 = scalar_select %p593, %s29, 1
        %s595 = scalar_lea.vmem %s8, %s594
        %p596 = scmp.lt.s32.totalorder %s29, 1
        %s597 = scalar_select %p596, %s29, 1
        %s598 = scalar_lea.vmem %s9, %s597
        %s599 = smul.u32 2, %s28
        %p601 = scmp.eq.s32.totalorder %s29, 0
        // Predicated region
        $region85: #{tpu_custom_call.1} parent=59 // pred_check
          %p602 = pneg %p601
        $region86: #{tpu_custom_call.1} parent=59 // pred_check_branch
          %604 = sbr.rel (%p602) target = $region88
        $region87: #{tpu_custom_call.1} parent=59 // pred_region
          %v605 = vld [vmem:[#allocation2] sm:$0xff]
          %v606 = vld [vmem:[#allocation2 + $0x8] sm:$0xff]
          %v607 = vld [vmem:[#allocation2 + $0x10] sm:$0xff]
          %v608 = vld [vmem:[#allocation2 + $0x18] sm:$0xff]
          %609 = vst [vmem:[#allocation11] sm:$0xff] %v605
          %610 = vst [vmem:[#allocation11 + $0x8] sm:$0xff] %v606
          %611 = vst [vmem:[#allocation11 + $0x10] sm:$0xff] %v607
          %612 = vst [vmem:[#allocation11 + $0x18] sm:$0xff] %v608
        $region88: #{tpu_custom_call.1} parent=59 // pred_fallthru
          _
        %v613 = vld [vmem:[#allocation11] sm:$0xff]
        %v614 = vld [vmem:[#allocation11 + $0x8] sm:$0xff]
        %v615 = vld [vmem:[#allocation11 + $0x10] sm:$0xff]
        %v616 = vld [vmem:[#allocation11 + $0x18] sm:$0xff]
        %v617 = vpack.c.bf16 %v614, %v613
        %v618 = vpack.c.bf16 %v616, %v615
        %v619 = vld [vmem:[%s496] sm:$0xff]
        %v620 = vld [vmem:[%s496 + $0x8] sm:$0xf]
        %v621 = vld [vmem:[%s496 + $0xc] sm:$0xff]
        %v622 = vld [vmem:[%s496 + $0x14] sm:$0xf]
        %v623 = vld [vmem:[%s496 + $0x18] sm:$0xff]
        %v624 = vld [vmem:[%s496 + $0x20] sm:$0xf]
        %v625 = vld [vmem:[%s496 + $0x24] sm:$0xff]
        %v626 = vld [vmem:[%s496 + $0x2c] sm:$0xf]
        %v627 = vld [vmem:[%s496 + $0x30] sm:$0xff]
        %v628 = vld [vmem:[%s496 + $0x38] sm:$0xf]
        %v629 = vld [vmem:[%s496 + $0x3c] sm:$0xff]
        %v630 = vld [vmem:[%s496 + $0x44] sm:$0xf]
        %v631 = vld [vmem:[%s496 + $0x48] sm:$0xff]
        %v632 = vld [vmem:[%s496 + $0x50] sm:$0xf]
        %v633 = vld [vmem:[%s496 + $0x54] sm:$0xff]
        %v634 = vld [vmem:[%s496 + $0x5c] sm:$0xf]
        %v635 = vld [vmem:[%s496 + $0x60] sm:$0xff]
        %v636 = vld [vmem:[%s496 + $0x68] sm:$0xf]
        %v637 = vld [vmem:[%s496 + $0x6c] sm:$0xff]
        %v638 = vld [vmem:[%s496 + $0x74] sm:$0xf]
        %v639 = vld [vmem:[%s496 + $0x78] sm:$0xff]
        %v640 = vld [vmem:[%s496 + $0x80] sm:$0xf]
        %v641 = vld [vmem:[%s496 + $0x84] sm:$0xff]
        %v642 = vld [vmem:[%s496 + $0x8c] sm:$0xf]
        %v643 = vld [vmem:[%s496 + $0x90] sm:$0xff]
        %v644 = vld [vmem:[%s496 + $0x98] sm:$0xf]
        %v645 = vld [vmem:[%s496 + $0x9c] sm:$0xff]
        %v646 = vld [vmem:[%s496 + $0xa4] sm:$0xf]
        %v647 = vld [vmem:[%s496 + $0xa8] sm:$0xff]
        %v648 = vld [vmem:[%s496 + $0xb0] sm:$0xf]
        %v649 = vld [vmem:[%s496 + $0xb4] sm:$0xff]
        %v650 = vld [vmem:[%s496 + $0xbc] sm:$0xf]
        %v683 = vunpack.c.l.b16 %v619
        %v684 = vunpack.c.h.b16 %v619
        %v685 = vunpack.c.l.b16 %v620
        %v686 = vunpack.c.l.b16 %v621
        %v687 = vunpack.c.h.b16 %v621
        %v688 = vunpack.c.l.b16 %v622
        %v689 = vunpack.c.l.b16 %v623
        %v690 = vunpack.c.h.b16 %v623
        %v691 = vunpack.c.l.b16 %v624
        %v692 = vunpack.c.l.b16 %v625
        %v693 = vunpack.c.h.b16 %v625
        %v694 = vunpack.c.l.b16 %v626
        %v695 = vunpack.c.l.b16 %v627
        %v696 = vunpack.c.h.b16 %v627
        %v697 = vunpack.c.l.b16 %v628
        %v698 = vunpack.c.l.b16 %v629
        %v699 = vunpack.c.h.b16 %v629
        %v700 = vunpack.c.l.b16 %v630
        %v701 = vunpack.c.l.b16 %v631
        %v702 = vunpack.c.h.b16 %v631
        %v703 = vunpack.c.l.b16 %v632
        %v704 = vunpack.c.l.b16 %v633
        %v705 = vunpack.c.h.b16 %v633
        %v706 = vunpack.c.l.b16 %v634
        %v707 = vunpack.c.l.b16 %v635
        %v708 = vunpack.c.h.b16 %v635
        %v709 = vunpack.c.l.b16 %v636
        %v710 = vunpack.c.l.b16 %v637
        %v711 = vunpack.c.h.b16 %v637
        %v712 = vunpack.c.l.b16 %v638
        %v713 = vunpack.c.l.b16 %v639
        %v714 = vunpack.c.h.b16 %v639
        %v715 = vunpack.c.l.b16 %v640
        %v716 = vunpack.c.l.b16 %v641
        %v717 = vunpack.c.h.b16 %v641
        %v718 = vunpack.c.l.b16 %v642
        %v719 = vunpack.c.l.b16 %v643
        %v720 = vunpack.c.h.b16 %v643
        %v721 = vunpack.c.l.b16 %v644
        %v722 = vunpack.c.l.b16 %v645
        %v723 = vunpack.c.h.b16 %v645
        %v724 = vunpack.c.l.b16 %v646
        %v725 = vunpack.c.l.b16 %v647
        %v726 = vunpack.c.h.b16 %v647
        %v727 = vunpack.c.l.b16 %v648
        %v728 = vunpack.c.l.b16 %v649
        %v729 = vunpack.c.h.b16 %v649
        %v730 = vunpack.c.l.b16 %v650
        %v731 = vpack.c.b16 %v686, %v683
        %v732 = vpack.c.b16 %v687, %v684
        %v733 = vpack.c.b16 %v688, %v685
        %v734 = vpack.c.b16 %v692, %v689
        %v735 = vpack.c.b16 %v693, %v690
        %v736 = vpack.c.b16 %v694, %v691
        %v737 = vpack.c.b16 %v698, %v695
        %v738 = vpack.c.b16 %v699, %v696
        %v739 = vpack.c.b16 %v700, %v697
        %v740 = vpack.c.b16 %v704, %v701
        %v741 = vpack.c.b16 %v705, %v702
        %v742 = vpack.c.b16 %v706, %v703
        %v743 = vpack.c.b16 %v710, %v707
        %v744 = vpack.c.b16 %v711, %v708
        %v745 = vpack.c.b16 %v712, %v709
        %v746 = vpack.c.b16 %v716, %v713
        %v747 = vpack.c.b16 %v717, %v714
        %v748 = vpack.c.b16 %v718, %v715
        %v749 = vpack.c.b16 %v722, %v719
        %v750 = vpack.c.b16 %v723, %v720
        %v751 = vpack.c.b16 %v724, %v721
        %v752 = vpack.c.b16 %v728, %v725
        %v753 = vpack.c.b16 %v729, %v726
        %v754 = vpack.c.b16 %v730, %v727
        %779 = vmatpush.bf16.msra.mxu0 %v752
        %780 = vmatpush.bf16.msra.mxu0 %v749
        %781 = vmatpush.bf16.msra.mxu0 %v746
        %782 = vmatpush.bf16.msra.mxu0 %v743
        %783 = vmatpush.bf16.msra.mxu0 %v740
        %784 = vmatpush.bf16.msra.mxu0 %v737
        %785 = vmatpush.bf16.msra.mxu0 %v734
        %786 = vmatpush.bf16.msra.mxu0 %v731
        %787 = vmatmul.bf16.gmra.mxu0 %v617
        %v788 = vpop.f32.mrf.mxu0
        %v789 = vadd.f32 0.0, %v788
        %v790 = vpop.f32.mrf.mxu0
        %v791 = vadd.f32 0.0, %v790
        %792 = vmatmul.bf16.gmra.mxu0 %v618
        %v793 = vpop.f32.mrf.mxu0
        %v794 = vadd.f32 0.0, %v793
        %v795 = vpop.f32.mrf.mxu0
        %v796 = vadd.f32 0.0, %v795
        %797 = vdwg.mxu0
        %798 = vmatpush.bf16.msra.mxu0 %v753
        %799 = vmatpush.bf16.msra.mxu0 %v750
        %800 = vmatpush.bf16.msra.mxu0 %v747
        %801 = vmatpush.bf16.msra.mxu0 %v744
        %802 = vmatpush.bf16.msra.mxu0 %v741
        %803 = vmatpush.bf16.msra.mxu0 %v738
        %804 = vmatpush.bf16.msra.mxu0 %v735
        %805 = vmatpush.bf16.msra.mxu0 %v732
        %806 = vmatmul.bf16.gmra.mxu0 %v617
        %v807 = vpop.f32.mrf.mxu0
        %v808 = vadd.f32 0.0, %v807
        %v809 = vpop.f32.mrf.mxu0
        %v810 = vadd.f32 0.0, %v809
        %811 = vmatmul.bf16.gmra.mxu0 %v618
        %v812 = vpop.f32.mrf.mxu0
        %v813 = vadd.f32 0.0, %v812
        %v814 = vpop.f32.mrf.mxu0
        %v815 = vadd.f32 0.0, %v814
        %816 = vdwg.mxu0
        %817 = vmatpush.bf16.msra.mxu0 %v754
        %818 = vmatpush.bf16.msra.mxu0 %v751
        %819 = vmatpush.bf16.msra.mxu0 %v748
        %820 = vmatpush.bf16.msra.mxu0 %v745
        %821 = vmatpush.bf16.msra.mxu0 %v742
        %822 = vmatpush.bf16.msra.mxu0 %v739
        %823 = vmatpush.bf16.msra.mxu0 %v736
        %824 = vmatpush.bf16.msra.mxu0 %v733
        %825 = vmatmul.bf16.gmra.mxu0 %v617
        %v826 = vpop.f32.mrf.mxu0
        %v827 = vadd.f32 0.0, %v826
        %v828 = vpop.f32.mrf.mxu0
        %v829 = vadd.f32 0.0, %v828
        %830 = vmatmul.bf16.gmra.mxu0 %v618
        %v831 = vpop.f32.mrf.mxu0
        %v832 = vadd.f32 0.0, %v831
        %v833 = vpop.f32.mrf.mxu0
        %v834 = vadd.f32 0.0, %v833
        %835 = vdwg.mxu0
        %v836 = vld [vmem:[#allocation5] sm:$0xff]
        %v837 = vld [vmem:[#allocation5 + $0x8] sm:$0xff]
        %v838 = vpack.c.bf16 %v789, %v789
        %v839 = vpack.c.bf16 %v791, %v791
        %v840 = vpack.c.bf16 %v794, %v794
        %v841 = vpack.c.bf16 %v796, %v796
        %846 = vrot.lane.b32.xlu0 %v838, 96
        %v847 = vpop.permute.xlu0 %846
        %848 = vrot.lane.b32.xlu0 %v839, 96
        %v849 = vpop.permute.xlu0 %848
        %850 = vrot.lane.b32.xlu0 %v840, 96
        %v851 = vpop.permute.xlu0 %850
        %852 = vrot.lane.b32.xlu0 %v841, 96
        %v853 = vpop.permute.xlu0 %852
        %854 = vrot.lane.b32.xlu0 %v838, 64
        %v855 = vpop.permute.xlu0 %854
        %856 = vrot.lane.b32.xlu0 %v839, 64
        %v857 = vpop.permute.xlu0 %856
        %858 = vrot.lane.b32.xlu0 %v840, 64
        %v859 = vpop.permute.xlu0 %858
        %860 = vrot.lane.b32.xlu0 %v841, 64
        %v861 = vpop.permute.xlu0 %860
        %862 = vrot.lane.b32.xlu0 %v838, 32
        %v863 = vpop.permute.xlu0 %862
        %864 = vrot.lane.b32.xlu0 %v839, 32
        %v865 = vpop.permute.xlu0 %864
        %866 = vrot.lane.b32.xlu0 %v840, 32
        %v867 = vpop.permute.xlu0 %866
        %868 = vrot.lane.b32.xlu0 %v841, 32
        %v869 = vpop.permute.xlu0 %868
        %v872 = vpack.i.b16 %v847, %v838
        %v873 = vshrl.u32 %v838, 16
        %v874 = vshrl.u32 %v847, 16
        %v875 = vpack.i.b16 %v874, %v873
        %v878 = vpack.i.b16 %v863, %v855
        %v879 = vshrl.u32 %v855, 16
        %v880 = vshrl.u32 %v863, 16
        %v881 = vpack.i.b16 %v880, %v879
        %v884 = vpack.i.b16 %v849, %v839
        %v885 = vshrl.u32 %v839, 16
        %v886 = vshrl.u32 %v849, 16
        %v887 = vpack.i.b16 %v886, %v885
        %v890 = vpack.i.b16 %v865, %v857
        %v891 = vshrl.u32 %v857, 16
        %v892 = vshrl.u32 %v865, 16
        %v893 = vpack.i.b16 %v892, %v891
        %v896 = vpack.i.b16 %v851, %v840
        %v897 = vshrl.u32 %v840, 16
        %v898 = vshrl.u32 %v851, 16
        %v899 = vpack.i.b16 %v898, %v897
        %v902 = vpack.i.b16 %v867, %v859
        %v903 = vshrl.u32 %v859, 16
        %v904 = vshrl.u32 %v867, 16
        %v905 = vpack.i.b16 %v904, %v903
        %v908 = vpack.i.b16 %v853, %v841
        %v909 = vshrl.u32 %v841, 16
        %v910 = vshrl.u32 %v853, 16
        %v911 = vpack.i.b16 %v910, %v909
        %v914 = vpack.i.b16 %v869, %v861
        %v915 = vshrl.u32 %v861, 16
        %v916 = vshrl.u32 %v869, 16
        %v917 = vpack.i.b16 %v916, %v915
        %v920 = vunpack.c.l.s4 1983009808
        %v921 = vunpack.c.0.s8 %v920
        %v922 = vperm.slane %v872, %v921
        %v925 = vunpack.c.l.s4 1983009808
        %v926 = vunpack.c.0.s8 %v925
        %v927 = vperm.slane %v878, %v926
        %v928 = vrot.slane %v927, 4
        %vm929 = vcmask 1047556
        %v930 = vsel %vm929, %v928, %v922
        %v931 = vrot.slane %v922, 4
        %v932 = vsel %vm929, %v927, %v931
        %v934 = vunpack.c.l.s4 1934713408
        %v935 = vunpack.c.0.s8 %v934
        %v936 = vperm.slane %v930, %v935
        %v938 = vunpack.c.l.s4 1934713408
        %v939 = vunpack.c.0.s8 %v938
        %v940 = vperm.slane %v932, %v939
        %v941 = vrot.slane %v936, 4
        %v942 = vsel %vm929, 0, %v941
        %v943 = vrot.slane %v940, 4
        %v944 = vsel %vm929, 0, %v943
        %v947 = vunpack.c.l.s4 1983009808
        %v948 = vunpack.c.0.s8 %v947
        %v949 = vperm.slane %v875, %v948
        %v952 = vunpack.c.l.s4 1983009808
        %v953 = vunpack.c.0.s8 %v952
        %v954 = vperm.slane %v881, %v953
        %v955 = vrot.slane %v954, 4
        %v956 = vsel %vm929, %v955, %v949
        %v957 = vrot.slane %v949, 4
        %v958 = vsel %vm929, %v954, %v957
        %v960 = vunpack.c.l.s4 1934713408
        %v961 = vunpack.c.0.s8 %v960
        %v962 = vperm.slane %v956, %v961
        %v964 = vunpack.c.l.s4 1934713408
        %v965 = vunpack.c.0.s8 %v964
        %v966 = vperm.slane %v958, %v965
        %v967 = vrot.slane %v962, 4
        %v968 = vsel %vm929, 0, %v967
        %v969 = vrot.slane %v966, 4
        %v970 = vsel %vm929, 0, %v969
        %v973 = vunpack.c.l.s4 1983009808
        %v974 = vunpack.c.0.s8 %v973
        %v975 = vperm.slane %v884, %v974
        %v978 = vunpack.c.l.s4 1983009808
        %v979 = vunpack.c.0.s8 %v978
        %v980 = vperm.slane %v890, %v979
        %v981 = vrot.slane %v980, 4
        %v982 = vsel %vm929, %v981, %v975
        %v983 = vrot.slane %v975, 4
        %v984 = vsel %vm929, %v980, %v983
        %v986 = vunpack.c.l.s4 1934713408
        %v987 = vunpack.c.0.s8 %v986
        %v988 = vperm.slane %v982, %v987
        %v990 = vunpack.c.l.s4 1934713408
        %v991 = vunpack.c.0.s8 %v990
        %v992 = vperm.slane %v984, %v991
        %v993 = vrot.slane %v988, 4
        %v994 = vsel %vm929, 0, %v993
        %v995 = vrot.slane %v992, 4
        %v996 = vsel %vm929, 0, %v995
        %v999 = vunpack.c.l.s4 1983009808
        %v1000 = vunpack.c.0.s8 %v999
        %v1001 = vperm.slane %v887, %v1000
        %v1004 = vunpack.c.l.s4 1983009808
        %v1005 = vunpack.c.0.s8 %v1004
        %v1006 = vperm.slane %v893, %v1005
        %v1007 = vrot.slane %v1006, 4
        %v1008 = vsel %vm929, %v1007, %v1001
        %v1009 = vrot.slane %v1001, 4
        %v1010 = vsel %vm929, %v1006, %v1009
        %v1012 = vunpack.c.l.s4 1934713408
        %v1013 = vunpack.c.0.s8 %v1012
        %v1014 = vperm.slane %v1008, %v1013
        %v1016 = vunpack.c.l.s4 1934713408
        %v1017 = vunpack.c.0.s8 %v1016
        %v1018 = vperm.slane %v1010, %v1017
        %v1019 = vrot.slane %v1014, 4
        %v1020 = vsel %vm929, 0, %v1019
        %v1021 = vrot.slane %v1018, 4
        %v1022 = vsel %vm929, 0, %v1021
        %v1025 = vunpack.c.l.s4 1983009808
        %v1026 = vunpack.c.0.s8 %v1025
        %v1027 = vperm.slane %v896, %v1026
        %v1030 = vunpack.c.l.s4 1983009808
        %v1031 = vunpack.c.0.s8 %v1030
        %v1032 = vperm.slane %v902, %v1031
        %v1033 = vrot.slane %v1032, 4
        %v1034 = vsel %vm929, %v1033, %v1027
        %v1035 = vrot.slane %v1027, 4
        %v1036 = vsel %vm929, %v1032, %v1035
        %v1038 = vunpack.c.l.s4 1934713408
        %v1039 = vunpack.c.0.s8 %v1038
        %v1040 = vperm.slane %v1034, %v1039
        %v1042 = vunpack.c.l.s4 1934713408
        %v1043 = vunpack.c.0.s8 %v1042
        %v1044 = vperm.slane %v1036, %v1043
        %v1045 = vrot.slane %v1040, 4
        %v1046 = vsel %vm929, 0, %v1045
        %v1047 = vrot.slane %v1044, 4
        %v1048 = vsel %vm929, 0, %v1047
        %v1051 = vunpack.c.l.s4 1983009808
        %v1052 = vunpack.c.0.s8 %v1051
        %v1053 = vperm.slane %v899, %v1052
        %v1056 = vunpack.c.l.s4 1983009808
        %v1057 = vunpack.c.0.s8 %v1056
        %v1058 = vperm.slane %v905, %v1057
        %v1059 = vrot.slane %v1058, 4
        %v1060 = vsel %vm929, %v1059, %v1053
        %v1061 = vrot.slane %v1053, 4
        %v1062 = vsel %vm929, %v1058, %v1061
        %v1064 = vunpack.c.l.s4 1934713408
        %v1065 = vunpack.c.0.s8 %v1064
        %v1066 = vperm.slane %v1060, %v1065
        %v1068 = vunpack.c.l.s4 1934713408
        %v1069 = vunpack.c.0.s8 %v1068
        %v1070 = vperm.slane %v1062, %v1069
        %v1071 = vrot.slane %v1066, 4
        %v1072 = vsel %vm929, 0, %v1071
        %v1073 = vrot.slane %v1070, 4
        %v1074 = vsel %vm929, 0, %v1073
        %v1077 = vunpack.c.l.s4 1983009808
        %v1078 = vunpack.c.0.s8 %v1077
        %v1079 = vperm.slane %v908, %v1078
        %v1082 = vunpack.c.l.s4 1983009808
        %v1083 = vunpack.c.0.s8 %v1082
        %v1084 = vperm.slane %v914, %v1083
        %v1085 = vrot.slane %v1084, 4
        %v1086 = vsel %vm929, %v1085, %v1079
        %v1087 = vrot.slane %v1079, 4
        %v1088 = vsel %vm929, %v1084, %v1087
        %v1090 = vunpack.c.l.s4 1934713408
        %v1091 = vunpack.c.0.s8 %v1090
        %v1092 = vperm.slane %v1086, %v1091
        %v1094 = vunpack.c.l.s4 1934713408
        %v1095 = vunpack.c.0.s8 %v1094
        %v1096 = vperm.slane %v1088, %v1095
        %v1097 = vrot.slane %v1092, 4
        %v1098 = vsel %vm929, 0, %v1097
        %v1099 = vrot.slane %v1096, 4
        %v1100 = vsel %vm929, 0, %v1099
        %v1103 = vunpack.c.l.s4 1983009808
        %v1104 = vunpack.c.0.s8 %v1103
        %v1105 = vperm.slane %v911, %v1104
        %v1108 = vunpack.c.l.s4 1983009808
        %v1109 = vunpack.c.0.s8 %v1108
        %v1110 = vperm.slane %v917, %v1109
        %v1111 = vrot.slane %v1110, 4
        %v1112 = vsel %vm929, %v1111, %v1105
        %v1113 = vrot.slane %v1105, 4
        %v1114 = vsel %vm929, %v1110, %v1113
        %v1116 = vunpack.c.l.s4 1934713408
        %v1117 = vunpack.c.0.s8 %v1116
        %v1118 = vperm.slane %v1112, %v1117
        %v1120 = vunpack.c.l.s4 1934713408
        %v1121 = vunpack.c.0.s8 %v1120
        %v1122 = vperm.slane %v1114, %v1121
        %v1123 = vrot.slane %v1118, 4
        %v1124 = vsel %vm929, 0, %v1123
        %v1125 = vrot.slane %v1122, 4
        %v1126 = vsel %vm929, 0, %v1125
        %v1127 = vsel %vm929, %v943, %v936
        %v1129 = vunpack.c.l.s4 1983009808
        %v1130 = vunpack.c.0.s8 %v1129
        %v1131 = vperm.slane %v1127, %v1130
        %v1132 = vrot.slane %v944, 4
        %v1133 = vsel %vm929, %v1132, %v942
        %v1135 = vunpack.c.l.s4 1983009808
        %v1136 = vunpack.c.0.s8 %v1135
        %v1137 = vperm.slane %v1133, %v1136
        %v1138 = vrot.slane %v1137, 4
        %v1139 = vsel %vm929, %v1138, %v1131
        %v1141 = vunpack.c.l.s4 1934713408
        %v1142 = vunpack.c.0.s8 %v1141
        %v1143 = vperm.slane %v1139, %v1142
        %v1144 = vrot.slane %v1143, 4
        %v1145 = vsel %vm929, 0, %v1144
        %v1146 = vsel %vm929, %v969, %v962
        %v1148 = vunpack.c.l.s4 1983009808
        %v1149 = vunpack.c.0.s8 %v1148
        %v1150 = vperm.slane %v1146, %v1149
        %v1151 = vrot.slane %v970, 4
        %v1152 = vsel %vm929, %v1151, %v968
        %v1154 = vunpack.c.l.s4 1983009808
        %v1155 = vunpack.c.0.s8 %v1154
        %v1156 = vperm.slane %v1152, %v1155
        %v1157 = vrot.slane %v1156, 4
        %v1158 = vsel %vm929, %v1157, %v1150
        %v1160 = vunpack.c.l.s4 1934713408
        %v1161 = vunpack.c.0.s8 %v1160
        %v1162 = vperm.slane %v1158, %v1161
        %v1163 = vrot.slane %v1162, 4
        %v1164 = vsel %vm929, 0, %v1163
        %v1165 = vsel %vm929, %v995, %v988
        %v1167 = vunpack.c.l.s4 1983009808
        %v1168 = vunpack.c.0.s8 %v1167
        %v1169 = vperm.slane %v1165, %v1168
        %v1170 = vrot.slane %v996, 4
        %v1171 = vsel %vm929, %v1170, %v994
        %v1173 = vunpack.c.l.s4 1983009808
        %v1174 = vunpack.c.0.s8 %v1173
        %v1175 = vperm.slane %v1171, %v1174
        %v1176 = vrot.slane %v1175, 4
        %v1177 = vsel %vm929, %v1176, %v1169
        %v1179 = vunpack.c.l.s4 1934713408
        %v1180 = vunpack.c.0.s8 %v1179
        %v1181 = vperm.slane %v1177, %v1180
        %v1182 = vrot.slane %v1181, 4
        %v1183 = vsel %vm929, 0, %v1182
        %v1184 = vsel %vm929, %v1021, %v1014
        %v1186 = vunpack.c.l.s4 1983009808
        %v1187 = vunpack.c.0.s8 %v1186
        %v1188 = vperm.slane %v1184, %v1187
        %v1189 = vrot.slane %v1022, 4
        %v1190 = vsel %vm929, %v1189, %v1020
        %v1192 = vunpack.c.l.s4 1983009808
        %v1193 = vunpack.c.0.s8 %v1192
        %v1194 = vperm.slane %v1190, %v1193
        %v1195 = vrot.slane %v1194, 4
        %v1196 = vsel %vm929, %v1195, %v1188
        %v1198 = vunpack.c.l.s4 1934713408
        %v1199 = vunpack.c.0.s8 %v1198
        %v1200 = vperm.slane %v1196, %v1199
        %v1201 = vrot.slane %v1200, 4
        %v1202 = vsel %vm929, 0, %v1201
        %v1203 = vsel %vm929, %v1047, %v1040
        %v1205 = vunpack.c.l.s4 1983009808
        %v1206 = vunpack.c.0.s8 %v1205
        %v1207 = vperm.slane %v1203, %v1206
        %v1208 = vrot.slane %v1048, 4
        %v1209 = vsel %vm929, %v1208, %v1046
        %v1211 = vunpack.c.l.s4 1983009808
        %v1212 = vunpack.c.0.s8 %v1211
        %v1213 = vperm.slane %v1209, %v1212
        %v1214 = vrot.slane %v1213, 4
        %v1215 = vsel %vm929, %v1214, %v1207
        %v1217 = vunpack.c.l.s4 1934713408
        %v1218 = vunpack.c.0.s8 %v1217
        %v1219 = vperm.slane %v1215, %v1218
        %v1220 = vrot.slane %v1219, 4
        %v1221 = vsel %vm929, 0, %v1220
        %v1222 = vsel %vm929, %v1073, %v1066
        %v1224 = vunpack.c.l.s4 1983009808
        %v1225 = vunpack.c.0.s8 %v1224
        %v1226 = vperm.slane %v1222, %v1225
        %v1227 = vrot.slane %v1074, 4
        %v1228 = vsel %vm929, %v1227, %v1072
        %v1230 = vunpack.c.l.s4 1983009808
        %v1231 = vunpack.c.0.s8 %v1230
        %v1232 = vperm.slane %v1228, %v1231
        %v1233 = vrot.slane %v1232, 4
        %v1234 = vsel %vm929, %v1233, %v1226
        %v1236 = vunpack.c.l.s4 1934713408
        %v1237 = vunpack.c.0.s8 %v1236
        %v1238 = vperm.slane %v1234, %v1237
        %v1239 = vrot.slane %v1238, 4
        %v1240 = vsel %vm929, 0, %v1239
        %v1241 = vsel %vm929, %v1099, %v1092
        %v1243 = vunpack.c.l.s4 1983009808
        %v1244 = vunpack.c.0.s8 %v1243
        %v1245 = vperm.slane %v1241, %v1244
        %v1246 = vrot.slane %v1100, 4
        %v1247 = vsel %vm929, %v1246, %v1098
        %v1249 = vunpack.c.l.s4 1983009808
        %v1250 = vunpack.c.0.s8 %v1249
        %v1251 = vperm.slane %v1247, %v1250
        %v1252 = vrot.slane %v1251, 4
        %v1253 = vsel %vm929, %v1252, %v1245
        %v1255 = vunpack.c.l.s4 1934713408
        %v1256 = vunpack.c.0.s8 %v1255
        %v1257 = vperm.slane %v1253, %v1256
        %v1258 = vrot.slane %v1257, 4
        %v1259 = vsel %vm929, 0, %v1258
        %v1260 = vsel %vm929, %v1125, %v1118
        %v1262 = vunpack.c.l.s4 1983009808
        %v1263 = vunpack.c.0.s8 %v1262
        %v1264 = vperm.slane %v1260, %v1263
        %v1265 = vrot.slane %v1126, 4
        %v1266 = vsel %vm929, %v1265, %v1124
        %v1268 = vunpack.c.l.s4 1983009808
        %v1269 = vunpack.c.0.s8 %v1268
        %v1270 = vperm.slane %v1266, %v1269
        %v1271 = vrot.slane %v1270, 4
        %v1272 = vsel %vm929, %v1271, %v1264
        %v1274 = vunpack.c.l.s4 1934713408
        %v1275 = vunpack.c.0.s8 %v1274
        %v1276 = vperm.slane %v1272, %v1275
        %v1277 = vrot.slane %v1276, 4
        %v1278 = vsel %vm929, 0, %v1277
        %v1281 = vpack.i.b16 %v1162, %v1143
        %v1282 = vshrl.u32 %v1143, 16
        %v1283 = vshrl.u32 %v1162, 16
        %v1284 = vpack.i.b16 %v1283, %v1282
        %v1287 = vpack.i.b16 %v1164, %v1145
        %v1288 = vshrl.u32 %v1145, 16
        %v1289 = vshrl.u32 %v1164, 16
        %v1290 = vpack.i.b16 %v1289, %v1288
        %v1293 = vpack.i.b16 %v1200, %v1181
        %v1294 = vshrl.u32 %v1181, 16
        %v1295 = vshrl.u32 %v1200, 16
        %v1296 = vpack.i.b16 %v1295, %v1294
        %v1299 = vpack.i.b16 %v1202, %v1183
        %v1300 = vshrl.u32 %v1183, 16
        %v1301 = vshrl.u32 %v1202, 16
        %v1302 = vpack.i.b16 %v1301, %v1300
        %v1305 = vpack.i.b16 %v1238, %v1219
        %v1306 = vshrl.u32 %v1219, 16
        %v1307 = vshrl.u32 %v1238, 16
        %v1308 = vpack.i.b16 %v1307, %v1306
        %v1311 = vpack.i.b16 %v1240, %v1221
        %v1312 = vshrl.u32 %v1221, 16
        %v1313 = vshrl.u32 %v1240, 16
        %v1314 = vpack.i.b16 %v1313, %v1312
        %v1317 = vpack.i.b16 %v1276, %v1257
        %v1318 = vshrl.u32 %v1257, 16
        %v1319 = vshrl.u32 %v1276, 16
        %v1320 = vpack.i.b16 %v1319, %v1318
        %v1323 = vpack.i.b16 %v1278, %v1259
        %v1324 = vshrl.u32 %v1259, 16
        %v1325 = vshrl.u32 %v1278, 16
        %v1326 = vpack.i.b16 %v1325, %v1324
        %v1327 = vpack.c.bf16 %v808, %v808
        %v1328 = vpack.c.bf16 %v810, %v810
        %v1329 = vpack.c.bf16 %v813, %v813
        %v1330 = vpack.c.bf16 %v815, %v815
        %1335 = vrot.lane.b32.xlu0 %v1327, 96
        %v1336 = vpop.permute.xlu0 %1335
        %1337 = vrot.lane.b32.xlu0 %v1328, 96
        %v1338 = vpop.permute.xlu0 %1337
        %1339 = vrot.lane.b32.xlu0 %v1329, 96
        %v1340 = vpop.permute.xlu0 %1339
        %1341 = vrot.lane.b32.xlu0 %v1330, 96
        %v1342 = vpop.permute.xlu0 %1341
        %1343 = vrot.lane.b32.xlu0 %v1327, 64
        %v1344 = vpop.permute.xlu0 %1343
        %1345 = vrot.lane.b32.xlu0 %v1328, 64
        %v1346 = vpop.permute.xlu0 %1345
        %1347 = vrot.lane.b32.xlu0 %v1329, 64
        %v1348 = vpop.permute.xlu0 %1347
        %1349 = vrot.lane.b32.xlu0 %v1330, 64
        %v1350 = vpop.permute.xlu0 %1349
        %1351 = vrot.lane.b32.xlu0 %v1327, 32
        %v1352 = vpop.permute.xlu0 %1351
        %1353 = vrot.lane.b32.xlu0 %v1328, 32
        %v1354 = vpop.permute.xlu0 %1353
        %1355 = vrot.lane.b32.xlu0 %v1329, 32
        %v1356 = vpop.permute.xlu0 %1355
        %1357 = vrot.lane.b32.xlu0 %v1330, 32
        %v1358 = vpop.permute.xlu0 %1357
        %v1361 = vpack.i.b16 %v1336, %v1327
        %v1362 = vshrl.u32 %v1327, 16
        %v1363 = vshrl.u32 %v1336, 16
        %v1364 = vpack.i.b16 %v1363, %v1362
        %v1367 = vpack.i.b16 %v1352, %v1344
        %v1368 = vshrl.u32 %v1344, 16
        %v1369 = vshrl.u32 %v1352, 16
        %v1370 = vpack.i.b16 %v1369, %v1368
        %v1373 = vpack.i.b16 %v1338, %v1328
        %v1374 = vshrl.u32 %v1328, 16
        %v1375 = vshrl.u32 %v1338, 16
        %v1376 = vpack.i.b16 %v1375, %v1374
        %v1379 = vpack.i.b16 %v1354, %v1346
        %v1380 = vshrl.u32 %v1346, 16
        %v1381 = vshrl.u32 %v1354, 16
        %v1382 = vpack.i.b16 %v1381, %v1380
        %v1385 = vpack.i.b16 %v1340, %v1329
        %v1386 = vshrl.u32 %v1329, 16
        %v1387 = vshrl.u32 %v1340, 16
        %v1388 = vpack.i.b16 %v1387, %v1386
        %v1391 = vpack.i.b16 %v1356, %v1348
        %v1392 = vshrl.u32 %v1348, 16
        %v1393 = vshrl.u32 %v1356, 16
        %v1394 = vpack.i.b16 %v1393, %v1392
        %v1397 = vpack.i.b16 %v1342, %v1330
        %v1398 = vshrl.u32 %v1330, 16
        %v1399 = vshrl.u32 %v1342, 16
        %v1400 = vpack.i.b16 %v1399, %v1398
        %v1403 = vpack.i.b16 %v1358, %v1350
        %v1404 = vshrl.u32 %v1350, 16
        %v1405 = vshrl.u32 %v1358, 16
        %v1406 = vpack.i.b16 %v1405, %v1404
        %v1409 = vunpack.c.l.s4 1983009808
        %v1410 = vunpack.c.0.s8 %v1409
        %v1411 = vperm.slane %v1361, %v1410
        %v1414 = vunpack.c.l.s4 1983009808
        %v1415 = vunpack.c.0.s8 %v1414
        %v1416 = vperm.slane %v1367, %v1415
        %v1417 = vrot.slane %v1416, 4
        %v1418 = vsel %vm929, %v1417, %v1411
        %v1419 = vrot.slane %v1411, 4
        %v1420 = vsel %vm929, %v1416, %v1419
        %v1422 = vunpack.c.l.s4 1934713408
        %v1423 = vunpack.c.0.s8 %v1422
        %v1424 = vperm.slane %v1418, %v1423
        %v1426 = vunpack.c.l.s4 1934713408
        %v1427 = vunpack.c.0.s8 %v1426
        %v1428 = vperm.slane %v1420, %v1427
        %v1429 = vrot.slane %v1424, 4
        %v1430 = vsel %vm929, 0, %v1429
        %v1431 = vrot.slane %v1428, 4
        %v1432 = vsel %vm929, 0, %v1431
        %v1435 = vunpack.c.l.s4 1983009808
        %v1436 = vunpack.c.0.s8 %v1435
        %v1437 = vperm.slane %v1364, %v1436
        %v1440 = vunpack.c.l.s4 1983009808
        %v1441 = vunpack.c.0.s8 %v1440
        %v1442 = vperm.slane %v1370, %v1441
        %v1443 = vrot.slane %v1442, 4
        %v1444 = vsel %vm929, %v1443, %v1437
        %v1445 = vrot.slane %v1437, 4
        %v1446 = vsel %vm929, %v1442, %v1445
        %v1448 = vunpack.c.l.s4 1934713408
        %v1449 = vunpack.c.0.s8 %v1448
        %v1450 = vperm.slane %v1444, %v1449
        %v1452 = vunpack.c.l.s4 1934713408
        %v1453 = vunpack.c.0.s8 %v1452
        %v1454 = vperm.slane %v1446, %v1453
        %v1455 = vrot.slane %v1450, 4
        %v1456 = vsel %vm929, 0, %v1455
        %v1457 = vrot.slane %v1454, 4
        %v1458 = vsel %vm929, 0, %v1457
        %v1461 = vunpack.c.l.s4 1983009808
        %v1462 = vunpack.c.0.s8 %v1461
        %v1463 = vperm.slane %v1373, %v1462
        %v1466 = vunpack.c.l.s4 1983009808
        %v1467 = vunpack.c.0.s8 %v1466
        %v1468 = vperm.slane %v1379, %v1467
        %v1469 = vrot.slane %v1468, 4
        %v1470 = vsel %vm929, %v1469, %v1463
        %v1471 = vrot.slane %v1463, 4
        %v1472 = vsel %vm929, %v1468, %v1471
        %v1474 = vunpack.c.l.s4 1934713408
        %v1475 = vunpack.c.0.s8 %v1474
        %v1476 = vperm.slane %v1470, %v1475
        %v1478 = vunpack.c.l.s4 1934713408
        %v1479 = vunpack.c.0.s8 %v1478
        %v1480 = vperm.slane %v1472, %v1479
        %v1481 = vrot.slane %v1476, 4
        %v1482 = vsel %vm929, 0, %v1481
        %v1483 = vrot.slane %v1480, 4
        %v1484 = vsel %vm929, 0, %v1483
        %v1487 = vunpack.c.l.s4 1983009808
        %v1488 = vunpack.c.0.s8 %v1487
        %v1489 = vperm.slane %v1376, %v1488
        %v1492 = vunpack.c.l.s4 1983009808
        %v1493 = vunpack.c.0.s8 %v1492
        %v1494 = vperm.slane %v1382, %v1493
        %v1495 = vrot.slane %v1494, 4
        %v1496 = vsel %vm929, %v1495, %v1489
        %v1497 = vrot.slane %v1489, 4
        %v1498 = vsel %vm929, %v1494, %v1497
        %v1500 = vunpack.c.l.s4 1934713408
        %v1501 = vunpack.c.0.s8 %v1500
        %v1502 = vperm.slane %v1496, %v1501
        %v1504 = vunpack.c.l.s4 1934713408
        %v1505 = vunpack.c.0.s8 %v1504
        %v1506 = vperm.slane %v1498, %v1505
        %v1507 = vrot.slane %v1502, 4
        %v1508 = vsel %vm929, 0, %v1507
        %v1509 = vrot.slane %v1506, 4
        %v1510 = vsel %vm929, 0, %v1509
        %v1513 = vunpack.c.l.s4 1983009808
        %v1514 = vunpack.c.0.s8 %v1513
        %v1515 = vperm.slane %v1385, %v1514
        %v1518 = vunpack.c.l.s4 1983009808
        %v1519 = vunpack.c.0.s8 %v1518
        %v1520 = vperm.slane %v1391, %v1519
        %v1521 = vrot.slane %v1520, 4
        %v1522 = vsel %vm929, %v1521, %v1515
        %v1523 = vrot.slane %v1515, 4
        %v1524 = vsel %vm929, %v1520, %v1523
        %v1526 = vunpack.c.l.s4 1934713408
        %v1527 = vunpack.c.0.s8 %v1526
        %v1528 = vperm.slane %v1522, %v1527
        %v1530 = vunpack.c.l.s4 1934713408
        %v1531 = vunpack.c.0.s8 %v1530
        %v1532 = vperm.slane %v1524, %v1531
        %v1533 = vrot.slane %v1528, 4
        %v1534 = vsel %vm929, 0, %v1533
        %v1535 = vrot.slane %v1532, 4
        %v1536 = vsel %vm929, 0, %v1535
        %v1539 = vunpack.c.l.s4 1983009808
        %v1540 = vunpack.c.0.s8 %v1539
        %v1541 = vperm.slane %v1388, %v1540
        %v1544 = vunpack.c.l.s4 1983009808
        %v1545 = vunpack.c.0.s8 %v1544
        %v1546 = vperm.slane %v1394, %v1545
        %v1547 = vrot.slane %v1546, 4
        %v1548 = vsel %vm929, %v1547, %v1541
        %v1549 = vrot.slane %v1541, 4
        %v1550 = vsel %vm929, %v1546, %v1549
        %v1552 = vunpack.c.l.s4 1934713408
        %v1553 = vunpack.c.0.s8 %v1552
        %v1554 = vperm.slane %v1548, %v1553
        %v1556 = vunpack.c.l.s4 1934713408
        %v1557 = vunpack.c.0.s8 %v1556
        %v1558 = vperm.slane %v1550, %v1557
        %v1559 = vrot.slane %v1554, 4
        %v1560 = vsel %vm929, 0, %v1559
        %v1561 = vrot.slane %v1558, 4
        %v1562 = vsel %vm929, 0, %v1561
        %v1565 = vunpack.c.l.s4 1983009808
        %v1566 = vunpack.c.0.s8 %v1565
        %v1567 = vperm.slane %v1397, %v1566
        %v1570 = vunpack.c.l.s4 1983009808
        %v1571 = vunpack.c.0.s8 %v1570
        %v1572 = vperm.slane %v1403, %v1571
        %v1573 = vrot.slane %v1572, 4
        %v1574 = vsel %vm929, %v1573, %v1567
        %v1575 = vrot.slane %v1567, 4
        %v1576 = vsel %vm929, %v1572, %v1575
        %v1578 = vunpack.c.l.s4 1934713408
        %v1579 = vunpack.c.0.s8 %v1578
        %v1580 = vperm.slane %v1574, %v1579
        %v1582 = vunpack.c.l.s4 1934713408
        %v1583 = vunpack.c.0.s8 %v1582
        %v1584 = vperm.slane %v1576, %v1583
        %v1585 = vrot.slane %v1580, 4
        %v1586 = vsel %vm929, 0, %v1585
        %v1587 = vrot.slane %v1584, 4
        %v1588 = vsel %vm929, 0, %v1587
        %v1591 = vunpack.c.l.s4 1983009808
        %v1592 = vunpack.c.0.s8 %v1591
        %v1593 = vperm.slane %v1400, %v1592
        %v1596 = vunpack.c.l.s4 1983009808
        %v1597 = vunpack.c.0.s8 %v1596
        %v1598 = vperm.slane %v1406, %v1597
        %v1599 = vrot.slane %v1598, 4
        %v1600 = vsel %vm929, %v1599, %v1593
        %v1601 = vrot.slane %v1593, 4
        %v1602 = vsel %vm929, %v1598, %v1601
        %v1604 = vunpack.c.l.s4 1934713408
        %v1605 = vunpack.c.0.s8 %v1604
        %v1606 = vperm.slane %v1600, %v1605
        %v1608 = vunpack.c.l.s4 1934713408
        %v1609 = vunpack.c.0.s8 %v1608
        %v1610 = vperm.slane %v1602, %v1609
        %v1611 = vrot.slane %v1606, 4
        %v1612 = vsel %vm929, 0, %v1611
        %v1613 = vrot.slane %v1610, 4
        %v1614 = vsel %vm929, 0, %v1613
        %v1615 = vsel %vm929, %v1431, %v1424
        %v1617 = vunpack.c.l.s4 1983009808
        %v1618 = vunpack.c.0.s8 %v1617
        %v1619 = vperm.slane %v1615, %v1618
        %v1620 = vrot.slane %v1432, 4
        %v1621 = vsel %vm929, %v1620, %v1430
        %v1623 = vunpack.c.l.s4 1983009808
        %v1624 = vunpack.c.0.s8 %v1623
        %v1625 = vperm.slane %v1621, %v1624
        %v1626 = vrot.slane %v1625, 4
        %v1627 = vsel %vm929, %v1626, %v1619
        %v1629 = vunpack.c.l.s4 1934713408
        %v1630 = vunpack.c.0.s8 %v1629
        %v1631 = vperm.slane %v1627, %v1630
        %v1632 = vrot.slane %v1631, 4
        %v1633 = vsel %vm929, 0, %v1632
        %v1634 = vsel %vm929, %v1457, %v1450
        %v1636 = vunpack.c.l.s4 1983009808
        %v1637 = vunpack.c.0.s8 %v1636
        %v1638 = vperm.slane %v1634, %v1637
        %v1639 = vrot.slane %v1458, 4
        %v1640 = vsel %vm929, %v1639, %v1456
        %v1642 = vunpack.c.l.s4 1983009808
        %v1643 = vunpack.c.0.s8 %v1642
        %v1644 = vperm.slane %v1640, %v1643
        %v1645 = vrot.slane %v1644, 4
        %v1646 = vsel %vm929, %v1645, %v1638
        %v1648 = vunpack.c.l.s4 1934713408
        %v1649 = vunpack.c.0.s8 %v1648
        %v1650 = vperm.slane %v1646, %v1649
        %v1651 = vrot.slane %v1650, 4
        %v1652 = vsel %vm929, 0, %v1651
        %v1653 = vsel %vm929, %v1483, %v1476
        %v1655 = vunpack.c.l.s4 1983009808
        %v1656 = vunpack.c.0.s8 %v1655
        %v1657 = vperm.slane %v1653, %v1656
        %v1658 = vrot.slane %v1484, 4
        %v1659 = vsel %vm929, %v1658, %v1482
        %v1661 = vunpack.c.l.s4 1983009808
        %v1662 = vunpack.c.0.s8 %v1661
        %v1663 = vperm.slane %v1659, %v1662
        %v1664 = vrot.slane %v1663, 4
        %v1665 = vsel %vm929, %v1664, %v1657
        %v1667 = vunpack.c.l.s4 1934713408
        %v1668 = vunpack.c.0.s8 %v1667
        %v1669 = vperm.slane %v1665, %v1668
        %v1670 = vrot.slane %v1669, 4
        %v1671 = vsel %vm929, 0, %v1670
        %v1672 = vsel %vm929, %v1509, %v1502
        %v1674 = vunpack.c.l.s4 1983009808
        %v1675 = vunpack.c.0.s8 %v1674
        %v1676 = vperm.slane %v1672, %v1675
        %v1677 = vrot.slane %v1510, 4
        %v1678 = vsel %vm929, %v1677, %v1508
        %v1680 = vunpack.c.l.s4 1983009808
        %v1681 = vunpack.c.0.s8 %v1680
        %v1682 = vperm.slane %v1678, %v1681
        %v1683 = vrot.slane %v1682, 4
        %v1684 = vsel %vm929, %v1683, %v1676
        %v1686 = vunpack.c.l.s4 1934713408
        %v1687 = vunpack.c.0.s8 %v1686
        %v1688 = vperm.slane %v1684, %v1687
        %v1689 = vrot.slane %v1688, 4
        %v1690 = vsel %vm929, 0, %v1689
        %v1691 = vsel %vm929, %v1535, %v1528
        %v1693 = vunpack.c.l.s4 1983009808
        %v1694 = vunpack.c.0.s8 %v1693
        %v1695 = vperm.slane %v1691, %v1694
        %v1696 = vrot.slane %v1536, 4
        %v1697 = vsel %vm929, %v1696, %v1534
        %v1699 = vunpack.c.l.s4 1983009808
        %v1700 = vunpack.c.0.s8 %v1699
        %v1701 = vperm.slane %v1697, %v1700
        %v1702 = vrot.slane %v1701, 4
        %v1703 = vsel %vm929, %v1702, %v1695
        %v1705 = vunpack.c.l.s4 1934713408
        %v1706 = vunpack.c.0.s8 %v1705
        %v1707 = vperm.slane %v1703, %v1706
        %v1708 = vrot.slane %v1707, 4
        %v1709 = vsel %vm929, 0, %v1708
        %v1710 = vsel %vm929, %v1561, %v1554
        %v1712 = vunpack.c.l.s4 1983009808
        %v1713 = vunpack.c.0.s8 %v1712
        %v1714 = vperm.slane %v1710, %v1713
        %v1715 = vrot.slane %v1562, 4
        %v1716 = vsel %vm929, %v1715, %v1560
        %v1718 = vunpack.c.l.s4 1983009808
        %v1719 = vunpack.c.0.s8 %v1718
        %v1720 = vperm.slane %v1716, %v1719
        %v1721 = vrot.slane %v1720, 4
        %v1722 = vsel %vm929, %v1721, %v1714
        %v1724 = vunpack.c.l.s4 1934713408
        %v1725 = vunpack.c.0.s8 %v1724
        %v1726 = vperm.slane %v1722, %v1725
        %v1727 = vrot.slane %v1726, 4
        %v1728 = vsel %vm929, 0, %v1727
        %v1729 = vsel %vm929, %v1587, %v1580
        %v1731 = vunpack.c.l.s4 1983009808
        %v1732 = vunpack.c.0.s8 %v1731
        %v1733 = vperm.slane %v1729, %v1732
        %v1734 = vrot.slane %v1588, 4
        %v1735 = vsel %vm929, %v1734, %v1586
        %v1737 = vunpack.c.l.s4 1983009808
        %v1738 = vunpack.c.0.s8 %v1737
        %v1739 = vperm.slane %v1735, %v1738
        %v1740 = vrot.slane %v1739, 4
        %v1741 = vsel %vm929, %v1740, %v1733
        %v1743 = vunpack.c.l.s4 1934713408
        %v1744 = vunpack.c.0.s8 %v1743
        %v1745 = vperm.slane %v1741, %v1744
        %v1746 = vrot.slane %v1745, 4
        %v1747 = vsel %vm929, 0, %v1746
        %v1748 = vsel %vm929, %v1613, %v1606
        %v1750 = vunpack.c.l.s4 1983009808
        %v1751 = vunpack.c.0.s8 %v1750
        %v1752 = vperm.slane %v1748, %v1751
        %v1753 = vrot.slane %v1614, 4
        %v1754 = vsel %vm929, %v1753, %v1612
        %v1756 = vunpack.c.l.s4 1983009808
        %v1757 = vunpack.c.0.s8 %v1756
        %v1758 = vperm.slane %v1754, %v1757
        %v1759 = vrot.slane %v1758, 4
        %v1760 = vsel %vm929, %v1759, %v1752
        %v1762 = vunpack.c.l.s4 1934713408
        %v1763 = vunpack.c.0.s8 %v1762
        %v1764 = vperm.slane %v1760, %v1763
        %v1765 = vrot.slane %v1764, 4
        %v1766 = vsel %vm929, 0, %v1765
        %v1769 = vpack.i.b16 %v1650, %v1631
        %v1770 = vshrl.u32 %v1631, 16
        %v1771 = vshrl.u32 %v1650, 16
        %v1772 = vpack.i.b16 %v1771, %v1770
        %v1775 = vpack.i.b16 %v1652, %v1633
        %v1776 = vshrl.u32 %v1633, 16
        %v1777 = vshrl.u32 %v1652, 16
        %v1778 = vpack.i.b16 %v1777, %v1776
        %v1781 = vpack.i.b16 %v1688, %v1669
        %v1782 = vshrl.u32 %v1669, 16
        %v1783 = vshrl.u32 %v1688, 16
        %v1784 = vpack.i.b16 %v1783, %v1782
        %v1787 = vpack.i.b16 %v1690, %v1671
        %v1788 = vshrl.u32 %v1671, 16
        %v1789 = vshrl.u32 %v1690, 16
        %v1790 = vpack.i.b16 %v1789, %v1788
        %v1793 = vpack.i.b16 %v1726, %v1707
        %v1794 = vshrl.u32 %v1707, 16
        %v1795 = vshrl.u32 %v1726, 16
        %v1796 = vpack.i.b16 %v1795, %v1794
        %v1799 = vpack.i.b16 %v1728, %v1709
        %v1800 = vshrl.u32 %v1709, 16
        %v1801 = vshrl.u32 %v1728, 16
        %v1802 = vpack.i.b16 %v1801, %v1800
        %v1805 = vpack.i.b16 %v1764, %v1745
        %v1806 = vshrl.u32 %v1745, 16
        %v1807 = vshrl.u32 %v1764, 16
        %v1808 = vpack.i.b16 %v1807, %v1806
        %v1811 = vpack.i.b16 %v1766, %v1747
        %v1812 = vshrl.u32 %v1747, 16
        %v1813 = vshrl.u32 %v1766, 16
        %v1814 = vpack.i.b16 %v1813, %v1812
        %v1815 = vpack.c.bf16 %v827, %v827
        %v1816 = vpack.c.bf16 %v829, %v829
        %v1817 = vpack.c.bf16 %v832, %v832
        %v1818 = vpack.c.bf16 %v834, %v834
        %1823 = vrot.lane.b32.xlu0 %v1815, 96
        %v1824 = vpop.permute.xlu0 %1823
        %1825 = vrot.lane.b32.xlu0 %v1816, 96
        %v1826 = vpop.permute.xlu0 %1825
        %1827 = vrot.lane.b32.xlu0 %v1817, 96
        %v1828 = vpop.permute.xlu0 %1827
        %1829 = vrot.lane.b32.xlu0 %v1818, 96
        %v1830 = vpop.permute.xlu0 %1829
        %1831 = vrot.lane.b32.xlu0 %v1815, 64
        %v1832 = vpop.permute.xlu0 %1831
        %1833 = vrot.lane.b32.xlu0 %v1816, 64
        %v1834 = vpop.permute.xlu0 %1833
        %1835 = vrot.lane.b32.xlu0 %v1817, 64
        %v1836 = vpop.permute.xlu0 %1835
        %1837 = vrot.lane.b32.xlu0 %v1818, 64
        %v1838 = vpop.permute.xlu0 %1837
        %1839 = vrot.lane.b32.xlu0 %v1815, 32
        %v1840 = vpop.permute.xlu0 %1839
        %1841 = vrot.lane.b32.xlu0 %v1816, 32
        %v1842 = vpop.permute.xlu0 %1841
        %1843 = vrot.lane.b32.xlu0 %v1817, 32
        %v1844 = vpop.permute.xlu0 %1843
        %1845 = vrot.lane.b32.xlu0 %v1818, 32
        %v1846 = vpop.permute.xlu0 %1845
        %v1849 = vpack.i.b16 %v1824, %v1815
        %v1850 = vshrl.u32 %v1815, 16
        %v1851 = vshrl.u32 %v1824, 16
        %v1852 = vpack.i.b16 %v1851, %v1850
        %v1855 = vpack.i.b16 %v1840, %v1832
        %v1856 = vshrl.u32 %v1832, 16
        %v1857 = vshrl.u32 %v1840, 16
        %v1858 = vpack.i.b16 %v1857, %v1856
        %v1861 = vpack.i.b16 %v1826, %v1816
        %v1862 = vshrl.u32 %v1816, 16
        %v1863 = vshrl.u32 %v1826, 16
        %v1864 = vpack.i.b16 %v1863, %v1862
        %v1867 = vpack.i.b16 %v1842, %v1834
        %v1868 = vshrl.u32 %v1834, 16
        %v1869 = vshrl.u32 %v1842, 16
        %v1870 = vpack.i.b16 %v1869, %v1868
        %v1873 = vpack.i.b16 %v1828, %v1817
        %v1874 = vshrl.u32 %v1817, 16
        %v1875 = vshrl.u32 %v1828, 16
        %v1876 = vpack.i.b16 %v1875, %v1874
        %v1879 = vpack.i.b16 %v1844, %v1836
        %v1880 = vshrl.u32 %v1836, 16
        %v1881 = vshrl.u32 %v1844, 16
        %v1882 = vpack.i.b16 %v1881, %v1880
        %v1885 = vpack.i.b16 %v1830, %v1818
        %v1886 = vshrl.u32 %v1818, 16
        %v1887 = vshrl.u32 %v1830, 16
        %v1888 = vpack.i.b16 %v1887, %v1886
        %v1891 = vpack.i.b16 %v1846, %v1838
        %v1892 = vshrl.u32 %v1838, 16
        %v1893 = vshrl.u32 %v1846, 16
        %v1894 = vpack.i.b16 %v1893, %v1892
        %v1897 = vunpack.c.l.s4 1983009808
        %v1898 = vunpack.c.0.s8 %v1897
        %v1899 = vperm.slane %v1849, %v1898
        %v1902 = vunpack.c.l.s4 1983009808
        %v1903 = vunpack.c.0.s8 %v1902
        %v1904 = vperm.slane %v1855, %v1903
        %v1905 = vrot.slane %v1904, 4
        %v1906 = vsel %vm929, %v1905, %v1899
        %v1907 = vrot.slane %v1899, 4
        %v1908 = vsel %vm929, %v1904, %v1907
        %v1910 = vunpack.c.l.s4 1934713408
        %v1911 = vunpack.c.0.s8 %v1910
        %v1912 = vperm.slane %v1906, %v1911
        %v1914 = vunpack.c.l.s4 1934713408
        %v1915 = vunpack.c.0.s8 %v1914
        %v1916 = vperm.slane %v1908, %v1915
        %v1917 = vrot.slane %v1912, 4
        %v1918 = vsel %vm929, 0, %v1917
        %v1919 = vrot.slane %v1916, 4
        %v1920 = vsel %vm929, 0, %v1919
        %v1923 = vunpack.c.l.s4 1983009808
        %v1924 = vunpack.c.0.s8 %v1923
        %v1925 = vperm.slane %v1852, %v1924
        %v1928 = vunpack.c.l.s4 1983009808
        %v1929 = vunpack.c.0.s8 %v1928
        %v1930 = vperm.slane %v1858, %v1929
        %v1931 = vrot.slane %v1930, 4
        %v1932 = vsel %vm929, %v1931, %v1925
        %v1933 = vrot.slane %v1925, 4
        %v1934 = vsel %vm929, %v1930, %v1933
        %v1936 = vunpack.c.l.s4 1934713408
        %v1937 = vunpack.c.0.s8 %v1936
        %v1938 = vperm.slane %v1932, %v1937
        %v1940 = vunpack.c.l.s4 1934713408
        %v1941 = vunpack.c.0.s8 %v1940
        %v1942 = vperm.slane %v1934, %v1941
        %v1943 = vrot.slane %v1938, 4
        %v1944 = vsel %vm929, 0, %v1943
        %v1945 = vrot.slane %v1942, 4
        %v1946 = vsel %vm929, 0, %v1945
        %v1949 = vunpack.c.l.s4 1983009808
        %v1950 = vunpack.c.0.s8 %v1949
        %v1951 = vperm.slane %v1861, %v1950
        %v1954 = vunpack.c.l.s4 1983009808
        %v1955 = vunpack.c.0.s8 %v1954
        %v1956 = vperm.slane %v1867, %v1955
        %v1957 = vrot.slane %v1956, 4
        %v1958 = vsel %vm929, %v1957, %v1951
        %v1959 = vrot.slane %v1951, 4
        %v1960 = vsel %vm929, %v1956, %v1959
        %v1962 = vunpack.c.l.s4 1934713408
        %v1963 = vunpack.c.0.s8 %v1962
        %v1964 = vperm.slane %v1958, %v1963
        %v1966 = vunpack.c.l.s4 1934713408
        %v1967 = vunpack.c.0.s8 %v1966
        %v1968 = vperm.slane %v1960, %v1967
        %v1969 = vrot.slane %v1964, 4
        %v1970 = vsel %vm929, 0, %v1969
        %v1971 = vrot.slane %v1968, 4
        %v1972 = vsel %vm929, 0, %v1971
        %v1975 = vunpack.c.l.s4 1983009808
        %v1976 = vunpack.c.0.s8 %v1975
        %v1977 = vperm.slane %v1864, %v1976
        %v1980 = vunpack.c.l.s4 1983009808
        %v1981 = vunpack.c.0.s8 %v1980
        %v1982 = vperm.slane %v1870, %v1981
        %v1983 = vrot.slane %v1982, 4
        %v1984 = vsel %vm929, %v1983, %v1977
        %v1985 = vrot.slane %v1977, 4
        %v1986 = vsel %vm929, %v1982, %v1985
        %v1988 = vunpack.c.l.s4 1934713408
        %v1989 = vunpack.c.0.s8 %v1988
        %v1990 = vperm.slane %v1984, %v1989
        %v1992 = vunpack.c.l.s4 1934713408
        %v1993 = vunpack.c.0.s8 %v1992
        %v1994 = vperm.slane %v1986, %v1993
        %v1995 = vrot.slane %v1990, 4
        %v1996 = vsel %vm929, 0, %v1995
        %v1997 = vrot.slane %v1994, 4
        %v1998 = vsel %vm929, 0, %v1997
        %v2001 = vunpack.c.l.s4 1983009808
        %v2002 = vunpack.c.0.s8 %v2001
        %v2003 = vperm.slane %v1873, %v2002
        %v2006 = vunpack.c.l.s4 1983009808
        %v2007 = vunpack.c.0.s8 %v2006
        %v2008 = vperm.slane %v1879, %v2007
        %v2009 = vrot.slane %v2008, 4
        %v2010 = vsel %vm929, %v2009, %v2003
        %v2011 = vrot.slane %v2003, 4
        %v2012 = vsel %vm929, %v2008, %v2011
        %v2014 = vunpack.c.l.s4 1934713408
        %v2015 = vunpack.c.0.s8 %v2014
        %v2016 = vperm.slane %v2010, %v2015
        %v2018 = vunpack.c.l.s4 1934713408
        %v2019 = vunpack.c.0.s8 %v2018
        %v2020 = vperm.slane %v2012, %v2019
        %v2021 = vrot.slane %v2016, 4
        %v2022 = vsel %vm929, 0, %v2021
        %v2023 = vrot.slane %v2020, 4
        %v2024 = vsel %vm929, 0, %v2023
        %v2027 = vunpack.c.l.s4 1983009808
        %v2028 = vunpack.c.0.s8 %v2027
        %v2029 = vperm.slane %v1876, %v2028
        %v2032 = vunpack.c.l.s4 1983009808
        %v2033 = vunpack.c.0.s8 %v2032
        %v2034 = vperm.slane %v1882, %v2033
        %v2035 = vrot.slane %v2034, 4
        %v2036 = vsel %vm929, %v2035, %v2029
        %v2037 = vrot.slane %v2029, 4
        %v2038 = vsel %vm929, %v2034, %v2037
        %v2040 = vunpack.c.l.s4 1934713408
        %v2041 = vunpack.c.0.s8 %v2040
        %v2042 = vperm.slane %v2036, %v2041
        %v2044 = vunpack.c.l.s4 1934713408
        %v2045 = vunpack.c.0.s8 %v2044
        %v2046 = vperm.slane %v2038, %v2045
        %v2047 = vrot.slane %v2042, 4
        %v2048 = vsel %vm929, 0, %v2047
        %v2049 = vrot.slane %v2046, 4
        %v2050 = vsel %vm929, 0, %v2049
        %v2053 = vunpack.c.l.s4 1983009808
        %v2054 = vunpack.c.0.s8 %v2053
        %v2055 = vperm.slane %v1885, %v2054
        %v2058 = vunpack.c.l.s4 1983009808
        %v2059 = vunpack.c.0.s8 %v2058
        %v2060 = vperm.slane %v1891, %v2059
        %v2061 = vrot.slane %v2060, 4
        %v2062 = vsel %vm929, %v2061, %v2055
        %v2063 = vrot.slane %v2055, 4
        %v2064 = vsel %vm929, %v2060, %v2063
        %v2066 = vunpack.c.l.s4 1934713408
        %v2067 = vunpack.c.0.s8 %v2066
        %v2068 = vperm.slane %v2062, %v2067
        %v2070 = vunpack.c.l.s4 1934713408
        %v2071 = vunpack.c.0.s8 %v2070
        %v2072 = vperm.slane %v2064, %v2071
        %v2073 = vrot.slane %v2068, 4
        %v2074 = vsel %vm929, 0, %v2073
        %v2075 = vrot.slane %v2072, 4
        %v2076 = vsel %vm929, 0, %v2075
        %v2079 = vunpack.c.l.s4 1983009808
        %v2080 = vunpack.c.0.s8 %v2079
        %v2081 = vperm.slane %v1888, %v2080
        %v2084 = vunpack.c.l.s4 1983009808
        %v2085 = vunpack.c.0.s8 %v2084
        %v2086 = vperm.slane %v1894, %v2085
        %v2087 = vrot.slane %v2086, 4
        %v2088 = vsel %vm929, %v2087, %v2081
        %v2089 = vrot.slane %v2081, 4
        %v2090 = vsel %vm929, %v2086, %v2089
        %v2092 = vunpack.c.l.s4 1934713408
        %v2093 = vunpack.c.0.s8 %v2092
        %v2094 = vperm.slane %v2088, %v2093
        %v2096 = vunpack.c.l.s4 1934713408
        %v2097 = vunpack.c.0.s8 %v2096
        %v2098 = vperm.slane %v2090, %v2097
        %v2099 = vrot.slane %v2094, 4
        %v2100 = vsel %vm929, 0, %v2099
        %v2101 = vrot.slane %v2098, 4
        %v2102 = vsel %vm929, 0, %v2101
        %v2103 = vsel %vm929, %v1919, %v1912
        %v2105 = vunpack.c.l.s4 1983009808
        %v2106 = vunpack.c.0.s8 %v2105
        %v2107 = vperm.slane %v2103, %v2106
        %v2108 = vrot.slane %v1920, 4
        %v2109 = vsel %vm929, %v2108, %v1918
        %v2111 = vunpack.c.l.s4 1983009808
        %v2112 = vunpack.c.0.s8 %v2111
        %v2113 = vperm.slane %v2109, %v2112
        %v2114 = vrot.slane %v2113, 4
        %v2115 = vsel %vm929, %v2114, %v2107
        %v2117 = vunpack.c.l.s4 1934713408
        %v2118 = vunpack.c.0.s8 %v2117
        %v2119 = vperm.slane %v2115, %v2118
        %v2120 = vrot.slane %v2119, 4
        %v2121 = vsel %vm929, 0, %v2120
        %v2122 = vsel %vm929, %v1945, %v1938
        %v2124 = vunpack.c.l.s4 1983009808
        %v2125 = vunpack.c.0.s8 %v2124
        %v2126 = vperm.slane %v2122, %v2125
        %v2127 = vrot.slane %v1946, 4
        %v2128 = vsel %vm929, %v2127, %v1944
        %v2130 = vunpack.c.l.s4 1983009808
        %v2131 = vunpack.c.0.s8 %v2130
        %v2132 = vperm.slane %v2128, %v2131
        %v2133 = vrot.slane %v2132, 4
        %v2134 = vsel %vm929, %v2133, %v2126
        %v2136 = vunpack.c.l.s4 1934713408
        %v2137 = vunpack.c.0.s8 %v2136
        %v2138 = vperm.slane %v2134, %v2137
        %v2139 = vrot.slane %v2138, 4
        %v2140 = vsel %vm929, 0, %v2139
        %v2141 = vsel %vm929, %v1971, %v1964
        %v2143 = vunpack.c.l.s4 1983009808
        %v2144 = vunpack.c.0.s8 %v2143
        %v2145 = vperm.slane %v2141, %v2144
        %v2146 = vrot.slane %v1972, 4
        %v2147 = vsel %vm929, %v2146, %v1970
        %v2149 = vunpack.c.l.s4 1983009808
        %v2150 = vunpack.c.0.s8 %v2149
        %v2151 = vperm.slane %v2147, %v2150
        %v2152 = vrot.slane %v2151, 4
        %v2153 = vsel %vm929, %v2152, %v2145
        %v2155 = vunpack.c.l.s4 1934713408
        %v2156 = vunpack.c.0.s8 %v2155
        %v2157 = vperm.slane %v2153, %v2156
        %v2158 = vrot.slane %v2157, 4
        %v2159 = vsel %vm929, 0, %v2158
        %v2160 = vsel %vm929, %v1997, %v1990
        %v2162 = vunpack.c.l.s4 1983009808
        %v2163 = vunpack.c.0.s8 %v2162
        %v2164 = vperm.slane %v2160, %v2163
        %v2165 = vrot.slane %v1998, 4
        %v2166 = vsel %vm929, %v2165, %v1996
        %v2168 = vunpack.c.l.s4 1983009808
        %v2169 = vunpack.c.0.s8 %v2168
        %v2170 = vperm.slane %v2166, %v2169
        %v2171 = vrot.slane %v2170, 4
        %v2172 = vsel %vm929, %v2171, %v2164
        %v2174 = vunpack.c.l.s4 1934713408
        %v2175 = vunpack.c.0.s8 %v2174
        %v2176 = vperm.slane %v2172, %v2175
        %v2177 = vrot.slane %v2176, 4
        %v2178 = vsel %vm929, 0, %v2177
        %v2179 = vsel %vm929, %v2023, %v2016
        %v2181 = vunpack.c.l.s4 1983009808
        %v2182 = vunpack.c.0.s8 %v2181
        %v2183 = vperm.slane %v2179, %v2182
        %v2184 = vrot.slane %v2024, 4
        %v2185 = vsel %vm929, %v2184, %v2022
        %v2187 = vunpack.c.l.s4 1983009808
        %v2188 = vunpack.c.0.s8 %v2187
        %v2189 = vperm.slane %v2185, %v2188
        %v2190 = vrot.slane %v2189, 4
        %v2191 = vsel %vm929, %v2190, %v2183
        %v2193 = vunpack.c.l.s4 1934713408
        %v2194 = vunpack.c.0.s8 %v2193
        %v2195 = vperm.slane %v2191, %v2194
        %v2196 = vrot.slane %v2195, 4
        %v2197 = vsel %vm929, 0, %v2196
        %v2198 = vsel %vm929, %v2049, %v2042
        %v2200 = vunpack.c.l.s4 1983009808
        %v2201 = vunpack.c.0.s8 %v2200
        %v2202 = vperm.slane %v2198, %v2201
        %v2203 = vrot.slane %v2050, 4
        %v2204 = vsel %vm929, %v2203, %v2048
        %v2206 = vunpack.c.l.s4 1983009808
        %v2207 = vunpack.c.0.s8 %v2206
        %v2208 = vperm.slane %v2204, %v2207
        %v2209 = vrot.slane %v2208, 4
        %v2210 = vsel %vm929, %v2209, %v2202
        %v2212 = vunpack.c.l.s4 1934713408
        %v2213 = vunpack.c.0.s8 %v2212
        %v2214 = vperm.slane %v2210, %v2213
        %v2215 = vrot.slane %v2214, 4
        %v2216 = vsel %vm929, 0, %v2215
        %v2217 = vsel %vm929, %v2075, %v2068
        %v2219 = vunpack.c.l.s4 1983009808
        %v2220 = vunpack.c.0.s8 %v2219
        %v2221 = vperm.slane %v2217, %v2220
        %v2222 = vrot.slane %v2076, 4
        %v2223 = vsel %vm929, %v2222, %v2074
        %v2225 = vunpack.c.l.s4 1983009808
        %v2226 = vunpack.c.0.s8 %v2225
        %v2227 = vperm.slane %v2223, %v2226
        %v2228 = vrot.slane %v2227, 4
        %v2229 = vsel %vm929, %v2228, %v2221
        %v2231 = vunpack.c.l.s4 1934713408
        %v2232 = vunpack.c.0.s8 %v2231
        %v2233 = vperm.slane %v2229, %v2232
        %v2234 = vrot.slane %v2233, 4
        %v2235 = vsel %vm929, 0, %v2234
        %v2236 = vsel %vm929, %v2101, %v2094
        %v2238 = vunpack.c.l.s4 1983009808
        %v2239 = vunpack.c.0.s8 %v2238
        %v2240 = vperm.slane %v2236, %v2239
        %v2241 = vrot.slane %v2102, 4
        %v2242 = vsel %vm929, %v2241, %v2100
        %v2244 = vunpack.c.l.s4 1983009808
        %v2245 = vunpack.c.0.s8 %v2244
        %v2246 = vperm.slane %v2242, %v2245
        %v2247 = vrot.slane %v2246, 4
        %v2248 = vsel %vm929, %v2247, %v2240
        %v2250 = vunpack.c.l.s4 1934713408
        %v2251 = vunpack.c.0.s8 %v2250
        %v2252 = vperm.slane %v2248, %v2251
        %v2253 = vrot.slane %v2252, 4
        %v2254 = vsel %vm929, 0, %v2253
        %v2257 = vpack.i.b16 %v2138, %v2119
        %v2258 = vshrl.u32 %v2119, 16
        %v2259 = vshrl.u32 %v2138, 16
        %v2260 = vpack.i.b16 %v2259, %v2258
        %v2263 = vpack.i.b16 %v2140, %v2121
        %v2264 = vshrl.u32 %v2121, 16
        %v2265 = vshrl.u32 %v2140, 16
        %v2266 = vpack.i.b16 %v2265, %v2264
        %v2269 = vpack.i.b16 %v2176, %v2157
        %v2270 = vshrl.u32 %v2157, 16
        %v2271 = vshrl.u32 %v2176, 16
        %v2272 = vpack.i.b16 %v2271, %v2270
        %v2275 = vpack.i.b16 %v2178, %v2159
        %v2276 = vshrl.u32 %v2159, 16
        %v2277 = vshrl.u32 %v2178, 16
        %v2278 = vpack.i.b16 %v2277, %v2276
        %v2281 = vpack.i.b16 %v2214, %v2195
        %v2282 = vshrl.u32 %v2195, 16
        %v2283 = vshrl.u32 %v2214, 16
        %v2284 = vpack.i.b16 %v2283, %v2282
        %v2287 = vpack.i.b16 %v2216, %v2197
        %v2288 = vshrl.u32 %v2197, 16
        %v2289 = vshrl.u32 %v2216, 16
        %v2290 = vpack.i.b16 %v2289, %v2288
        %v2293 = vpack.i.b16 %v2252, %v2233
        %v2294 = vshrl.u32 %v2233, 16
        %v2295 = vshrl.u32 %v2252, 16
        %v2296 = vpack.i.b16 %v2295, %v2294
        %v2299 = vpack.i.b16 %v2254, %v2235
        %v2300 = vshrl.u32 %v2235, 16
        %v2301 = vshrl.u32 %v2254, 16
        %v2302 = vpack.i.b16 %v2301, %v2300
        %v2303 = vunpack.c.l.b16 %v1281
        %v2304 = vunpack.c.l.b16 %v1293
        %v2305 = vpack.c.b16 %v2304, %v2303
        %v2306 = vunpack.c.l.b16 %v1769
        %v2307 = vunpack.c.l.b16 %v1781
        %v2308 = vpack.c.b16 %v2307, %v2306
        %vm2309 = vcmask 261120
        %v2311 = vsel %vm2309, %v2305, 0
        %v2314 = vsel %vm2309, %v2308, 0
        %2316 = vmatpush.bf16.xpose.msra.mxu0 0
        %2317 = vmatpush.bf16.xpose.msra.mxu0 0
        %2318 = vmatpush.bf16.xpose.msra.mxu0 0
        %2319 = vmatpush.bf16.xpose.msra.mxu0 0
        %2320 = vmatpush.bf16.xpose.msra.mxu0 0
        %2321 = vmatpush.bf16.xpose.msra.mxu0 0
        %2322 = vmatpush.bf16.xpose.msra.mxu0 0
        %2323 = vmatpush.bf16.xpose.msra.mxu0 %v2314
        %2324 = vmatmul.bf16.gmra.mxu0 %v2311
        %v2325 = vpop.f32.mrf.mxu0
        %v2326 = vadd.f32 0.0, %v2325
        %v2327 = vpop.f32.mrf.mxu0
        %v2328 = vadd.f32 0.0, %v2327
        %2329 = vdwg.mxu0
        %v2330 = vunpack.c.l.b16 %v1284
        %v2331 = vunpack.c.l.b16 %v1296
        %v2332 = vpack.c.b16 %v2331, %v2330
        %v2333 = vunpack.c.l.b16 %v1772
        %v2334 = vunpack.c.l.b16 %v1784
        %v2335 = vpack.c.b16 %v2334, %v2333
        %v2337 = vsel %vm2309, %v2332, 0
        %v2340 = vsel %vm2309, %v2335, 0
        %2342 = vmatpush.bf16.xpose.msra.mxu0 0
        %2343 = vmatpush.bf16.xpose.msra.mxu0 0
        %2344 = vmatpush.bf16.xpose.msra.mxu0 0
        %2345 = vmatpush.bf16.xpose.msra.mxu0 0
        %2346 = vmatpush.bf16.xpose.msra.mxu0 0
        %2347 = vmatpush.bf16.xpose.msra.mxu0 0
        %2348 = vmatpush.bf16.xpose.msra.mxu0 0
        %2349 = vmatpush.bf16.xpose.msra.mxu0 %v2340
        %2350 = vmatmul.bf16.gmra.mxu0 %v2337
        %v2351 = vpop.f32.mrf.mxu0
        %v2352 = vadd.f32 0.0, %v2351
        %v2353 = vpop.f32.mrf.mxu0
        %v2354 = vadd.f32 0.0, %v2353
        %2355 = vdwg.mxu0
        %v2356 = vunpack.c.l.b16 %v1287
        %v2357 = vunpack.c.l.b16 %v1299
        %v2358 = vpack.c.b16 %v2357, %v2356
        %v2359 = vunpack.c.l.b16 %v1775
        %v2360 = vunpack.c.l.b16 %v1787
        %v2361 = vpack.c.b16 %v2360, %v2359
        %v2363 = vsel %vm2309, %v2358, 0
        %v2366 = vsel %vm2309, %v2361, 0
        %2368 = vmatpush.bf16.xpose.msra.mxu0 0
        %2369 = vmatpush.bf16.xpose.msra.mxu0 0
        %2370 = vmatpush.bf16.xpose.msra.mxu0 0
        %2371 = vmatpush.bf16.xpose.msra.mxu0 0
        %2372 = vmatpush.bf16.xpose.msra.mxu0 0
        %2373 = vmatpush.bf16.xpose.msra.mxu0 0
        %2374 = vmatpush.bf16.xpose.msra.mxu0 0
        %2375 = vmatpush.bf16.xpose.msra.mxu0 %v2366
        %2376 = vmatmul.bf16.gmra.mxu0 %v2363
        %v2377 = vpop.f32.mrf.mxu0
        %v2378 = vadd.f32 0.0, %v2377
        %v2379 = vpop.f32.mrf.mxu0
        %v2380 = vadd.f32 0.0, %v2379
        %2381 = vdwg.mxu0
        %v2382 = vunpack.c.l.b16 %v1290
        %v2383 = vunpack.c.l.b16 %v1302
        %v2384 = vpack.c.b16 %v2383, %v2382
        %v2385 = vunpack.c.l.b16 %v1778
        %v2386 = vunpack.c.l.b16 %v1790
        %v2387 = vpack.c.b16 %v2386, %v2385
        %v2389 = vsel %vm2309, %v2384, 0
        %v2392 = vsel %vm2309, %v2387, 0
        %2394 = vmatpush.bf16.xpose.msra.mxu0 0
        %2395 = vmatpush.bf16.xpose.msra.mxu0 0
        %2396 = vmatpush.bf16.xpose.msra.mxu0 0
        %2397 = vmatpush.bf16.xpose.msra.mxu0 0
        %2398 = vmatpush.bf16.xpose.msra.mxu0 0
        %2399 = vmatpush.bf16.xpose.msra.mxu0 0
        %2400 = vmatpush.bf16.xpose.msra.mxu0 0
        %2401 = vmatpush.bf16.xpose.msra.mxu0 %v2392
        %2402 = vmatmul.bf16.gmra.mxu0 %v2389
        %v2403 = vpop.f32.mrf.mxu0
        %v2404 = vadd.f32 0.0, %v2403
        %v2405 = vpop.f32.mrf.mxu0
        %v2406 = vadd.f32 0.0, %v2405
        %2407 = vdwg.mxu0
        %v2408 = vunpack.c.l.b16 %v1305
        %v2409 = vunpack.c.l.b16 %v1317
        %v2410 = vpack.c.b16 %v2409, %v2408
        %v2411 = vunpack.c.l.b16 %v1793
        %v2412 = vunpack.c.l.b16 %v1805
        %v2413 = vpack.c.b16 %v2412, %v2411
        %v2415 = vsel %vm2309, %v2410, 0
        %v2418 = vsel %vm2309, %v2413, 0
        %2420 = vmatpush.bf16.xpose.msra.mxu0 0
        %2421 = vmatpush.bf16.xpose.msra.mxu0 0
        %2422 = vmatpush.bf16.xpose.msra.mxu0 0
        %2423 = vmatpush.bf16.xpose.msra.mxu0 0
        %2424 = vmatpush.bf16.xpose.msra.mxu0 0
        %2425 = vmatpush.bf16.xpose.msra.mxu0 0
        %2426 = vmatpush.bf16.xpose.msra.mxu0 0
        %2427 = vmatpush.bf16.xpose.msra.mxu0 %v2418
        %2428 = vmatmul.bf16.gmra.mxu0 %v2415
        %v2429 = vpop.f32.mrf.mxu0
        %v2430 = vadd.f32 0.0, %v2429
        %v2431 = vpop.f32.mrf.mxu0
        %v2432 = vadd.f32 0.0, %v2431
        %2433 = vdwg.mxu0
        %v2434 = vunpack.c.l.b16 %v1308
        %v2435 = vunpack.c.l.b16 %v1320
        %v2436 = vpack.c.b16 %v2435, %v2434
        %v2437 = vunpack.c.l.b16 %v1796
        %v2438 = vunpack.c.l.b16 %v1808
        %v2439 = vpack.c.b16 %v2438, %v2437
        %v2441 = vsel %vm2309, %v2436, 0
        %v2444 = vsel %vm2309, %v2439, 0
        %2446 = vmatpush.bf16.xpose.msra.mxu0 0
        %2447 = vmatpush.bf16.xpose.msra.mxu0 0
        %2448 = vmatpush.bf16.xpose.msra.mxu0 0
        %2449 = vmatpush.bf16.xpose.msra.mxu0 0
        %2450 = vmatpush.bf16.xpose.msra.mxu0 0
        %2451 = vmatpush.bf16.xpose.msra.mxu0 0
        %2452 = vmatpush.bf16.xpose.msra.mxu0 0
        %2453 = vmatpush.bf16.xpose.msra.mxu0 %v2444
        %2454 = vmatmul.bf16.gmra.mxu0 %v2441
        %v2455 = vpop.f32.mrf.mxu0
        %v2456 = vadd.f32 0.0, %v2455
        %v2457 = vpop.f32.mrf.mxu0
        %v2458 = vadd.f32 0.0, %v2457
        %2459 = vdwg.mxu0
        %v2460 = vunpack.c.l.b16 %v1311
        %v2461 = vunpack.c.l.b16 %v1323
        %v2462 = vpack.c.b16 %v2461, %v2460
        %v2463 = vunpack.c.l.b16 %v1799
        %v2464 = vunpack.c.l.b16 %v1811
        %v2465 = vpack.c.b16 %v2464, %v2463
        %v2467 = vsel %vm2309, %v2462, 0
        %v2470 = vsel %vm2309, %v2465, 0
        %2472 = vmatpush.bf16.xpose.msra.mxu0 0
        %2473 = vmatpush.bf16.xpose.msra.mxu0 0
        %2474 = vmatpush.bf16.xpose.msra.mxu0 0
        %2475 = vmatpush.bf16.xpose.msra.mxu0 0
        %2476 = vmatpush.bf16.xpose.msra.mxu0 0
        %2477 = vmatpush.bf16.xpose.msra.mxu0 0
        %2478 = vmatpush.bf16.xpose.msra.mxu0 0
        %2479 = vmatpush.bf16.xpose.msra.mxu0 %v2470
        %2480 = vmatmul.bf16.gmra.mxu0 %v2467
        %v2481 = vpop.f32.mrf.mxu0
        %v2482 = vadd.f32 0.0, %v2481
        %v2483 = vpop.f32.mrf.mxu0
        %v2484 = vadd.f32 0.0, %v2483
        %2485 = vdwg.mxu0
        %v2486 = vunpack.c.l.b16 %v1314
        %v2487 = vunpack.c.l.b16 %v1326
        %v2488 = vpack.c.b16 %v2487, %v2486
        %v2489 = vunpack.c.l.b16 %v1802
        %v2490 = vunpack.c.l.b16 %v1814
        %v2491 = vpack.c.b16 %v2490, %v2489
        %v2493 = vsel %vm2309, %v2488, 0
        %v2496 = vsel %vm2309, %v2491, 0
        %2498 = vmatpush.bf16.xpose.msra.mxu0 0
        %2499 = vmatpush.bf16.xpose.msra.mxu0 0
        %2500 = vmatpush.bf16.xpose.msra.mxu0 0
        %2501 = vmatpush.bf16.xpose.msra.mxu0 0
        %2502 = vmatpush.bf16.xpose.msra.mxu0 0
        %2503 = vmatpush.bf16.xpose.msra.mxu0 0
        %2504 = vmatpush.bf16.xpose.msra.mxu0 0
        %2505 = vmatpush.bf16.xpose.msra.mxu0 %v2496
        %2506 = vmatmul.bf16.gmra.mxu0 %v2493
        %v2507 = vpop.f32.mrf.mxu0
        %v2508 = vadd.f32 0.0, %v2507
        %v2509 = vpop.f32.mrf.mxu0
        %v2510 = vadd.f32 0.0, %v2509
        %2511 = vdwg.mxu0
        %v2512 = vmul.f32 %v2326, 0.17677669
        %v2513 = vmul.f32 %v2328, 0.17677669
        %v2514 = vmul.f32 %v2352, 0.17677669
        %v2515 = vmul.f32 %v2354, 0.17677669
        %v2516 = vmul.f32 %v2378, 0.17677669
        %v2517 = vmul.f32 %v2380, 0.17677669
        %v2518 = vmul.f32 %v2404, 0.17677669
        %v2519 = vmul.f32 %v2406, 0.17677669
        %v2520 = vmul.f32 %v2430, 0.17677669
        %v2521 = vmul.f32 %v2432, 0.17677669
        %v2522 = vmul.f32 %v2456, 0.17677669
        %v2523 = vmul.f32 %v2458, 0.17677669
        %v2524 = vmul.f32 %v2482, 0.17677669
        %v2525 = vmul.f32 %v2484, 0.17677669
        %v2526 = vmul.f32 %v2508, 0.17677669
        %v2527 = vmul.f32 %v2510, 0.17677669
        %v2528 = vadd.f32 %v2512, %v836
        %v2529 = vadd.f32 %v2513, %v837
        %v2530 = vadd.f32 %v2514, %v836
        %v2531 = vadd.f32 %v2515, %v837
        %v2532 = vadd.f32 %v2516, %v836
        %v2533 = vadd.f32 %v2517, %v837
        %v2534 = vadd.f32 %v2518, %v836
        %v2535 = vadd.f32 %v2519, %v837
        %v2536 = vadd.f32 %v2520, %v836
        %v2537 = vadd.f32 %v2521, %v837
        %v2538 = vadd.f32 %v2522, %v836
        %v2539 = vadd.f32 %v2523, %v837
        %v2540 = vadd.f32 %v2524, %v836
        %v2541 = vadd.f32 %v2525, %v837
        %v2542 = vadd.f32 %v2526, %v836
        %v2543 = vadd.f32 %v2527, %v837
        %vm2544 = vcmask 130048
        %v2545 = vsel %vm2544, %v2528, -inf
        %2546 = vmax.xlane.f32.xlu0 %v2545
        %v2547 = vpop.xlane.xlu0 %2546
        %v2548 = vsel %vm2544, %v2529, -inf
        %2549 = vmax.xlane.f32.xlu0 %v2548
        %v2550 = vpop.xlane.xlu0 %2549
        %v2551 = vsel %vm2544, %v2530, -inf
        %2552 = vmax.xlane.f32.xlu0 %v2551
        %v2553 = vpop.xlane.xlu0 %2552
        %v2554 = vsel %vm2544, %v2531, -inf
        %2555 = vmax.xlane.f32.xlu0 %v2554
        %v2556 = vpop.xlane.xlu0 %2555
        %v2557 = vsel %vm2544, %v2532, -inf
        %2558 = vmax.xlane.f32.xlu0 %v2557
        %v2559 = vpop.xlane.xlu0 %2558
        %v2560 = vsel %vm2544, %v2533, -inf
        %2561 = vmax.xlane.f32.xlu0 %v2560
        %v2562 = vpop.xlane.xlu0 %2561
        %v2563 = vsel %vm2544, %v2534, -inf
        %2564 = vmax.xlane.f32.xlu0 %v2563
        %v2565 = vpop.xlane.xlu0 %2564
        %v2566 = vsel %vm2544, %v2535, -inf
        %2567 = vmax.xlane.f32.xlu0 %v2566
        %v2568 = vpop.xlane.xlu0 %2567
        %v2569 = vsel %vm2544, %v2536, -inf
        %2570 = vmax.xlane.f32.xlu0 %v2569
        %v2571 = vpop.xlane.xlu0 %2570
        %v2572 = vsel %vm2544, %v2537, -inf
        %2573 = vmax.xlane.f32.xlu0 %v2572
        %v2574 = vpop.xlane.xlu0 %2573
        %v2575 = vsel %vm2544, %v2538, -inf
        %2576 = vmax.xlane.f32.xlu0 %v2575
        %v2577 = vpop.xlane.xlu0 %2576
        %v2578 = vsel %vm2544, %v2539, -inf
        %2579 = vmax.xlane.f32.xlu0 %v2578
        %v2580 = vpop.xlane.xlu0 %2579
        %v2581 = vsel %vm2544, %v2540, -inf
        %2582 = vmax.xlane.f32.xlu0 %v2581
        %v2583 = vpop.xlane.xlu0 %2582
        %v2584 = vsel %vm2544, %v2541, -inf
        %2585 = vmax.xlane.f32.xlu0 %v2584
        %v2586 = vpop.xlane.xlu0 %2585
        %v2587 = vsel %vm2544, %v2542, -inf
        %2588 = vmax.xlane.f32.xlu0 %v2587
        %v2589 = vpop.xlane.xlu0 %2588
        %v2590 = vsel %vm2544, %v2543, -inf
        %2591 = vmax.xlane.f32.xlu0 %v2590
        %v2592 = vpop.xlane.xlu0 %2591
        %v2593 = vsub.f32 %v2528, %v2547
        %v2594 = vsub.f32 %v2529, %v2550
        %v2595 = vsub.f32 %v2530, %v2553
        %v2596 = vsub.f32 %v2531, %v2556
        %v2597 = vsub.f32 %v2532, %v2559
        %v2598 = vsub.f32 %v2533, %v2562
        %v2599 = vsub.f32 %v2534, %v2565
        %v2600 = vsub.f32 %v2535, %v2568
        %v2601 = vsub.f32 %v2536, %v2571
        %v2602 = vsub.f32 %v2537, %v2574
        %v2603 = vsub.f32 %v2538, %v2577
        %v2604 = vsub.f32 %v2539, %v2580
        %v2605 = vsub.f32 %v2540, %v2583
        %v2606 = vsub.f32 %v2541, %v2586
        %v2607 = vsub.f32 %v2542, %v2589
        %v2608 = vsub.f32 %v2543, %v2592
        %v2609 = vmul.f32 %v2593, 1.442695
        %v2610 = vpow.pop %v2609
        %v2611 = vmul.f32 %v2594, 1.442695
        %v2612 = vpow.pop %v2611
        %v2613 = vmul.f32 %v2595, 1.442695
        %v2614 = vpow.pop %v2613
        %v2615 = vmul.f32 %v2596, 1.442695
        %v2616 = vpow.pop %v2615
        %v2617 = vmul.f32 %v2597, 1.442695
        %v2618 = vpow.pop %v2617
        %v2619 = vmul.f32 %v2598, 1.442695
        %v2620 = vpow.pop %v2619
        %v2621 = vmul.f32 %v2599, 1.442695
        %v2622 = vpow.pop %v2621
        %v2623 = vmul.f32 %v2600, 1.442695
        %v2624 = vpow.pop %v2623
        %v2625 = vmul.f32 %v2601, 1.442695
        %v2626 = vpow.pop %v2625
        %v2627 = vmul.f32 %v2602, 1.442695
        %v2628 = vpow.pop %v2627
        %v2629 = vmul.f32 %v2603, 1.442695
        %v2630 = vpow.pop %v2629
        %v2631 = vmul.f32 %v2604, 1.442695
        %v2632 = vpow.pop %v2631
        %v2633 = vmul.f32 %v2605, 1.442695
        %v2634 = vpow.pop %v2633
        %v2635 = vmul.f32 %v2606, 1.442695
        %v2636 = vpow.pop %v2635
        %v2637 = vmul.f32 %v2607, 1.442695
        %v2638 = vpow.pop %v2637
        %v2639 = vmul.f32 %v2608, 1.442695
        %v2640 = vpow.pop %v2639
        %v2641 = vsel %vm2544, %v2610, 0.0
        %2642 = vadd.xlane.f32.xlu0 %v2641
        %v2643 = vpop.xlane.xlu0 %2642
        %v2644 = vsel %vm2544, %v2612, 0.0
        %2645 = vadd.xlane.f32.xlu0 %v2644
        %v2646 = vpop.xlane.xlu0 %2645
        %v2647 = vsel %vm2544, %v2614, 0.0
        %2648 = vadd.xlane.f32.xlu0 %v2647
        %v2649 = vpop.xlane.xlu0 %2648
        %v2650 = vsel %vm2544, %v2616, 0.0
        %2651 = vadd.xlane.f32.xlu0 %v2650
        %v2652 = vpop.xlane.xlu0 %2651
        %v2653 = vsel %vm2544, %v2618, 0.0
        %2654 = vadd.xlane.f32.xlu0 %v2653
        %v2655 = vpop.xlane.xlu0 %2654
        %v2656 = vsel %vm2544, %v2620, 0.0
        %2657 = vadd.xlane.f32.xlu0 %v2656
        %v2658 = vpop.xlane.xlu0 %2657
        %v2659 = vsel %vm2544, %v2622, 0.0
        %2660 = vadd.xlane.f32.xlu0 %v2659
        %v2661 = vpop.xlane.xlu0 %2660
        %v2662 = vsel %vm2544, %v2624, 0.0
        %2663 = vadd.xlane.f32.xlu0 %v2662
        %v2664 = vpop.xlane.xlu0 %2663
        %v2665 = vsel %vm2544, %v2626, 0.0
        %2666 = vadd.xlane.f32.xlu0 %v2665
        %v2667 = vpop.xlane.xlu0 %2666
        %v2668 = vsel %vm2544, %v2628, 0.0
        %2669 = vadd.xlane.f32.xlu0 %v2668
        %v2670 = vpop.xlane.xlu0 %2669
        %v2671 = vsel %vm2544, %v2630, 0.0
        %2672 = vadd.xlane.f32.xlu0 %v2671
        %v2673 = vpop.xlane.xlu0 %2672
        %v2674 = vsel %vm2544, %v2632, 0.0
        %2675 = vadd.xlane.f32.xlu0 %v2674
        %v2676 = vpop.xlane.xlu0 %2675
        %v2677 = vsel %vm2544, %v2634, 0.0
        %2678 = vadd.xlane.f32.xlu0 %v2677
        %v2679 = vpop.xlane.xlu0 %2678
        %v2680 = vsel %vm2544, %v2636, 0.0
        %2681 = vadd.xlane.f32.xlu0 %v2680
        %v2682 = vpop.xlane.xlu0 %2681
        %v2683 = vsel %vm2544, %v2638, 0.0
        %2684 = vadd.xlane.f32.xlu0 %v2683
        %v2685 = vpop.xlane.xlu0 %2684
        %v2686 = vsel %vm2544, %v2640, 0.0
        %2687 = vadd.xlane.f32.xlu0 %v2686
        %v2688 = vpop.xlane.xlu0 %2687
        %v2689 = vrcp.pop %v2643
        %v2690 = vrcp.pop %v2646
        %v2691 = vrcp.pop %v2649
        %v2692 = vrcp.pop %v2652
        %v2693 = vrcp.pop %v2655
        %v2694 = vrcp.pop %v2658
        %v2695 = vrcp.pop %v2661
        %v2696 = vrcp.pop %v2664
        %v2697 = vrcp.pop %v2667
        %v2698 = vrcp.pop %v2670
        %v2699 = vrcp.pop %v2673
        %v2700 = vrcp.pop %v2676
        %v2701 = vrcp.pop %v2679
        %v2702 = vrcp.pop %v2682
        %v2703 = vrcp.pop %v2685
        %v2704 = vrcp.pop %v2688
        %v2705 = vmul.f32 %v2610, %v2689
        %v2706 = vmul.f32 %v2612, %v2690
        %v2707 = vmul.f32 %v2614, %v2691
        %v2708 = vmul.f32 %v2616, %v2692
        %v2709 = vmul.f32 %v2618, %v2693
        %v2710 = vmul.f32 %v2620, %v2694
        %v2711 = vmul.f32 %v2622, %v2695
        %v2712 = vmul.f32 %v2624, %v2696
        %v2713 = vmul.f32 %v2626, %v2697
        %v2714 = vmul.f32 %v2628, %v2698
        %v2715 = vmul.f32 %v2630, %v2699
        %v2716 = vmul.f32 %v2632, %v2700
        %v2717 = vmul.f32 %v2634, %v2701
        %v2718 = vmul.f32 %v2636, %v2702
        %v2719 = vmul.f32 %v2638, %v2703
        %v2720 = vmul.f32 %v2640, %v2704
        %v2721 = vpack.c.bf16 %v2705, %v2705
        %v2722 = vpack.c.bf16 %v2706, %v2706
        %v2723 = vpack.c.bf16 %v2707, %v2707
        %v2724 = vpack.c.bf16 %v2708, %v2708
        %v2725 = vpack.c.bf16 %v2709, %v2709
        %v2726 = vpack.c.bf16 %v2710, %v2710
        %v2727 = vpack.c.bf16 %v2711, %v2711
        %v2728 = vpack.c.bf16 %v2712, %v2712
        %v2729 = vpack.c.bf16 %v2713, %v2713
        %v2730 = vpack.c.bf16 %v2714, %v2714
        %v2731 = vpack.c.bf16 %v2715, %v2715
        %v2732 = vpack.c.bf16 %v2716, %v2716
        %v2733 = vpack.c.bf16 %v2717, %v2717
        %v2734 = vpack.c.bf16 %v2718, %v2718
        %v2735 = vpack.c.bf16 %v2719, %v2719
        %v2736 = vpack.c.bf16 %v2720, %v2720
        %v2739 = vunpack.c.l.b16 %v2721
        %v2740 = vunpack.c.l.b16 %v2722
        %v2741 = vpack.c.b16 %v2740, %v2739
        %v2742 = vunpack.c.l.b16 %v2257
        %v2743 = vunpack.c.l.b16 %v2269
        %v2744 = vpack.c.b16 %v2743, %v2742
        %v2747 = vsel %vm2544, %v2741, 0
        %2749 = vmatpush.bf16.msra.mxu0 0
        %2750 = vmatpush.bf16.msra.mxu0 0
        %2751 = vmatpush.bf16.msra.mxu0 0
        %2752 = vmatpush.bf16.msra.mxu0 0
        %2753 = vmatpush.bf16.msra.mxu0 0
        %2754 = vmatpush.bf16.msra.mxu0 0
        %2755 = vmatpush.bf16.msra.mxu0 0
        %2756 = vmatpush.bf16.msra.mxu0 %v2744
        %2757 = vmatmul.bf16.gmra.mxu0 %v2747
        %v2758 = vpop.f32.mrf.mxu0
        %v2759 = vadd.f32 0.0, %v2758
        %v2760 = vpop.f32.mrf.mxu0
        %v2761 = vadd.f32 0.0, %v2760
        %2762 = vdwg.mxu0
        %v2765 = vunpack.c.l.b16 %v2723
        %v2766 = vunpack.c.l.b16 %v2724
        %v2767 = vpack.c.b16 %v2766, %v2765
        %v2768 = vunpack.c.l.b16 %v2260
        %v2769 = vunpack.c.l.b16 %v2272
        %v2770 = vpack.c.b16 %v2769, %v2768
        %v2773 = vsel %vm2544, %v2767, 0
        %2775 = vmatpush.bf16.msra.mxu0 0
        %2776 = vmatpush.bf16.msra.mxu0 0
        %2777 = vmatpush.bf16.msra.mxu0 0
        %2778 = vmatpush.bf16.msra.mxu0 0
        %2779 = vmatpush.bf16.msra.mxu0 0
        %2780 = vmatpush.bf16.msra.mxu0 0
        %2781 = vmatpush.bf16.msra.mxu0 0
        %2782 = vmatpush.bf16.msra.mxu0 %v2770
        %2783 = vmatmul.bf16.gmra.mxu0 %v2773
        %v2784 = vpop.f32.mrf.mxu0
        %v2785 = vadd.f32 0.0, %v2784
        %v2786 = vpop.f32.mrf.mxu0
        %v2787 = vadd.f32 0.0, %v2786
        %2788 = vdwg.mxu0
        %v2791 = vunpack.c.l.b16 %v2725
        %v2792 = vunpack.c.l.b16 %v2726
        %v2793 = vpack.c.b16 %v2792, %v2791
        %v2794 = vunpack.c.l.b16 %v2263
        %v2795 = vunpack.c.l.b16 %v2275
        %v2796 = vpack.c.b16 %v2795, %v2794
        %v2799 = vsel %vm2544, %v2793, 0
        %2801 = vmatpush.bf16.msra.mxu0 0
        %2802 = vmatpush.bf16.msra.mxu0 0
        %2803 = vmatpush.bf16.msra.mxu0 0
        %2804 = vmatpush.bf16.msra.mxu0 0
        %2805 = vmatpush.bf16.msra.mxu0 0
        %2806 = vmatpush.bf16.msra.mxu0 0
        %2807 = vmatpush.bf16.msra.mxu0 0
        %2808 = vmatpush.bf16.msra.mxu0 %v2796
        %2809 = vmatmul.bf16.gmra.mxu0 %v2799
        %v2810 = vpop.f32.mrf.mxu0
        %v2811 = vadd.f32 0.0, %v2810
        %v2812 = vpop.f32.mrf.mxu0
        %v2813 = vadd.f32 0.0, %v2812
        %2814 = vdwg.mxu0
        %v2817 = vunpack.c.l.b16 %v2727
        %v2818 = vunpack.c.l.b16 %v2728
        %v2819 = vpack.c.b16 %v2818, %v2817
        %v2820 = vunpack.c.l.b16 %v2266
        %v2821 = vunpack.c.l.b16 %v2278
        %v2822 = vpack.c.b16 %v2821, %v2820
        %v2825 = vsel %vm2544, %v2819, 0
        %2827 = vmatpush.bf16.msra.mxu0 0
        %2828 = vmatpush.bf16.msra.mxu0 0
        %2829 = vmatpush.bf16.msra.mxu0 0
        %2830 = vmatpush.bf16.msra.mxu0 0
        %2831 = vmatpush.bf16.msra.mxu0 0
        %2832 = vmatpush.bf16.msra.mxu0 0
        %2833 = vmatpush.bf16.msra.mxu0 0
        %2834 = vmatpush.bf16.msra.mxu0 %v2822
        %2835 = vmatmul.bf16.gmra.mxu0 %v2825
        %v2836 = vpop.f32.mrf.mxu0
        %v2837 = vadd.f32 0.0, %v2836
        %v2838 = vpop.f32.mrf.mxu0
        %v2839 = vadd.f32 0.0, %v2838
        %2840 = vdwg.mxu0
        %v2843 = vunpack.c.l.b16 %v2729
        %v2844 = vunpack.c.l.b16 %v2730
        %v2845 = vpack.c.b16 %v2844, %v2843
        %v2846 = vunpack.c.l.b16 %v2281
        %v2847 = vunpack.c.l.b16 %v2293
        %v2848 = vpack.c.b16 %v2847, %v2846
        %v2851 = vsel %vm2544, %v2845, 0
        %2853 = vmatpush.bf16.msra.mxu0 0
        %2854 = vmatpush.bf16.msra.mxu0 0
        %2855 = vmatpush.bf16.msra.mxu0 0
        %2856 = vmatpush.bf16.msra.mxu0 0
        %2857 = vmatpush.bf16.msra.mxu0 0
        %2858 = vmatpush.bf16.msra.mxu0 0
        %2859 = vmatpush.bf16.msra.mxu0 0
        %2860 = vmatpush.bf16.msra.mxu0 %v2848
        %2861 = vmatmul.bf16.gmra.mxu0 %v2851
        %v2862 = vpop.f32.mrf.mxu0
        %v2863 = vadd.f32 0.0, %v2862
        %v2864 = vpop.f32.mrf.mxu0
        %v2865 = vadd.f32 0.0, %v2864
        %2866 = vdwg.mxu0
        %v2869 = vunpack.c.l.b16 %v2731
        %v2870 = vunpack.c.l.b16 %v2732
        %v2871 = vpack.c.b16 %v2870, %v2869
        %v2872 = vunpack.c.l.b16 %v2284
        %v2873 = vunpack.c.l.b16 %v2296
        %v2874 = vpack.c.b16 %v2873, %v2872
        %v2877 = vsel %vm2544, %v2871, 0
        %2879 = vmatpush.bf16.msra.mxu0 0
        %2880 = vmatpush.bf16.msra.mxu0 0
        %2881 = vmatpush.bf16.msra.mxu0 0
        %2882 = vmatpush.bf16.msra.mxu0 0
        %2883 = vmatpush.bf16.msra.mxu0 0
        %2884 = vmatpush.bf16.msra.mxu0 0
        %2885 = vmatpush.bf16.msra.mxu0 0
        %2886 = vmatpush.bf16.msra.mxu0 %v2874
        %2887 = vmatmul.bf16.gmra.mxu0 %v2877
        %v2888 = vpop.f32.mrf.mxu0
        %v2889 = vadd.f32 0.0, %v2888
        %v2890 = vpop.f32.mrf.mxu0
        %v2891 = vadd.f32 0.0, %v2890
        %2892 = vdwg.mxu0
        %v2895 = vunpack.c.l.b16 %v2733
        %v2896 = vunpack.c.l.b16 %v2734
        %v2897 = vpack.c.b16 %v2896, %v2895
        %v2898 = vunpack.c.l.b16 %v2287
        %v2899 = vunpack.c.l.b16 %v2299
        %v2900 = vpack.c.b16 %v2899, %v2898
        %v2903 = vsel %vm2544, %v2897, 0
        %2905 = vmatpush.bf16.msra.mxu0 0
        %2906 = vmatpush.bf16.msra.mxu0 0
        %2907 = vmatpush.bf16.msra.mxu0 0
        %2908 = vmatpush.bf16.msra.mxu0 0
        %2909 = vmatpush.bf16.msra.mxu0 0
        %2910 = vmatpush.bf16.msra.mxu0 0
        %2911 = vmatpush.bf16.msra.mxu0 0
        %2912 = vmatpush.bf16.msra.mxu0 %v2900
        %2913 = vmatmul.bf16.gmra.mxu0 %v2903
        %v2914 = vpop.f32.mrf.mxu0
        %v2915 = vadd.f32 0.0, %v2914
        %v2916 = vpop.f32.mrf.mxu0
        %v2917 = vadd.f32 0.0, %v2916
        %2918 = vdwg.mxu0
        %v2921 = vunpack.c.l.b16 %v2735
        %v2922 = vunpack.c.l.b16 %v2736
        %v2923 = vpack.c.b16 %v2922, %v2921
        %v2924 = vunpack.c.l.b16 %v2290
        %v2925 = vunpack.c.l.b16 %v2302
        %v2926 = vpack.c.b16 %v2925, %v2924
        %v2929 = vsel %vm2544, %v2923, 0
        %2931 = vmatpush.bf16.msra.mxu0 0
        %2932 = vmatpush.bf16.msra.mxu0 0
        %2933 = vmatpush.bf16.msra.mxu0 0
        %2934 = vmatpush.bf16.msra.mxu0 0
        %2935 = vmatpush.bf16.msra.mxu0 0
        %2936 = vmatpush.bf16.msra.mxu0 0
        %2937 = vmatpush.bf16.msra.mxu0 0
        %2938 = vmatpush.bf16.msra.mxu0 %v2926
        %2939 = vmatmul.bf16.gmra.mxu0 %v2929
        %v2940 = vpop.f32.mrf.mxu0
        %v2941 = vadd.f32 0.0, %v2940
        %v2942 = vpop.f32.mrf.mxu0
        %v2943 = vadd.f32 0.0, %v2942
        %2944 = vdwg.mxu0
        %v2945 = vpack.c.bf16 %v2759, %v2759
        %v2946 = vpack.c.bf16 %v2761, %v2761
        %v2947 = vpack.c.bf16 %v2785, %v2785
        %v2948 = vpack.c.bf16 %v2787, %v2787
        %v2949 = vpack.c.bf16 %v2811, %v2811
        %v2950 = vpack.c.bf16 %v2813, %v2813
        %v2951 = vpack.c.bf16 %v2837, %v2837
        %v2952 = vpack.c.bf16 %v2839, %v2839
        %v2953 = vpack.c.bf16 %v2863, %v2863
        %v2954 = vpack.c.bf16 %v2865, %v2865
        %v2955 = vpack.c.bf16 %v2889, %v2889
        %v2956 = vpack.c.bf16 %v2891, %v2891
        %v2957 = vpack.c.bf16 %v2915, %v2915
        %v2958 = vpack.c.bf16 %v2917, %v2917
        %v2959 = vpack.c.bf16 %v2941, %v2941
        %v2960 = vpack.c.bf16 %v2943, %v2943
        %v2963 = vpack.i.b16 %v2947, %v2945
        %v2964 = vshrl.u32 %v2945, 16
        %v2965 = vshrl.u32 %v2947, 16
        %v2966 = vpack.i.b16 %v2965, %v2964
        %v2969 = vpack.i.b16 %v2951, %v2949
        %v2970 = vshrl.u32 %v2949, 16
        %v2971 = vshrl.u32 %v2951, 16
        %v2972 = vpack.i.b16 %v2971, %v2970
        %v2975 = vpack.i.b16 %v2948, %v2946
        %v2976 = vshrl.u32 %v2946, 16
        %v2977 = vshrl.u32 %v2948, 16
        %v2978 = vpack.i.b16 %v2977, %v2976
        %v2981 = vpack.i.b16 %v2952, %v2950
        %v2982 = vshrl.u32 %v2950, 16
        %v2983 = vshrl.u32 %v2952, 16
        %v2984 = vpack.i.b16 %v2983, %v2982
        %v2987 = vpack.i.b16 %v2955, %v2953
        %v2988 = vshrl.u32 %v2953, 16
        %v2989 = vshrl.u32 %v2955, 16
        %v2990 = vpack.i.b16 %v2989, %v2988
        %v2993 = vpack.i.b16 %v2959, %v2957
        %v2994 = vshrl.u32 %v2957, 16
        %v2995 = vshrl.u32 %v2959, 16
        %v2996 = vpack.i.b16 %v2995, %v2994
        %v2999 = vpack.i.b16 %v2956, %v2954
        %v3000 = vshrl.u32 %v2954, 16
        %v3001 = vshrl.u32 %v2956, 16
        %v3002 = vpack.i.b16 %v3001, %v3000
        %v3005 = vpack.i.b16 %v2960, %v2958
        %v3006 = vshrl.u32 %v2958, 16
        %v3007 = vshrl.u32 %v2960, 16
        %v3008 = vpack.i.b16 %v3007, %v3006
        %v3011 = vunpack.c.l.s4 1983009808
        %v3012 = vunpack.c.0.s8 %v3011
        %v3013 = vperm.slane %v2963, %v3012
        %v3016 = vunpack.c.l.s4 1983009808
        %v3017 = vunpack.c.0.s8 %v3016
        %v3018 = vperm.slane %v2969, %v3017
        %v3019 = vrot.slane %v3018, 4
        %v3020 = vsel %vm929, %v3019, %v3013
        %v3021 = vrot.slane %v3013, 4
        %v3022 = vsel %vm929, %v3018, %v3021
        %v3024 = vunpack.c.l.s4 1934713408
        %v3025 = vunpack.c.0.s8 %v3024
        %v3026 = vperm.slane %v3020, %v3025
        %v3028 = vunpack.c.l.s4 1934713408
        %v3029 = vunpack.c.0.s8 %v3028
        %v3030 = vperm.slane %v3022, %v3029
        %v3031 = vrot.slane %v3026, 4
        %v3032 = vsel %vm929, 0, %v3031
        %v3033 = vrot.slane %v3030, 4
        %v3034 = vsel %vm929, 0, %v3033
        %v3037 = vunpack.c.l.s4 1983009808
        %v3038 = vunpack.c.0.s8 %v3037
        %v3039 = vperm.slane %v2966, %v3038
        %v3042 = vunpack.c.l.s4 1983009808
        %v3043 = vunpack.c.0.s8 %v3042
        %v3044 = vperm.slane %v2972, %v3043
        %v3045 = vrot.slane %v3044, 4
        %v3046 = vsel %vm929, %v3045, %v3039
        %v3047 = vrot.slane %v3039, 4
        %v3048 = vsel %vm929, %v3044, %v3047
        %v3050 = vunpack.c.l.s4 1934713408
        %v3051 = vunpack.c.0.s8 %v3050
        %v3052 = vperm.slane %v3046, %v3051
        %v3054 = vunpack.c.l.s4 1934713408
        %v3055 = vunpack.c.0.s8 %v3054
        %v3056 = vperm.slane %v3048, %v3055
        %v3057 = vrot.slane %v3052, 4
        %v3058 = vsel %vm929, 0, %v3057
        %v3059 = vrot.slane %v3056, 4
        %v3060 = vsel %vm929, 0, %v3059
        %v3063 = vunpack.c.l.s4 1983009808
        %v3064 = vunpack.c.0.s8 %v3063
        %v3065 = vperm.slane %v2975, %v3064
        %v3068 = vunpack.c.l.s4 1983009808
        %v3069 = vunpack.c.0.s8 %v3068
        %v3070 = vperm.slane %v2981, %v3069
        %v3071 = vrot.slane %v3070, 4
        %v3072 = vsel %vm929, %v3071, %v3065
        %v3073 = vrot.slane %v3065, 4
        %v3074 = vsel %vm929, %v3070, %v3073
        %v3076 = vunpack.c.l.s4 1934713408
        %v3077 = vunpack.c.0.s8 %v3076
        %v3078 = vperm.slane %v3072, %v3077
        %v3080 = vunpack.c.l.s4 1934713408
        %v3081 = vunpack.c.0.s8 %v3080
        %v3082 = vperm.slane %v3074, %v3081
        %v3083 = vrot.slane %v3078, 4
        %v3084 = vsel %vm929, 0, %v3083
        %v3085 = vrot.slane %v3082, 4
        %v3086 = vsel %vm929, 0, %v3085
        %v3089 = vunpack.c.l.s4 1983009808
        %v3090 = vunpack.c.0.s8 %v3089
        %v3091 = vperm.slane %v2978, %v3090
        %v3094 = vunpack.c.l.s4 1983009808
        %v3095 = vunpack.c.0.s8 %v3094
        %v3096 = vperm.slane %v2984, %v3095
        %v3097 = vrot.slane %v3096, 4
        %v3098 = vsel %vm929, %v3097, %v3091
        %v3099 = vrot.slane %v3091, 4
        %v3100 = vsel %vm929, %v3096, %v3099
        %v3102 = vunpack.c.l.s4 1934713408
        %v3103 = vunpack.c.0.s8 %v3102
        %v3104 = vperm.slane %v3098, %v3103
        %v3106 = vunpack.c.l.s4 1934713408
        %v3107 = vunpack.c.0.s8 %v3106
        %v3108 = vperm.slane %v3100, %v3107
        %v3109 = vrot.slane %v3104, 4
        %v3110 = vsel %vm929, 0, %v3109
        %v3111 = vrot.slane %v3108, 4
        %v3112 = vsel %vm929, 0, %v3111
        %v3115 = vunpack.c.l.s4 1983009808
        %v3116 = vunpack.c.0.s8 %v3115
        %v3117 = vperm.slane %v2987, %v3116
        %v3120 = vunpack.c.l.s4 1983009808
        %v3121 = vunpack.c.0.s8 %v3120
        %v3122 = vperm.slane %v2993, %v3121
        %v3123 = vrot.slane %v3122, 4
        %v3124 = vsel %vm929, %v3123, %v3117
        %v3125 = vrot.slane %v3117, 4
        %v3126 = vsel %vm929, %v3122, %v3125
        %v3128 = vunpack.c.l.s4 1934713408
        %v3129 = vunpack.c.0.s8 %v3128
        %v3130 = vperm.slane %v3124, %v3129
        %v3132 = vunpack.c.l.s4 1934713408
        %v3133 = vunpack.c.0.s8 %v3132
        %v3134 = vperm.slane %v3126, %v3133
        %v3135 = vrot.slane %v3130, 4
        %v3136 = vsel %vm929, 0, %v3135
        %v3137 = vrot.slane %v3134, 4
        %v3138 = vsel %vm929, 0, %v3137
        %v3141 = vunpack.c.l.s4 1983009808
        %v3142 = vunpack.c.0.s8 %v3141
        %v3143 = vperm.slane %v2990, %v3142
        %v3146 = vunpack.c.l.s4 1983009808
        %v3147 = vunpack.c.0.s8 %v3146
        %v3148 = vperm.slane %v2996, %v3147
        %v3149 = vrot.slane %v3148, 4
        %v3150 = vsel %vm929, %v3149, %v3143
        %v3151 = vrot.slane %v3143, 4
        %v3152 = vsel %vm929, %v3148, %v3151
        %v3154 = vunpack.c.l.s4 1934713408
        %v3155 = vunpack.c.0.s8 %v3154
        %v3156 = vperm.slane %v3150, %v3155
        %v3158 = vunpack.c.l.s4 1934713408
        %v3159 = vunpack.c.0.s8 %v3158
        %v3160 = vperm.slane %v3152, %v3159
        %v3161 = vrot.slane %v3156, 4
        %v3162 = vsel %vm929, 0, %v3161
        %v3163 = vrot.slane %v3160, 4
        %v3164 = vsel %vm929, 0, %v3163
        %v3167 = vunpack.c.l.s4 1983009808
        %v3168 = vunpack.c.0.s8 %v3167
        %v3169 = vperm.slane %v2999, %v3168
        %v3172 = vunpack.c.l.s4 1983009808
        %v3173 = vunpack.c.0.s8 %v3172
        %v3174 = vperm.slane %v3005, %v3173
        %v3175 = vrot.slane %v3174, 4
        %v3176 = vsel %vm929, %v3175, %v3169
        %v3177 = vrot.slane %v3169, 4
        %v3178 = vsel %vm929, %v3174, %v3177
        %v3180 = vunpack.c.l.s4 1934713408
        %v3181 = vunpack.c.0.s8 %v3180
        %v3182 = vperm.slane %v3176, %v3181
        %v3184 = vunpack.c.l.s4 1934713408
        %v3185 = vunpack.c.0.s8 %v3184
        %v3186 = vperm.slane %v3178, %v3185
        %v3187 = vrot.slane %v3182, 4
        %v3188 = vsel %vm929, 0, %v3187
        %v3189 = vrot.slane %v3186, 4
        %v3190 = vsel %vm929, 0, %v3189
        %v3193 = vunpack.c.l.s4 1983009808
        %v3194 = vunpack.c.0.s8 %v3193
        %v3195 = vperm.slane %v3002, %v3194
        %v3198 = vunpack.c.l.s4 1983009808
        %v3199 = vunpack.c.0.s8 %v3198
        %v3200 = vperm.slane %v3008, %v3199
        %v3201 = vrot.slane %v3200, 4
        %v3202 = vsel %vm929, %v3201, %v3195
        %v3203 = vrot.slane %v3195, 4
        %v3204 = vsel %vm929, %v3200, %v3203
        %v3206 = vunpack.c.l.s4 1934713408
        %v3207 = vunpack.c.0.s8 %v3206
        %v3208 = vperm.slane %v3202, %v3207
        %v3210 = vunpack.c.l.s4 1934713408
        %v3211 = vunpack.c.0.s8 %v3210
        %v3212 = vperm.slane %v3204, %v3211
        %v3213 = vrot.slane %v3208, 4
        %v3214 = vsel %vm929, 0, %v3213
        %v3215 = vrot.slane %v3212, 4
        %v3216 = vsel %vm929, 0, %v3215
        %v3217 = vsel %vm929, %v3033, %v3026
        %v3219 = vunpack.c.l.s4 1983009808
        %v3220 = vunpack.c.0.s8 %v3219
        %v3221 = vperm.slane %v3217, %v3220
        %v3222 = vrot.slane %v3034, 4
        %v3223 = vsel %vm929, %v3222, %v3032
        %v3225 = vunpack.c.l.s4 1983009808
        %v3226 = vunpack.c.0.s8 %v3225
        %v3227 = vperm.slane %v3223, %v3226
        %v3228 = vrot.slane %v3227, 4
        %v3229 = vsel %vm929, %v3228, %v3221
        %v3231 = vunpack.c.l.s4 1934713408
        %v3232 = vunpack.c.0.s8 %v3231
        %v3233 = vperm.slane %v3229, %v3232
        %v3234 = vrot.slane %v3233, 4
        %v3235 = vsel %vm929, 0, %v3234
        %v3236 = vsel %vm929, %v3059, %v3052
        %v3238 = vunpack.c.l.s4 1983009808
        %v3239 = vunpack.c.0.s8 %v3238
        %v3240 = vperm.slane %v3236, %v3239
        %v3241 = vrot.slane %v3060, 4
        %v3242 = vsel %vm929, %v3241, %v3058
        %v3244 = vunpack.c.l.s4 1983009808
        %v3245 = vunpack.c.0.s8 %v3244
        %v3246 = vperm.slane %v3242, %v3245
        %v3247 = vrot.slane %v3246, 4
        %v3248 = vsel %vm929, %v3247, %v3240
        %v3250 = vunpack.c.l.s4 1934713408
        %v3251 = vunpack.c.0.s8 %v3250
        %v3252 = vperm.slane %v3248, %v3251
        %v3253 = vrot.slane %v3252, 4
        %v3254 = vsel %vm929, 0, %v3253
        %v3255 = vsel %vm929, %v3085, %v3078
        %v3257 = vunpack.c.l.s4 1983009808
        %v3258 = vunpack.c.0.s8 %v3257
        %v3259 = vperm.slane %v3255, %v3258
        %v3260 = vrot.slane %v3086, 4
        %v3261 = vsel %vm929, %v3260, %v3084
        %v3263 = vunpack.c.l.s4 1983009808
        %v3264 = vunpack.c.0.s8 %v3263
        %v3265 = vperm.slane %v3261, %v3264
        %v3266 = vrot.slane %v3265, 4
        %v3267 = vsel %vm929, %v3266, %v3259
        %v3269 = vunpack.c.l.s4 1934713408
        %v3270 = vunpack.c.0.s8 %v3269
        %v3271 = vperm.slane %v3267, %v3270
        %v3272 = vrot.slane %v3271, 4
        %v3273 = vsel %vm929, 0, %v3272
        %v3274 = vsel %vm929, %v3111, %v3104
        %v3276 = vunpack.c.l.s4 1983009808
        %v3277 = vunpack.c.0.s8 %v3276
        %v3278 = vperm.slane %v3274, %v3277
        %v3279 = vrot.slane %v3112, 4
        %v3280 = vsel %vm929, %v3279, %v3110
        %v3282 = vunpack.c.l.s4 1983009808
        %v3283 = vunpack.c.0.s8 %v3282
        %v3284 = vperm.slane %v3280, %v3283
        %v3285 = vrot.slane %v3284, 4
        %v3286 = vsel %vm929, %v3285, %v3278
        %v3288 = vunpack.c.l.s4 1934713408
        %v3289 = vunpack.c.0.s8 %v3288
        %v3290 = vperm.slane %v3286, %v3289
        %v3291 = vrot.slane %v3290, 4
        %v3292 = vsel %vm929, 0, %v3291
        %v3293 = vsel %vm929, %v3137, %v3130
        %v3295 = vunpack.c.l.s4 1983009808
        %v3296 = vunpack.c.0.s8 %v3295
        %v3297 = vperm.slane %v3293, %v3296
        %v3298 = vrot.slane %v3138, 4
        %v3299 = vsel %vm929, %v3298, %v3136
        %v3301 = vunpack.c.l.s4 1983009808
        %v3302 = vunpack.c.0.s8 %v3301
        %v3303 = vperm.slane %v3299, %v3302
        %v3304 = vrot.slane %v3303, 4
        %v3305 = vsel %vm929, %v3304, %v3297
        %v3307 = vunpack.c.l.s4 1934713408
        %v3308 = vunpack.c.0.s8 %v3307
        %v3309 = vperm.slane %v3305, %v3308
        %v3310 = vrot.slane %v3309, 4
        %v3311 = vsel %vm929, 0, %v3310
        %v3312 = vsel %vm929, %v3163, %v3156
        %v3314 = vunpack.c.l.s4 1983009808
        %v3315 = vunpack.c.0.s8 %v3314
        %v3316 = vperm.slane %v3312, %v3315
        %v3317 = vrot.slane %v3164, 4
        %v3318 = vsel %vm929, %v3317, %v3162
        %v3320 = vunpack.c.l.s4 1983009808
        %v3321 = vunpack.c.0.s8 %v3320
        %v3322 = vperm.slane %v3318, %v3321
        %v3323 = vrot.slane %v3322, 4
        %v3324 = vsel %vm929, %v3323, %v3316
        %v3326 = vunpack.c.l.s4 1934713408
        %v3327 = vunpack.c.0.s8 %v3326
        %v3328 = vperm.slane %v3324, %v3327
        %v3329 = vrot.slane %v3328, 4
        %v3330 = vsel %vm929, 0, %v3329
        %v3331 = vsel %vm929, %v3189, %v3182
        %v3333 = vunpack.c.l.s4 1983009808
        %v3334 = vunpack.c.0.s8 %v3333
        %v3335 = vperm.slane %v3331, %v3334
        %v3336 = vrot.slane %v3190, 4
        %v3337 = vsel %vm929, %v3336, %v3188
        %v3339 = vunpack.c.l.s4 1983009808
        %v3340 = vunpack.c.0.s8 %v3339
        %v3341 = vperm.slane %v3337, %v3340
        %v3342 = vrot.slane %v3341, 4
        %v3343 = vsel %vm929, %v3342, %v3335
        %v3345 = vunpack.c.l.s4 1934713408
        %v3346 = vunpack.c.0.s8 %v3345
        %v3347 = vperm.slane %v3343, %v3346
        %v3348 = vrot.slane %v3347, 4
        %v3349 = vsel %vm929, 0, %v3348
        %v3350 = vsel %vm929, %v3215, %v3208
        %v3352 = vunpack.c.l.s4 1983009808
        %v3353 = vunpack.c.0.s8 %v3352
        %v3354 = vperm.slane %v3350, %v3353
        %v3355 = vrot.slane %v3216, 4
        %v3356 = vsel %vm929, %v3355, %v3214
        %v3358 = vunpack.c.l.s4 1983009808
        %v3359 = vunpack.c.0.s8 %v3358
        %v3360 = vperm.slane %v3356, %v3359
        %v3361 = vrot.slane %v3360, 4
        %v3362 = vsel %vm929, %v3361, %v3354
        %v3364 = vunpack.c.l.s4 1934713408
        %v3365 = vunpack.c.0.s8 %v3364
        %v3366 = vperm.slane %v3362, %v3365
        %v3367 = vrot.slane %v3366, 4
        %v3368 = vsel %vm929, 0, %v3367
        %v3371 = vpack.i.b16 %v3252, %v3233
        %v3372 = vshrl.u32 %v3233, 16
        %v3373 = vshrl.u32 %v3252, 16
        %v3374 = vpack.i.b16 %v3373, %v3372
        %v3377 = vpack.i.b16 %v3254, %v3235
        %v3378 = vshrl.u32 %v3235, 16
        %v3379 = vshrl.u32 %v3254, 16
        %v3380 = vpack.i.b16 %v3379, %v3378
        %v3383 = vpack.i.b16 %v3290, %v3271
        %v3384 = vshrl.u32 %v3271, 16
        %v3385 = vshrl.u32 %v3290, 16
        %v3386 = vpack.i.b16 %v3385, %v3384
        %v3389 = vpack.i.b16 %v3292, %v3273
        %v3390 = vshrl.u32 %v3273, 16
        %v3391 = vshrl.u32 %v3292, 16
        %v3392 = vpack.i.b16 %v3391, %v3390
        %v3395 = vpack.i.b16 %v3328, %v3309
        %v3396 = vshrl.u32 %v3309, 16
        %v3397 = vshrl.u32 %v3328, 16
        %v3398 = vpack.i.b16 %v3397, %v3396
        %v3401 = vpack.i.b16 %v3330, %v3311
        %v3402 = vshrl.u32 %v3311, 16
        %v3403 = vshrl.u32 %v3330, 16
        %v3404 = vpack.i.b16 %v3403, %v3402
        %v3407 = vpack.i.b16 %v3366, %v3347
        %v3408 = vshrl.u32 %v3347, 16
        %v3409 = vshrl.u32 %v3366, 16
        %v3410 = vpack.i.b16 %v3409, %v3408
        %v3413 = vpack.i.b16 %v3368, %v3349
        %v3414 = vshrl.u32 %v3349, 16
        %v3415 = vshrl.u32 %v3368, 16
        %v3416 = vpack.i.b16 %v3415, %v3414
        %v3417 = vunpack.c.l.b16 %v3371
        %v3418 = vunpack.c.l.b16 %v3383
        %v3419 = vunpack.c.l.b16 %v3395
        %v3420 = vunpack.c.l.b16 %v3407
        %v3421 = vpack.c.b16 %v3418, %v3417
        %v3422 = vpack.c.b16 %v3420, %v3419
        %v3423 = vunpack.c.l.b16 %v3374
        %v3424 = vunpack.c.l.b16 %v3386
        %v3425 = vunpack.c.l.b16 %v3398
        %v3426 = vunpack.c.l.b16 %v3410
        %v3427 = vpack.c.b16 %v3424, %v3423
        %v3428 = vpack.c.b16 %v3426, %v3425
        %3429 = vrot.lane.b32.xlu0 %v3427, 32
        %v3430 = vpop.permute.xlu0 %3429
        %3431 = vrot.lane.b32.xlu0 %v3428, 32
        %v3432 = vpop.permute.xlu0 %3431
        %v3433 = vunpack.c.l.b16 %v3377
        %v3434 = vunpack.c.l.b16 %v3389
        %v3435 = vunpack.c.l.b16 %v3401
        %v3436 = vunpack.c.l.b16 %v3413
        %v3437 = vpack.c.b16 %v3434, %v3433
        %v3438 = vpack.c.b16 %v3436, %v3435
        %3439 = vrot.lane.b32.xlu0 %v3437, 64
        %v3440 = vpop.permute.xlu0 %3439
        %3441 = vrot.lane.b32.xlu0 %v3438, 64
        %v3442 = vpop.permute.xlu0 %3441
        %v3443 = vunpack.c.l.b16 %v3380
        %v3444 = vunpack.c.l.b16 %v3392
        %v3445 = vunpack.c.l.b16 %v3404
        %v3446 = vunpack.c.l.b16 %v3416
        %v3447 = vpack.c.b16 %v3444, %v3443
        %v3448 = vpack.c.b16 %v3446, %v3445
        %3449 = vrot.lane.b32.xlu0 %v3447, 96
        %v3450 = vpop.permute.xlu0 %3449
        %3451 = vrot.lane.b32.xlu0 %v3448, 96
        %v3452 = vpop.permute.xlu0 %3451
        %v3455 = vsel %vm2309, %v3421, %v3430
        %v3458 = vsel %vm2309, %v3422, %v3432
        %vm3459 = vcmask 523264
        %v3461 = vsel %vm3459, %v3455, %v3440
        %v3463 = vsel %vm3459, %v3458, %v3442
        %vm3464 = vcmask 785408
        %v3466 = vsel %vm3464, %v3461, %v3450
        %v3469 = vsel %vm3464, %v3463, %v3452
        %v3471 = vld [vmem:[%s506] sm:$0xf]
        %v3472 = vld [vmem:[%s506 + $0x4] sm:$0xf]
        %v3473 = vld [vmem:[%s506 + $0x8] sm:$0xf]
        %v3474 = vld [vmem:[%s506 + $0xc] sm:$0xf]
        %v3475 = vld [vmem:[%s506 + $0x10] sm:$0xf]
        %v3476 = vld [vmem:[%s506 + $0x14] sm:$0xf]
        %v3477 = vld [vmem:[%s506 + $0x18] sm:$0xf]
        %v3478 = vld [vmem:[%s506 + $0x1c] sm:$0xf]
        %v3479 = vld [vmem:[%s506 + $0x20] sm:$0xf]
        %v3480 = vld [vmem:[%s506 + $0x24] sm:$0xf]
        %v3481 = vld [vmem:[%s506 + $0x28] sm:$0xf]
        %v3482 = vld [vmem:[%s506 + $0x2c] sm:$0xf]
        %v3483 = vld [vmem:[%s506 + $0x30] sm:$0xf]
        %v3484 = vld [vmem:[%s506 + $0x34] sm:$0xf]
        %v3485 = vld [vmem:[%s506 + $0x38] sm:$0xf]
        %v3486 = vld [vmem:[%s506 + $0x3c] sm:$0xf]
        %v3503 = vunpack.c.l.b16 %v3471
        %v3504 = vunpack.c.l.b16 %v3472
        %v3505 = vunpack.c.l.b16 %v3473
        %v3506 = vunpack.c.l.b16 %v3474
        %v3507 = vunpack.c.l.b16 %v3475
        %v3508 = vunpack.c.l.b16 %v3476
        %v3509 = vunpack.c.l.b16 %v3477
        %v3510 = vunpack.c.l.b16 %v3478
        %v3511 = vunpack.c.l.b16 %v3479
        %v3512 = vunpack.c.l.b16 %v3480
        %v3513 = vunpack.c.l.b16 %v3481
        %v3514 = vunpack.c.l.b16 %v3482
        %v3515 = vunpack.c.l.b16 %v3483
        %v3516 = vunpack.c.l.b16 %v3484
        %v3517 = vunpack.c.l.b16 %v3485
        %v3518 = vunpack.c.l.b16 %v3486
        %v3519 = vpack.c.b16 %v3504, %v3503
        %v3520 = vpack.c.b16 %v3506, %v3505
        %v3521 = vpack.c.b16 %v3508, %v3507
        %v3522 = vpack.c.b16 %v3510, %v3509
        %v3523 = vpack.c.b16 %v3512, %v3511
        %v3524 = vpack.c.b16 %v3514, %v3513
        %v3525 = vpack.c.b16 %v3516, %v3515
        %v3526 = vpack.c.b16 %v3518, %v3517
        %3535 = vmatpush.bf16.msra.mxu0 %v3526
        %3536 = vmatpush.bf16.msra.mxu0 %v3525
        %3537 = vmatpush.bf16.msra.mxu0 %v3524
        %3538 = vmatpush.bf16.msra.mxu0 %v3523
        %3539 = vmatpush.bf16.msra.mxu0 %v3522
        %3540 = vmatpush.bf16.msra.mxu0 %v3521
        %3541 = vmatpush.bf16.msra.mxu0 %v3520
        %3542 = vmatpush.bf16.msra.mxu0 %v3519
        %3543 = vmatmul.bf16.gmra.mxu0 %v3466
        %v3544 = vpop.f32.mrf.mxu0
        %v3545 = vadd.f32 0.0, %v3544
        %v3546 = vpop.f32.mrf.mxu0
        %v3547 = vadd.f32 0.0, %v3546
        %3548 = vmatmul.bf16.gmra.mxu0 %v3469
        %v3549 = vpop.f32.mrf.mxu0
        %v3550 = vadd.f32 0.0, %v3549
        %v3551 = vpop.f32.mrf.mxu0
        %v3552 = vadd.f32 0.0, %v3551
        %3553 = vdwg.mxu0
        %v3554 = vadd.f32 %v613, %v3545
        %v3555 = vadd.f32 %v614, %v3547
        %v3556 = vadd.f32 %v615, %v3550
        %v3557 = vadd.f32 %v616, %v3552
        %v3558 = vld [vmem:[%s589] sm:$0x1]
        %v3559 = vld [vmem:[%s592] sm:$0x1]
        %3560 = vadd.xlane.f32.xlu0 %v3554
        %v3561 = vpop.xlane.xlu0 %3560
        %3562 = vadd.xlane.f32.xlu0 %v3555
        %v3563 = vpop.xlane.xlu0 %3562
        %3564 = vadd.xlane.f32.xlu0 %v3556
        %v3565 = vpop.xlane.xlu0 %3564
        %3566 = vadd.xlane.f32.xlu0 %v3557
        %v3567 = vpop.xlane.xlu0 %3566
        %v3568 = vrcp.pop 128.0
        %v3569 = vmul.f32 128.0, %v3568
        %v3570 = vsub.f32 1.0, %v3569
        %v3571 = vmul.f32 %v3568, %v3570
        %v3572 = vadd.f32 %v3568, %v3571
        %vm3573 = vweird.f32 %v3568
        %v3574 = vsel %vm3573, %v3568, %v3572
        %v3575 = vmul.f32 %v3561, %v3574
        %v3576 = vmul.f32 %v3563, %v3574
        %v3577 = vmul.f32 %v3565, %v3574
        %v3578 = vmul.f32 %v3567, %v3574
        %v3579 = vsub.f32 %v3554, %v3575
        %v3580 = vsub.f32 %v3555, %v3576
        %v3581 = vsub.f32 %v3556, %v3577
        %v3582 = vsub.f32 %v3557, %v3578
        %v3583 = vmul.f32 %v3579, %v3579
        %v3584 = vmul.f32 %v3580, %v3580
        %v3585 = vmul.f32 %v3581, %v3581
        %v3586 = vmul.f32 %v3582, %v3582
        %3587 = vadd.xlane.f32.xlu0 %v3583
        %v3588 = vpop.xlane.xlu0 %3587
        %3589 = vadd.xlane.f32.xlu0 %v3584
        %v3590 = vpop.xlane.xlu0 %3589
        %3591 = vadd.xlane.f32.xlu0 %v3585
        %v3592 = vpop.xlane.xlu0 %3591
        %3593 = vadd.xlane.f32.xlu0 %v3586
        %v3594 = vpop.xlane.xlu0 %3593
        %v3595 = vmul.f32 %v3588, %v3574
        %v3596 = vmul.f32 %v3590, %v3574
        %v3597 = vmul.f32 %v3592, %v3574
        %v3598 = vmul.f32 %v3594, %v3574
        %v3599 = vadd.f32 %v3595, 1e-05
        %v3600 = vadd.f32 %v3596, 1e-05
        %v3601 = vadd.f32 %v3597, 1e-05
        %v3602 = vadd.f32 %v3598, 1e-05
        %v3603 = vrsqrt.pop %v3599
        %v3604 = vmul.f32 %v3603, %v3599
        %v3605 = vmul.f32 %v3604, %v3603
        %v3606 = vmul.f32 0.5, %v3605
        %v3607 = vsub.f32 1.5, %v3606
        %v3608 = vmul.f32 %v3603, %v3607
        %vm3609 = vweird.f32 %v3599
        %vm3610 = vweird.f32 %v3603
        %vm3611 = vmor %vm3609, %vm3610
        %v3612 = vsel %vm3611, %v3603, %v3608
        %v3613 = vrsqrt.pop %v3600
        %v3614 = vmul.f32 %v3613, %v3600
        %v3615 = vmul.f32 %v3614, %v3613
        %v3616 = vmul.f32 0.5, %v3615
        %v3617 = vsub.f32 1.5, %v3616
        %v3618 = vmul.f32 %v3613, %v3617
        %vm3619 = vweird.f32 %v3600
        %vm3620 = vweird.f32 %v3613
        %vm3621 = vmor %vm3619, %vm3620
        %v3622 = vsel %vm3621, %v3613, %v3618
        %v3623 = vrsqrt.pop %v3601
        %v3624 = vmul.f32 %v3623, %v3601
        %v3625 = vmul.f32 %v3624, %v3623
        %v3626 = vmul.f32 0.5, %v3625
        %v3627 = vsub.f32 1.5, %v3626
        %v3628 = vmul.f32 %v3623, %v3627
        %vm3629 = vweird.f32 %v3601
        %vm3630 = vweird.f32 %v3623
        %vm3631 = vmor %vm3629, %vm3630
        %v3632 = vsel %vm3631, %v3623, %v3628
        %v3633 = vrsqrt.pop %v3602
        %v3634 = vmul.f32 %v3633, %v3602
        %v3635 = vmul.f32 %v3634, %v3633
        %v3636 = vmul.f32 0.5, %v3635
        %v3637 = vsub.f32 1.5, %v3636
        %v3638 = vmul.f32 %v3633, %v3637
        %vm3639 = vweird.f32 %v3602
        %vm3640 = vweird.f32 %v3633
        %vm3641 = vmor %vm3639, %vm3640
        %v3642 = vsel %vm3641, %v3633, %v3638
        %v3643 = vmul.f32 %v3579, %v3612
        %v3644 = vmul.f32 %v3580, %v3622
        %v3645 = vmul.f32 %v3581, %v3632
        %v3646 = vmul.f32 %v3582, %v3642
        %v3648 = vperm.slane %v3558, 0
        %v3650 = vmul.f32 %v3643, %v3648
        %v3651 = vmul.f32 %v3644, %v3648
        %v3652 = vmul.f32 %v3645, %v3648
        %v3653 = vmul.f32 %v3646, %v3648
        %v3655 = vperm.slane %v3559, 0
        %v3657 = vadd.f32 %v3650, %v3655
        %v3658 = vadd.f32 %v3651, %v3655
        %v3659 = vadd.f32 %v3652, %v3655
        %v3660 = vadd.f32 %v3653, %v3655
        %v3661 = vpack.c.bf16 %v3658, %v3657
        %v3662 = vpack.c.bf16 %v3660, %v3659
        %v3663 = vld [vmem:[%s516] sm:$0xff]
        %v3664 = vld [vmem:[%s516 + $0x8] sm:$0xff]
        %v3665 = vld [vmem:[%s516 + $0x10] sm:$0xff]
        %v3666 = vld [vmem:[%s516 + $0x18] sm:$0xff]
        %v3667 = vld [vmem:[%s516 + $0x20] sm:$0xff]
        %v3668 = vld [vmem:[%s516 + $0x28] sm:$0xff]
        %v3669 = vld [vmem:[%s516 + $0x30] sm:$0xff]
        %v3670 = vld [vmem:[%s516 + $0x38] sm:$0xff]
        %v3671 = vld [vmem:[%s516 + $0x40] sm:$0xff]
        %v3672 = vld [vmem:[%s516 + $0x48] sm:$0xff]
        %v3673 = vld [vmem:[%s516 + $0x50] sm:$0xff]
        %v3674 = vld [vmem:[%s516 + $0x58] sm:$0xff]
        %v3675 = vld [vmem:[%s516 + $0x60] sm:$0xff]
        %v3676 = vld [vmem:[%s516 + $0x68] sm:$0xff]
        %v3677 = vld [vmem:[%s516 + $0x70] sm:$0xff]
        %v3678 = vld [vmem:[%s516 + $0x78] sm:$0xff]
        %v3679 = vld [vmem:[%s516 + $0x80] sm:$0xff]
        %v3680 = vld [vmem:[%s516 + $0x88] sm:$0xff]
        %v3681 = vld [vmem:[%s516 + $0x90] sm:$0xff]
        %v3682 = vld [vmem:[%s516 + $0x98] sm:$0xff]
        %v3683 = vld [vmem:[%s516 + $0xa0] sm:$0xff]
        %v3684 = vld [vmem:[%s516 + $0xa8] sm:$0xff]
        %v3685 = vld [vmem:[%s516 + $0xb0] sm:$0xff]
        %v3686 = vld [vmem:[%s516 + $0xb8] sm:$0xff]
        %v3687 = vld [vmem:[%s516 + $0xc0] sm:$0xff]
        %v3688 = vld [vmem:[%s516 + $0xc8] sm:$0xff]
        %v3689 = vld [vmem:[%s516 + $0xd0] sm:$0xff]
        %v3690 = vld [vmem:[%s516 + $0xd8] sm:$0xff]
        %v3691 = vld [vmem:[%s516 + $0xe0] sm:$0xff]
        %v3692 = vld [vmem:[%s516 + $0xe8] sm:$0xff]
        %v3693 = vld [vmem:[%s516 + $0xf0] sm:$0xff]
        %v3694 = vld [vmem:[%s516 + $0xf8] sm:$0xff]
        %v3727 = vunpack.c.l.b16 %v3663
        %v3728 = vunpack.c.h.b16 %v3663
        %v3729 = vunpack.c.l.b16 %v3664
        %v3730 = vunpack.c.h.b16 %v3664
        %v3731 = vunpack.c.l.b16 %v3665
        %v3732 = vunpack.c.h.b16 %v3665
        %v3733 = vunpack.c.l.b16 %v3666
        %v3734 = vunpack.c.h.b16 %v3666
        %v3735 = vunpack.c.l.b16 %v3667
        %v3736 = vunpack.c.h.b16 %v3667
        %v3737 = vunpack.c.l.b16 %v3668
        %v3738 = vunpack.c.h.b16 %v3668
        %v3739 = vunpack.c.l.b16 %v3669
        %v3740 = vunpack.c.h.b16 %v3669
        %v3741 = vunpack.c.l.b16 %v3670
        %v3742 = vunpack.c.h.b16 %v3670
        %v3743 = vunpack.c.l.b16 %v3671
        %v3744 = vunpack.c.h.b16 %v3671
        %v3745 = vunpack.c.l.b16 %v3672
        %v3746 = vunpack.c.h.b16 %v3672
        %v3747 = vunpack.c.l.b16 %v3673
        %v3748 = vunpack.c.h.b16 %v3673
        %v3749 = vunpack.c.l.b16 %v3674
        %v3750 = vunpack.c.h.b16 %v3674
        %v3751 = vunpack.c.l.b16 %v3675
        %v3752 = vunpack.c.h.b16 %v3675
        %v3753 = vunpack.c.l.b16 %v3676
        %v3754 = vunpack.c.h.b16 %v3676
        %v3755 = vunpack.c.l.b16 %v3677
        %v3756 = vunpack.c.h.b16 %v3677
        %v3757 = vunpack.c.l.b16 %v3678
        %v3758 = vunpack.c.h.b16 %v3678
        %v3759 = vunpack.c.l.b16 %v3679
        %v3760 = vunpack.c.h.b16 %v3679
        %v3761 = vunpack.c.l.b16 %v3680
        %v3762 = vunpack.c.h.b16 %v3680
        %v3763 = vunpack.c.l.b16 %v3681
        %v3764 = vunpack.c.h.b16 %v3681
        %v3765 = vunpack.c.l.b16 %v3682
        %v3766 = vunpack.c.h.b16 %v3682
        %v3767 = vunpack.c.l.b16 %v3683
        %v3768 = vunpack.c.h.b16 %v3683
        %v3769 = vunpack.c.l.b16 %v3684
        %v3770 = vunpack.c.h.b16 %v3684
        %v3771 = vunpack.c.l.b16 %v3685
        %v3772 = vunpack.c.h.b16 %v3685
        %v3773 = vunpack.c.l.b16 %v3686
        %v3774 = vunpack.c.h.b16 %v3686
        %v3775 = vunpack.c.l.b16 %v3687
        %v3776 = vunpack.c.h.b16 %v3687
        %v3777 = vunpack.c.l.b16 %v3688
        %v3778 = vunpack.c.h.b16 %v3688
        %v3779 = vunpack.c.l.b16 %v3689
        %v3780 = vunpack.c.h.b16 %v3689
        %v3781 = vunpack.c.l.b16 %v3690
        %v3782 = vunpack.c.h.b16 %v3690
        %v3783 = vunpack.c.l.b16 %v3691
        %v3784 = vunpack.c.h.b16 %v3691
        %v3785 = vunpack.c.l.b16 %v3692
        %v3786 = vunpack.c.h.b16 %v3692
        %v3787 = vunpack.c.l.b16 %v3693
        %v3788 = vunpack.c.h.b16 %v3693
        %v3789 = vunpack.c.l.b16 %v3694
        %v3790 = vunpack.c.h.b16 %v3694
        %v3791 = vpack.c.b16 %v3731, %v3727
        %v3792 = vpack.c.b16 %v3732, %v3728
        %v3793 = vpack.c.b16 %v3733, %v3729
        %v3794 = vpack.c.b16 %v3734, %v3730
        %v3795 = vpack.c.b16 %v3739, %v3735
        %v3796 = vpack.c.b16 %v3740, %v3736
        %v3797 = vpack.c.b16 %v3741, %v3737
        %v3798 = vpack.c.b16 %v3742, %v3738
        %v3799 = vpack.c.b16 %v3747, %v3743
        %v3800 = vpack.c.b16 %v3748, %v3744
        %v3801 = vpack.c.b16 %v3749, %v3745
        %v3802 = vpack.c.b16 %v3750, %v3746
        %v3803 = vpack.c.b16 %v3755, %v3751
        %v3804 = vpack.c.b16 %v3756, %v3752
        %v3805 = vpack.c.b16 %v3757, %v3753
        %v3806 = vpack.c.b16 %v3758, %v3754
        %v3807 = vpack.c.b16 %v3763, %v3759
        %v3808 = vpack.c.b16 %v3764, %v3760
        %v3809 = vpack.c.b16 %v3765, %v3761
        %v3810 = vpack.c.b16 %v3766, %v3762
        %v3811 = vpack.c.b16 %v3771, %v3767
        %v3812 = vpack.c.b16 %v3772, %v3768
        %v3813 = vpack.c.b16 %v3773, %v3769
        %v3814 = vpack.c.b16 %v3774, %v3770
        %v3815 = vpack.c.b16 %v3779, %v3775
        %v3816 = vpack.c.b16 %v3780, %v3776
        %v3817 = vpack.c.b16 %v3781, %v3777
        %v3818 = vpack.c.b16 %v3782, %v3778
        %v3819 = vpack.c.b16 %v3787, %v3783
        %v3820 = vpack.c.b16 %v3788, %v3784
        %v3821 = vpack.c.b16 %v3789, %v3785
        %v3822 = vpack.c.b16 %v3790, %v3786
        %3855 = vmatpush.bf16.msra.mxu0 %v3819
        %3856 = vmatpush.bf16.msra.mxu0 %v3815
        %3857 = vmatpush.bf16.msra.mxu0 %v3811
        %3858 = vmatpush.bf16.msra.mxu0 %v3807
        %3859 = vmatpush.bf16.msra.mxu0 %v3803
        %3860 = vmatpush.bf16.msra.mxu0 %v3799
        %3861 = vmatpush.bf16.msra.mxu0 %v3795
        %3862 = vmatpush.bf16.msra.mxu0 %v3791
        %3863 = vmatmul.bf16.gmra.mxu0 %v3661
        %v3864 = vpop.f32.mrf.mxu0
        %v3865 = vadd.f32 0.0, %v3864
        %v3866 = vpop.f32.mrf.mxu0
        %v3867 = vadd.f32 0.0, %v3866
        %3868 = vmatmul.bf16.gmra.mxu0 %v3662
        %v3869 = vpop.f32.mrf.mxu0
        %v3870 = vadd.f32 0.0, %v3869
        %v3871 = vpop.f32.mrf.mxu0
        %v3872 = vadd.f32 0.0, %v3871
        %3873 = vdwg.mxu0
        %3874 = vmatpush.bf16.msra.mxu0 %v3820
        %3875 = vmatpush.bf16.msra.mxu0 %v3816
        %3876 = vmatpush.bf16.msra.mxu0 %v3812
        %3877 = vmatpush.bf16.msra.mxu0 %v3808
        %3878 = vmatpush.bf16.msra.mxu0 %v3804
        %3879 = vmatpush.bf16.msra.mxu0 %v3800
        %3880 = vmatpush.bf16.msra.mxu0 %v3796
        %3881 = vmatpush.bf16.msra.mxu0 %v3792
        %3882 = vmatmul.bf16.gmra.mxu0 %v3661
        %v3883 = vpop.f32.mrf.mxu0
        %v3884 = vadd.f32 0.0, %v3883
        %v3885 = vpop.f32.mrf.mxu0
        %v3886 = vadd.f32 0.0, %v3885
        %3887 = vmatmul.bf16.gmra.mxu0 %v3662
        %v3888 = vpop.f32.mrf.mxu0
        %v3889 = vadd.f32 0.0, %v3888
        %v3890 = vpop.f32.mrf.mxu0
        %v3891 = vadd.f32 0.0, %v3890
        %3892 = vdwg.mxu0
        %3893 = vmatpush.bf16.msra.mxu0 %v3821
        %3894 = vmatpush.bf16.msra.mxu0 %v3817
        %3895 = vmatpush.bf16.msra.mxu0 %v3813
        %3896 = vmatpush.bf16.msra.mxu0 %v3809
        %3897 = vmatpush.bf16.msra.mxu0 %v3805
        %3898 = vmatpush.bf16.msra.mxu0 %v3801
        %3899 = vmatpush.bf16.msra.mxu0 %v3797
        %3900 = vmatpush.bf16.msra.mxu0 %v3793
        %3901 = vmatmul.bf16.gmra.mxu0 %v3661
        %v3902 = vpop.f32.mrf.mxu0
        %v3903 = vadd.f32 0.0, %v3902
        %v3904 = vpop.f32.mrf.mxu0
        %v3905 = vadd.f32 0.0, %v3904
        %3906 = vmatmul.bf16.gmra.mxu0 %v3662
        %v3907 = vpop.f32.mrf.mxu0
        %v3908 = vadd.f32 0.0, %v3907
        %v3909 = vpop.f32.mrf.mxu0
        %v3910 = vadd.f32 0.0, %v3909
        %3911 = vdwg.mxu0
        %3912 = vmatpush.bf16.msra.mxu0 %v3822
        %3913 = vmatpush.bf16.msra.mxu0 %v3818
        %3914 = vmatpush.bf16.msra.mxu0 %v3814
        %3915 = vmatpush.bf16.msra.mxu0 %v3810
        %3916 = vmatpush.bf16.msra.mxu0 %v3806
        %3917 = vmatpush.bf16.msra.mxu0 %v3802
        %3918 = vmatpush.bf16.msra.mxu0 %v3798
        %3919 = vmatpush.bf16.msra.mxu0 %v3794
        %3920 = vmatmul.bf16.gmra.mxu0 %v3661
        %v3921 = vpop.f32.mrf.mxu0
        %v3922 = vadd.f32 0.0, %v3921
        %v3923 = vpop.f32.mrf.mxu0
        %v3924 = vadd.f32 0.0, %v3923
        %3925 = vmatmul.bf16.gmra.mxu0 %v3662
        %v3926 = vpop.f32.mrf.mxu0
        %v3927 = vadd.f32 0.0, %v3926
        %v3928 = vpop.f32.mrf.mxu0
        %v3929 = vadd.f32 0.0, %v3928
        %3930 = vdwg.mxu0
        %v3931 = vmax.f32 %v3865, 0.0
        %v3932 = vmax.f32 %v3884, 0.0
        %v3933 = vmax.f32 %v3903, 0.0
        %v3934 = vmax.f32 %v3922, 0.0
        %v3935 = vmax.f32 %v3867, 0.0
        %v3936 = vmax.f32 %v3886, 0.0
        %v3937 = vmax.f32 %v3905, 0.0
        %v3938 = vmax.f32 %v3924, 0.0
        %v3939 = vmax.f32 %v3870, 0.0
        %v3940 = vmax.f32 %v3889, 0.0
        %v3941 = vmax.f32 %v3908, 0.0
        %v3942 = vmax.f32 %v3927, 0.0
        %v3943 = vmax.f32 %v3872, 0.0
        %v3944 = vmax.f32 %v3891, 0.0
        %v3945 = vmax.f32 %v3910, 0.0
        %v3946 = vmax.f32 %v3929, 0.0
        %v3947 = vpack.c.bf16 %v3935, %v3931
        %v3948 = vpack.c.bf16 %v3936, %v3932
        %v3949 = vpack.c.bf16 %v3937, %v3933
        %v3950 = vpack.c.bf16 %v3938, %v3934
        %v3951 = vpack.c.bf16 %v3943, %v3939
        %v3952 = vpack.c.bf16 %v3944, %v3940
        %v3953 = vpack.c.bf16 %v3945, %v3941
        %v3954 = vpack.c.bf16 %v3946, %v3942
        %v3955 = vld [vmem:[%s526] sm:$0xf]
        %v3956 = vld [vmem:[%s526 + $0x4] sm:$0xf]
        %v3957 = vld [vmem:[%s526 + $0x8] sm:$0xf]
        %v3958 = vld [vmem:[%s526 + $0xc] sm:$0xf]
        %v3959 = vld [vmem:[%s526 + $0x10] sm:$0xf]
        %v3960 = vld [vmem:[%s526 + $0x14] sm:$0xf]
        %v3961 = vld [vmem:[%s526 + $0x18] sm:$0xf]
        %v3962 = vld [vmem:[%s526 + $0x1c] sm:$0xf]
        %v3963 = vld [vmem:[%s526 + $0x20] sm:$0xf]
        %v3964 = vld [vmem:[%s526 + $0x24] sm:$0xf]
        %v3965 = vld [vmem:[%s526 + $0x28] sm:$0xf]
        %v3966 = vld [vmem:[%s526 + $0x2c] sm:$0xf]
        %v3967 = vld [vmem:[%s526 + $0x30] sm:$0xf]
        %v3968 = vld [vmem:[%s526 + $0x34] sm:$0xf]
        %v3969 = vld [vmem:[%s526 + $0x38] sm:$0xf]
        %v3970 = vld [vmem:[%s526 + $0x3c] sm:$0xf]
        %v3971 = vld [vmem:[%s526 + $0x40] sm:$0xf]
        %v3972 = vld [vmem:[%s526 + $0x44] sm:$0xf]
        %v3973 = vld [vmem:[%s526 + $0x48] sm:$0xf]
        %v3974 = vld [vmem:[%s526 + $0x4c] sm:$0xf]
        %v3975 = vld [vmem:[%s526 + $0x50] sm:$0xf]
        %v3976 = vld [vmem:[%s526 + $0x54] sm:$0xf]
        %v3977 = vld [vmem:[%s526 + $0x58] sm:$0xf]
        %v3978 = vld [vmem:[%s526 + $0x5c] sm:$0xf]
        %v3979 = vld [vmem:[%s526 + $0x60] sm:$0xf]
        %v3980 = vld [vmem:[%s526 + $0x64] sm:$0xf]
        %v3981 = vld [vmem:[%s526 + $0x68] sm:$0xf]
        %v3982 = vld [vmem:[%s526 + $0x6c] sm:$0xf]
        %v3983 = vld [vmem:[%s526 + $0x70] sm:$0xf]
        %v3984 = vld [vmem:[%s526 + $0x74] sm:$0xf]
        %v3985 = vld [vmem:[%s526 + $0x78] sm:$0xf]
        %v3986 = vld [vmem:[%s526 + $0x7c] sm:$0xf]
        %v3987 = vld [vmem:[%s526 + $0x80] sm:$0xf]
        %v3988 = vld [vmem:[%s526 + $0x84] sm:$0xf]
        %v3989 = vld [vmem:[%s526 + $0x88] sm:$0xf]
        %v3990 = vld [vmem:[%s526 + $0x8c] sm:$0xf]
        %v3991 = vld [vmem:[%s526 + $0x90] sm:$0xf]
        %v3992 = vld [vmem:[%s526 + $0x94] sm:$0xf]
        %v3993 = vld [vmem:[%s526 + $0x98] sm:$0xf]
        %v3994 = vld [vmem:[%s526 + $0x9c] sm:$0xf]
        %v3995 = vld [vmem:[%s526 + $0xa0] sm:$0xf]
        %v3996 = vld [vmem:[%s526 + $0xa4] sm:$0xf]
        %v3997 = vld [vmem:[%s526 + $0xa8] sm:$0xf]
        %v3998 = vld [vmem:[%s526 + $0xac] sm:$0xf]
        %v3999 = vld [vmem:[%s526 + $0xb0] sm:$0xf]
        %v4000 = vld [vmem:[%s526 + $0xb4] sm:$0xf]
        %v4001 = vld [vmem:[%s526 + $0xb8] sm:$0xf]
        %v4002 = vld [vmem:[%s526 + $0xbc] sm:$0xf]
        %v4003 = vld [vmem:[%s526 + $0xc0] sm:$0xf]
        %v4004 = vld [vmem:[%s526 + $0xc4] sm:$0xf]
        %v4005 = vld [vmem:[%s526 + $0xc8] sm:$0xf]
        %v4006 = vld [vmem:[%s526 + $0xcc] sm:$0xf]
        %v4007 = vld [vmem:[%s526 + $0xd0] sm:$0xf]
        %v4008 = vld [vmem:[%s526 + $0xd4] sm:$0xf]
        %v4009 = vld [vmem:[%s526 + $0xd8] sm:$0xf]
        %v4010 = vld [vmem:[%s526 + $0xdc] sm:$0xf]
        %v4011 = vld [vmem:[%s526 + $0xe0] sm:$0xf]
        %v4012 = vld [vmem:[%s526 + $0xe4] sm:$0xf]
        %v4013 = vld [vmem:[%s526 + $0xe8] sm:$0xf]
        %v4014 = vld [vmem:[%s526 + $0xec] sm:$0xf]
        %v4015 = vld [vmem:[%s526 + $0xf0] sm:$0xf]
        %v4016 = vld [vmem:[%s526 + $0xf4] sm:$0xf]
        %v4017 = vld [vmem:[%s526 + $0xf8] sm:$0xf]
        %v4018 = vld [vmem:[%s526 + $0xfc] sm:$0xf]
        %v4083 = vunpack.c.l.b16 %v3955
        %v4084 = vunpack.c.l.b16 %v3956
        %v4085 = vunpack.c.l.b16 %v3957
        %v4086 = vunpack.c.l.b16 %v3958
        %v4087 = vunpack.c.l.b16 %v3959
        %v4088 = vunpack.c.l.b16 %v3960
        %v4089 = vunpack.c.l.b16 %v3961
        %v4090 = vunpack.c.l.b16 %v3962
        %v4091 = vunpack.c.l.b16 %v3963
        %v4092 = vunpack.c.l.b16 %v3964
        %v4093 = vunpack.c.l.b16 %v3965
        %v4094 = vunpack.c.l.b16 %v3966
        %v4095 = vunpack.c.l.b16 %v3967
        %v4096 = vunpack.c.l.b16 %v3968
        %v4097 = vunpack.c.l.b16 %v3969
        %v4098 = vunpack.c.l.b16 %v3970
        %v4099 = vunpack.c.l.b16 %v3971
        %v4100 = vunpack.c.l.b16 %v3972
        %v4101 = vunpack.c.l.b16 %v3973
        %v4102 = vunpack.c.l.b16 %v3974
        %v4103 = vunpack.c.l.b16 %v3975
        %v4104 = vunpack.c.l.b16 %v3976
        %v4105 = vunpack.c.l.b16 %v3977
        %v4106 = vunpack.c.l.b16 %v3978
        %v4107 = vunpack.c.l.b16 %v3979
        %v4108 = vunpack.c.l.b16 %v3980
        %v4109 = vunpack.c.l.b16 %v3981
        %v4110 = vunpack.c.l.b16 %v3982
        %v4111 = vunpack.c.l.b16 %v3983
        %v4112 = vunpack.c.l.b16 %v3984
        %v4113 = vunpack.c.l.b16 %v3985
        %v4114 = vunpack.c.l.b16 %v3986
        %v4115 = vunpack.c.l.b16 %v3987
        %v4116 = vunpack.c.l.b16 %v3988
        %v4117 = vunpack.c.l.b16 %v3989
        %v4118 = vunpack.c.l.b16 %v3990
        %v4119 = vunpack.c.l.b16 %v3991
        %v4120 = vunpack.c.l.b16 %v3992
        %v4121 = vunpack.c.l.b16 %v3993
        %v4122 = vunpack.c.l.b16 %v3994
        %v4123 = vunpack.c.l.b16 %v3995
        %v4124 = vunpack.c.l.b16 %v3996
        %v4125 = vunpack.c.l.b16 %v3997
        %v4126 = vunpack.c.l.b16 %v3998
        %v4127 = vunpack.c.l.b16 %v3999
        %v4128 = vunpack.c.l.b16 %v4000
        %v4129 = vunpack.c.l.b16 %v4001
        %v4130 = vunpack.c.l.b16 %v4002
        %v4131 = vunpack.c.l.b16 %v4003
        %v4132 = vunpack.c.l.b16 %v4004
        %v4133 = vunpack.c.l.b16 %v4005
        %v4134 = vunpack.c.l.b16 %v4006
        %v4135 = vunpack.c.l.b16 %v4007
        %v4136 = vunpack.c.l.b16 %v4008
        %v4137 = vunpack.c.l.b16 %v4009
        %v4138 = vunpack.c.l.b16 %v4010
        %v4139 = vunpack.c.l.b16 %v4011
        %v4140 = vunpack.c.l.b16 %v4012
        %v4141 = vunpack.c.l.b16 %v4013
        %v4142 = vunpack.c.l.b16 %v4014
        %v4143 = vunpack.c.l.b16 %v4015
        %v4144 = vunpack.c.l.b16 %v4016
        %v4145 = vunpack.c.l.b16 %v4017
        %v4146 = vunpack.c.l.b16 %v4018
        %v4147 = vpack.c.b16 %v4084, %v4083
        %v4148 = vpack.c.b16 %v4086, %v4085
        %v4149 = vpack.c.b16 %v4088, %v4087
        %v4150 = vpack.c.b16 %v4090, %v4089
        %v4151 = vpack.c.b16 %v4092, %v4091
        %v4152 = vpack.c.b16 %v4094, %v4093
        %v4153 = vpack.c.b16 %v4096, %v4095
        %v4154 = vpack.c.b16 %v4098, %v4097
        %v4155 = vpack.c.b16 %v4100, %v4099
        %v4156 = vpack.c.b16 %v4102, %v4101
        %v4157 = vpack.c.b16 %v4104, %v4103
        %v4158 = vpack.c.b16 %v4106, %v4105
        %v4159 = vpack.c.b16 %v4108, %v4107
        %v4160 = vpack.c.b16 %v4110, %v4109
        %v4161 = vpack.c.b16 %v4112, %v4111
        %v4162 = vpack.c.b16 %v4114, %v4113
        %v4163 = vpack.c.b16 %v4116, %v4115
        %v4164 = vpack.c.b16 %v4118, %v4117
        %v4165 = vpack.c.b16 %v4120, %v4119
        %v4166 = vpack.c.b16 %v4122, %v4121
        %v4167 = vpack.c.b16 %v4124, %v4123
        %v4168 = vpack.c.b16 %v4126, %v4125
        %v4169 = vpack.c.b16 %v4128, %v4127
        %v4170 = vpack.c.b16 %v4130, %v4129
        %v4171 = vpack.c.b16 %v4132, %v4131
        %v4172 = vpack.c.b16 %v4134, %v4133
        %v4173 = vpack.c.b16 %v4136, %v4135
        %v4174 = vpack.c.b16 %v4138, %v4137
        %v4175 = vpack.c.b16 %v4140, %v4139
        %v4176 = vpack.c.b16 %v4142, %v4141
        %v4177 = vpack.c.b16 %v4144, %v4143
        %v4178 = vpack.c.b16 %v4146, %v4145
        %4211 = vmatpush.bf16.msra.mxu0 %v4154
        %4212 = vmatpush.bf16.msra.mxu0 %v4153
        %4213 = vmatpush.bf16.msra.mxu0 %v4152
        %4214 = vmatpush.bf16.msra.mxu0 %v4151
        %4215 = vmatpush.bf16.msra.mxu0 %v4150
        %4216 = vmatpush.bf16.msra.mxu0 %v4149
        %4217 = vmatpush.bf16.msra.mxu0 %v4148
        %4218 = vmatpush.bf16.msra.mxu0 %v4147
        %4219 = vmatmul.bf16.gmra.mxu0 %v3947
        %v4220 = vpop.f32.mrf.mxu0
        %v4221 = vadd.f32 0.0, %v4220
        %v4222 = vpop.f32.mrf.mxu0
        %v4223 = vadd.f32 0.0, %v4222
        %4224 = vmatmul.bf16.gmra.mxu0 %v3951
        %v4225 = vpop.f32.mrf.mxu0
        %v4226 = vadd.f32 0.0, %v4225
        %v4227 = vpop.f32.mrf.mxu0
        %v4228 = vadd.f32 0.0, %v4227
        %4229 = vdwg.mxu0
        %4230 = vmatpush.bf16.msra.mxu0 %v4162
        %4231 = vmatpush.bf16.msra.mxu0 %v4161
        %4232 = vmatpush.bf16.msra.mxu0 %v4160
        %4233 = vmatpush.bf16.msra.mxu0 %v4159
        %4234 = vmatpush.bf16.msra.mxu0 %v4158
        %4235 = vmatpush.bf16.msra.mxu0 %v4157
        %4236 = vmatpush.bf16.msra.mxu0 %v4156
        %4237 = vmatpush.bf16.msra.mxu0 %v4155
        %4238 = vmatmul.bf16.gmra.mxu0 %v3948
        %v4239 = vpop.f32.mrf.mxu0
        %v4240 = vadd.f32 %v4221, %v4239
        %v4241 = vpop.f32.mrf.mxu0
        %v4242 = vadd.f32 %v4223, %v4241
        %4243 = vmatmul.bf16.gmra.mxu0 %v3952
        %v4244 = vpop.f32.mrf.mxu0
        %v4245 = vadd.f32 %v4226, %v4244
        %v4246 = vpop.f32.mrf.mxu0
        %v4247 = vadd.f32 %v4228, %v4246
        %4248 = vdwg.mxu0
        %4249 = vmatpush.bf16.msra.mxu0 %v4170
        %4250 = vmatpush.bf16.msra.mxu0 %v4169
        %4251 = vmatpush.bf16.msra.mxu0 %v4168
        %4252 = vmatpush.bf16.msra.mxu0 %v4167
        %4253 = vmatpush.bf16.msra.mxu0 %v4166
        %4254 = vmatpush.bf16.msra.mxu0 %v4165
        %4255 = vmatpush.bf16.msra.mxu0 %v4164
        %4256 = vmatpush.bf16.msra.mxu0 %v4163
        %4257 = vmatmul.bf16.gmra.mxu0 %v3949
        %v4258 = vpop.f32.mrf.mxu0
        %v4259 = vadd.f32 %v4240, %v4258
        %v4260 = vpop.f32.mrf.mxu0
        %v4261 = vadd.f32 %v4242, %v4260
        %4262 = vmatmul.bf16.gmra.mxu0 %v3953
        %v4263 = vpop.f32.mrf.mxu0
        %v4264 = vadd.f32 %v4245, %v4263
        %v4265 = vpop.f32.mrf.mxu0
        %v4266 = vadd.f32 %v4247, %v4265
        %4267 = vdwg.mxu0
        %4268 = vmatpush.bf16.msra.mxu0 %v4178
        %4269 = vmatpush.bf16.msra.mxu0 %v4177
        %4270 = vmatpush.bf16.msra.mxu0 %v4176
        %4271 = vmatpush.bf16.msra.mxu0 %v4175
        %4272 = vmatpush.bf16.msra.mxu0 %v4174
        %4273 = vmatpush.bf16.msra.mxu0 %v4173
        %4274 = vmatpush.bf16.msra.mxu0 %v4172
        %4275 = vmatpush.bf16.msra.mxu0 %v4171
        %4276 = vmatmul.bf16.gmra.mxu0 %v3950
        %v4277 = vpop.f32.mrf.mxu0
        %v4278 = vadd.f32 %v4259, %v4277
        %v4279 = vpop.f32.mrf.mxu0
        %v4280 = vadd.f32 %v4261, %v4279
        %4281 = vmatmul.bf16.gmra.mxu0 %v3954
        %v4282 = vpop.f32.mrf.mxu0
        %v4283 = vadd.f32 %v4264, %v4282
        %v4284 = vpop.f32.mrf.mxu0
        %v4285 = vadd.f32 %v4266, %v4284
        %4286 = vdwg.mxu0
        %v4287 = vadd.f32 %v3657, %v4278
        %v4288 = vadd.f32 %v3658, %v4280
        %v4289 = vadd.f32 %v3659, %v4283
        %v4290 = vadd.f32 %v3660, %v4285
        %v4291 = vld [vmem:[%s595] sm:$0x1]
        %v4292 = vld [vmem:[%s598] sm:$0x1]
        %4293 = vadd.xlane.f32.xlu0 %v4287
        %v4294 = vpop.xlane.xlu0 %4293
        %4295 = vadd.xlane.f32.xlu0 %v4288
        %v4296 = vpop.xlane.xlu0 %4295
        %4297 = vadd.xlane.f32.xlu0 %v4289
        %v4298 = vpop.xlane.xlu0 %4297
        %4299 = vadd.xlane.f32.xlu0 %v4290
        %v4300 = vpop.xlane.xlu0 %4299
        %v4301 = vmul.f32 %v4294, %v3574
        %v4302 = vmul.f32 %v4296, %v3574
        %v4303 = vmul.f32 %v4298, %v3574
        %v4304 = vmul.f32 %v4300, %v3574
        %v4305 = vsub.f32 %v4287, %v4301
        %v4306 = vsub.f32 %v4288, %v4302
        %v4307 = vsub.f32 %v4289, %v4303
        %v4308 = vsub.f32 %v4290, %v4304
        %v4309 = vmul.f32 %v4305, %v4305
        %v4310 = vmul.f32 %v4306, %v4306
        %v4311 = vmul.f32 %v4307, %v4307
        %v4312 = vmul.f32 %v4308, %v4308
        %4313 = vadd.xlane.f32.xlu0 %v4309
        %v4314 = vpop.xlane.xlu0 %4313
        %4315 = vadd.xlane.f32.xlu0 %v4310
        %v4316 = vpop.xlane.xlu0 %4315
        %4317 = vadd.xlane.f32.xlu0 %v4311
        %v4318 = vpop.xlane.xlu0 %4317
        %4319 = vadd.xlane.f32.xlu0 %v4312
        %v4320 = vpop.xlane.xlu0 %4319
        %v4321 = vmul.f32 %v4314, %v3574
        %v4322 = vmul.f32 %v4316, %v3574
        %v4323 = vmul.f32 %v4318, %v3574
        %v4324 = vmul.f32 %v4320, %v3574
        %v4325 = vadd.f32 %v4321, 1e-05
        %v4326 = vadd.f32 %v4322, 1e-05
        %v4327 = vadd.f32 %v4323, 1e-05
        %v4328 = vadd.f32 %v4324, 1e-05
        %v4329 = vrsqrt.pop %v4325
        %v4330 = vmul.f32 %v4329, %v4325
        %v4331 = vmul.f32 %v4330, %v4329
        %v4332 = vmul.f32 0.5, %v4331
        %v4333 = vsub.f32 1.5, %v4332
        %v4334 = vmul.f32 %v4329, %v4333
        %vm4335 = vweird.f32 %v4325
        %vm4336 = vweird.f32 %v4329
        %vm4337 = vmor %vm4335, %vm4336
        %v4338 = vsel %vm4337, %v4329, %v4334
        %v4339 = vrsqrt.pop %v4326
        %v4340 = vmul.f32 %v4339, %v4326
        %v4341 = vmul.f32 %v4340, %v4339
        %v4342 = vmul.f32 0.5, %v4341
        %v4343 = vsub.f32 1.5, %v4342
        %v4344 = vmul.f32 %v4339, %v4343
        %vm4345 = vweird.f32 %v4326
        %vm4346 = vweird.f32 %v4339
        %vm4347 = vmor %vm4345, %vm4346
        %v4348 = vsel %vm4347, %v4339, %v4344
        %v4349 = vrsqrt.pop %v4327
        %v4350 = vmul.f32 %v4349, %v4327
        %v4351 = vmul.f32 %v4350, %v4349
        %v4352 = vmul.f32 0.5, %v4351
        %v4353 = vsub.f32 1.5, %v4352
        %v4354 = vmul.f32 %v4349, %v4353
        %vm4355 = vweird.f32 %v4327
        %vm4356 = vweird.f32 %v4349
        %vm4357 = vmor %vm4355, %vm4356
        %v4358 = vsel %vm4357, %v4349, %v4354
        %v4359 = vrsqrt.pop %v4328
        %v4360 = vmul.f32 %v4359, %v4328
        %v4361 = vmul.f32 %v4360, %v4359
        %v4362 = vmul.f32 0.5, %v4361
        %v4363 = vsub.f32 1.5, %v4362
        %v4364 = vmul.f32 %v4359, %v4363
        %vm4365 = vweird.f32 %v4328
        %vm4366 = vweird.f32 %v4359
        %vm4367 = vmor %vm4365, %vm4366
        %v4368 = vsel %vm4367, %v4359, %v4364
        %v4369 = vmul.f32 %v4305, %v4338
        %v4370 = vmul.f32 %v4306, %v4348
        %v4371 = vmul.f32 %v4307, %v4358
        %v4372 = vmul.f32 %v4308, %v4368
        %v4374 = vperm.slane %v4291, 0
        %v4376 = vmul.f32 %v4369, %v4374
        %v4377 = vmul.f32 %v4370, %v4374
        %v4378 = vmul.f32 %v4371, %v4374
        %v4379 = vmul.f32 %v4372, %v4374
        %v4381 = vperm.slane %v4292, 0
        %v4383 = vadd.f32 %v4376, %v4381
        %v4384 = vadd.f32 %v4377, %v4381
        %v4385 = vadd.f32 %v4378, %v4381
        %v4386 = vadd.f32 %v4379, %v4381
        %4387 = vst [vmem:[#allocation11] sm:$0xff] %v4383
        %4388 = vst [vmem:[#allocation11 + $0x8] sm:$0xff] %v4384
        %4389 = vst [vmem:[#allocation11 + $0x10] sm:$0xff] %v4385
        %4390 = vst [vmem:[#allocation11 + $0x18] sm:$0xff] %v4386
        // Predicated region
        $region89: #{tpu_custom_call.1} parent=59 // pred_check
          %p4391 = pneg %p309
        $region90: #{tpu_custom_call.1} parent=59 // pred_check_branch
          %4393 = sbr.rel (%p4391) target = $region92
        $region91: #{tpu_custom_call.1} parent=59 // pred_region
          %s4394 = smul.u32 2, %s28
          %4396 = vsyncadd [#allocation4], 0
          %s4397 = smul.addr %s4394, 2
          %s4398 = smul.addr %s4397, 8
          %s4399 = scalar_lea.hbm %s10, %s4398
          %s4400 = sshll.u32 [#allocation11], 4
          %s4401 = int_to_ptr.vmem [resolvable:$true] %s4400
          %s4402 = sshll.u32 %s4399, 4
          %s4403 = int_to_ptr.hbm [resolvable:$true] %s4402
          %4408 = dma.vmem_to_hbm [thread:$0]  %s4401, 512, %s4403, [#allocation4], 128, 128, 8
        $region92: #{tpu_custom_call.1} parent=59 // pred_fallthru
          _
        // Predicated region
        $region93: #{tpu_custom_call.1} parent=59 // pred_check
          %p4409 = pneg %p309
        $region94: #{tpu_custom_call.1} parent=59 // pred_check_branch
          %4411 = sbr.rel (%p4409) target = $region96
        $region95: #{tpu_custom_call.1} parent=59 // pred_region
          %4413 = dma.done [#allocation4], 512
        $region96: #{tpu_custom_call.1} parent=59 // pred_fallthru
          _
      $region60: #{tpu_custom_call.1} parent=5 // pred_fallthru
        _
      %p4414 = scmp.le.s32.totalorder 2, %s19
      // Predicated region
      $region97: #{tpu_custom_call.1} parent=5 // pred_check
        %p4415 = pneg %p4414
      $region98: #{tpu_custom_call.1} parent=5 // pred_check_branch
        %4417 = sbr.rel (%p4415) target = $region100
      $region99: #{tpu_custom_call.1} parent=5 // pred_region
        %s4418 = ssub.s32 %s19, 2
      $region100: #{tpu_custom_call.1} parent=5 // pred_fallthru
        _
    $region6: #{tpu_custom_call.1} parent=1 // loop_footer
      %s23 = sadd.s32 1, %s19
    $region7: #{tpu_custom_call.1} parent=1 // loop_footer_branch
      %18 = sbr.rel target = $region3
    $region8: #{tpu_custom_call.1} parent=1 // loop_exit
      _
    %4419 = vsyncpa [#allocation3], 1
    %s4420 = scalar_lea.sflag [#allocation3], 1
    %4421 = vsyncpa %s4420, 1
    %4422 = vsyncpa [#allocation6], 1
    %4423 = vsyncpa [#allocation4], 1
    %s4424 = scalar_lea.sflag [#allocation4], 1
    %4425 = vsyncpa %s4424, 1

</llo_original>
